<compile_context>
chip_gen: v6e
topology: v6e:2x2x1
jax: 0.10.0
libtpu: 0.0.40
codegen_flags: <defaults>
</compile_context>

<pallas_src>
import jax
import jax.numpy as jnp
from jax.experimental import pallas as pl
from jax.experimental.pallas import tpu as pltpu

# ---------------- synthetic "BERT" config (small but lane-dense) ------------
VOCAB = 64
HIDDEN = 128          # stands in for 768; multiple of 128 -> lane-dense vregs
NUM_HEADS = 2
HEAD_DIM = HIDDEN // NUM_HEADS
INTERMEDIATE = 128    # stands in for 3072; multiple of 128
NUM_LAYERS = 2
MAX_POS = 16
LN_EPS = 1e-12
OUT_PAD = 128         # lane-dense padded width of the logits output slab


# ---------------- in-kernel helpers -----------------------------------------
def _layer_norm(x, gamma, beta, eps=LN_EPS):
    mean = jnp.mean(x, axis=-1, keepdims=True)
    var = jnp.mean((x - mean) ** 2, axis=-1, keepdims=True)
    return (x - mean) * jax.lax.rsqrt(var + eps) * gamma + beta


def _gelu(x):
    # TODO(synk): BERT uses erf-based GELU; tanh approximation used here for a
    # guaranteed Mosaic lowering (EUP tanh).
    c = 0.7978845608028654  # sqrt(2/pi)
    return 0.5 * x * (1.0 + jnp.tanh(c * (x + 0.044715 * x * x * x)))


def _split_heads(t):
    # [S, H] -> [NUM_HEADS, S, HEAD_DIM] via aligned half-vreg lane slices.
    return jnp.concatenate(
        [t[None, :, h * HEAD_DIM:(h + 1) * HEAD_DIM] for h in range(NUM_HEADS)],
        axis=0)


def _merge_heads(t):
    # [NUM_HEADS, S, HEAD_DIM] -> [S, H]
    return jnp.concatenate([t[h] for h in range(NUM_HEADS)], axis=-1)


# ---------------- the fused forward kernel ----------------------------------
def fused_forward_kernel(x_ref, bias_ref,
                         eg_ref, eb_ref,
                         wqkv_ref, bqkv_ref, wo_ref, bo_ref, l1g_ref, l1b_ref,
                         wi_ref, bi_ref, wo2_ref, bo2_ref, l2g_ref, l2b_ref,
                         pw_ref, pb_ref, wcls_ref, wenc_ref, wemb_ref,
                         fcb_ref, o_ref):
    S = x_ref.shape[1]
    H = x_ref.shape[2]

    x0 = x_ref[0]                    # [S, H]  this grid step's batch element
    bias3 = bias_ref[...]            # [1, 1, S] additive key mask (hoisted)

    # --- bert.embeddings LayerNorm ------------------------------------------
    emb = _layer_norm(x0, eg_ref[...], eb_ref[...])            # [S, H]

    scale = 1.0 / (HEAD_DIM ** 0.5)
    x = emb
    # TODO(synk): at real BERT sizes cast matmul operands to bf16 (f32 accum)
    # for the v6e/v7x MXU and re-tile per layer against v7x's 64 MiB VMEM.
    for l in range(NUM_LAYERS):                                 # static unroll
        # fused QKV projection: a single [S,H] @ [H,3H] MXU pass
        qkv = jnp.dot(x, wqkv_ref[l],
                      preferred_element_type=jnp.float32) + bqkv_ref[l]
        q = qkv[:, 0:H]
        k = qkv[:, H:2 * H]
        v = qkv[:, 2 * H:3 * H]

        qh = _split_heads(q)           # [nh, S, hd]
        kh = _split_heads(k)
        vh = _split_heads(v)

        # both heads in one batched einsum; one softmax; one bias broadcast
        s = jnp.einsum('hqd,hkd->hqk', qh, kh,
                       preferred_element_type=jnp.float32) * scale
        s = s + bias3
        m = jnp.max(s, axis=-1, keepdims=True)
        p = jnp.exp(s - m)
        p = p * pl.reciprocal(jnp.sum(p, axis=-1, keepdims=True), approx=True)
        ctx = jnp.einsum('hqk,hkd->hqd', p, vh,
                         preferred_element_type=jnp.float32)    # [nh, S, hd]

        attn = jnp.dot(_merge_heads(ctx), wo_ref[l],
                       preferred_element_type=jnp.float32) + bo_ref[l]
        x1 = _layer_norm(x + attn, l1g_ref[l], l1b_ref[l])

        inter = _gelu(jnp.dot(x1, wi_ref[l],
                              preferred_element_type=jnp.float32) + bi_ref[l])
        ffn = jnp.dot(inter, wo2_ref[l],
                      preferred_element_type=jnp.float32) + bo2_ref[l]
        x = _layer_norm(x1 + ffn, l2g_ref[l], l2b_ref[l])

    encoded = x                                                 # [S, H]

    # --- pooler: tanh(W @ encoded[CLS] + b) ----------------------------------
    pooled = jnp.tanh(jnp.dot(encoded[0:1, :], pw_ref[...],
                              preferred_element_type=jnp.float32) + pb_ref[...])

    # --- fc_ext([cls ; encoded ; embed]) + sigmoid ---------------------------
    # The concat is folded into three per-chunk dot products; logits are laid
    # out along the lane axis (one per sequence position) and sliced to
    # [1:-1] outside the kernel.
    cls_term = jnp.sum(pooled * wcls_ref[...], axis=-1, keepdims=True)  # [1,1]
    enc_term = jnp.einsum('ch,sh->cs', wenc_ref[...], encoded,
                          preferred_element_type=jnp.float32)           # [1,S]
    emb_term = jnp.einsum('ch,sh->cs', wemb_ref[...], emb,
                          preferred_element_type=jnp.float32)           # [1,S]
    logit = enc_term + emb_term + cls_term + fcb_ref[0, 0]
    prob = pl.reciprocal(1.0 + jnp.exp(-logit), approx=True)     # sigmoid

    padded = jnp.concatenate(
        [prob, jnp.zeros((1, OUT_PAD - S), jnp.float32)], axis=-1)      # [1,128]
    o_ref[...] = padded[None]                                           # [1,1,128]


# ---------------- wrapper ----------------------------------------------------
def _resident_spec(arr):
    # Whole-array VMEM block; constant index_map -> stays resident across the
    # batch grid (no re-DMA per grid step).
    zeros = (0,) * arr.ndim
    return pl.BlockSpec(arr.shape, lambda b: zeros)


def bert_compressor_forward(params, inputs):
    B, S = inputs.shape
    H = HIDDEN

    # bert.embeddings lookup: word + position + token_type(=0) (plain-JAX glue)
    word = jnp.take(params['word_emb'], inputs, axis=0)            # [B,S,H]
    pos = params['pos_emb'][:S][None, :, :]
    tok = params['type_emb'][0][None, None, :]
    embed_sum = (word + pos + tok).astype(jnp.float32)
    # TODO(synk): dropout in embeddings/encoder omitted (inference semantics).

    # attention_mask = (inputs != 0); extended = (1 - mask) * -10000
    attn_mask = (inputs != 0).astype(jnp.float32)
    attn_bias = ((1.0 - attn_mask) * -10000.0)[:, None, :]          # [B,1,S]

    weights = (params['emb_ln_g'], params['emb_ln_b'],
               params['wqkv'], params['bqkv'], params['wo'], params['bo'],
               params['ln1_g'], params['ln1_b'],
               params['wi'], params['bi'], params['wo2'], params['bo2'],
               params['ln2_g'], params['ln2_b'],
               params['pool_w'], params['pool_b'],
               params['w_cls'], params['w_enc'], params['w_emb'])

    in_specs = (
        [pl.BlockSpec((1, S, H), lambda b: (b, 0, 0)),              # activations
         pl.BlockSpec((1, 1, S), lambda b: (b, 0, 0))]              # key mask
        + [_resident_spec(w) for w in weights]                      # weights
        + [pl.BlockSpec(memory_space=pltpu.MemorySpace.SMEM)]       # scalar bias
    )

    logits_pad = pl.pallas_call(
        fused_forward_kernel,
        out_shape=jax.ShapeDtypeStruct((B, 1, OUT_PAD), jnp.float32),
        grid=(B,),
        in_specs=in_specs,
        out_specs=pl.BlockSpec((1, 1, OUT_PAD), lambda b: (b, 0, 0)),
        compiler_params=pltpu.CompilerParams(
            dimension_semantics=("parallel",)),   # v7x: batch split across TCs
    )(embed_sum, attn_bias, *weights, params['fc_b'])

    return logits_pad[:, 0, 1:S - 1]                               # [B, S-2]


# ---------------- parameter init (deterministic, synthetic) ------------------
def init_params(key):
    keys = iter(jax.random.split(key, 128))

    def nrm(shape):
        return 0.02 * jax.random.normal(next(keys), shape, dtype=jnp.float32)

    def nrm_stack(shape):
        return jnp.stack([nrm(shape) for _ in range(NUM_LAYERS)], axis=0)

    params = {
        'word_emb': nrm((VOCAB, HIDDEN)),
        'pos_emb': nrm((MAX_POS, HIDDEN)),
        'type_emb': nrm((2, HIDDEN)),
        'emb_ln_g': jnp.ones((1, HIDDEN), jnp.float32),
        'emb_ln_b': jnp.zeros((1, HIDDEN), jnp.float32),
        # per-layer weights stacked on a leading layer axis (statically indexed
        # inside the kernel's unrolled layer loop)
        'wqkv': nrm_stack((HIDDEN, 3 * HIDDEN)),
        'bqkv': jnp.zeros((NUM_LAYERS, 1, 3 * HIDDEN), jnp.float32),
        'wo': nrm_stack((HIDDEN, HIDDEN)),
        'bo': jnp.zeros((NUM_LAYERS, 1, HIDDEN), jnp.float32),
        'ln1_g': jnp.ones((NUM_LAYERS, 1, HIDDEN), jnp.float32),
        'ln1_b': jnp.zeros((NUM_LAYERS, 1, HIDDEN), jnp.float32),
        'wi': nrm_stack((HIDDEN, INTERMEDIATE)),
        'bi': jnp.zeros((NUM_LAYERS, 1, INTERMEDIATE), jnp.float32),
        'wo2': nrm_stack((INTERMEDIATE, HIDDEN)),
        'bo2': jnp.zeros((NUM_LAYERS, 1, HIDDEN), jnp.float32),
        'ln2_g': jnp.ones((NUM_LAYERS, 1, HIDDEN), jnp.float32),
        'ln2_b': jnp.zeros((NUM_LAYERS, 1, HIDDEN), jnp.float32),
        'pool_w': nrm((HIDDEN, HIDDEN)),
        'pool_b': jnp.zeros((1, HIDDEN), jnp.float32),
        'w_cls': nrm((1, HIDDEN)),
        'w_enc': nrm((1, HIDDEN)),
        'w_emb': nrm((1, HIDDEN)),
        'fc_b': jnp.zeros((1, 1), jnp.float32),
    }
    return params


# ---------------- main --------------------------------------------------------
if __name__ == "__main__":
    key = jax.random.PRNGKey(0)
    pkey, ikey = jax.random.split(key)
    params = init_params(pkey)

    B, S = 2, 8
    inputs = jax.random.randint(ikey, (B, S), 1, VOCAB, dtype=jnp.int32)
    inputs = inputs.at[1, 6:].set(0)      # padding tokens exercise the mask

    logits = bert_compressor_forward(params, inputs)
    logits = jax.block_until_ready(logits)
    assert logits.shape == (B, S - 2)
    assert bool(jnp.all(jnp.isfinite(logits)))
    print("KERNEL_OK")
</pallas_src>

<mosaic_0001>
module attributes {stable_mosaic.version = 11 : i64} {
  func.func @fused_forward_kernel(%arg0: i32, %arg1: memref<1x8x128xf32, #tpu.memory_space<vmem>>, %arg2: memref<1x1x8xf32, #tpu.memory_space<vmem>>, %arg3: memref<1x128xf32, #tpu.memory_space<vmem>>, %arg4: memref<1x128xf32, #tpu.memory_space<vmem>>, %arg5: memref<2x128x384xf32, #tpu.memory_space<vmem>>, %arg6: memref<2x1x384xf32, #tpu.memory_space<vmem>>, %arg7: memref<2x128x128xf32, #tpu.memory_space<vmem>>, %arg8: memref<2x1x128xf32, #tpu.memory_space<vmem>>, %arg9: memref<2x1x128xf32, #tpu.memory_space<vmem>>, %arg10: memref<2x1x128xf32, #tpu.memory_space<vmem>>, %arg11: memref<2x128x128xf32, #tpu.memory_space<vmem>>, %arg12: memref<2x1x128xf32, #tpu.memory_space<vmem>>, %arg13: memref<2x128x128xf32, #tpu.memory_space<vmem>>, %arg14: memref<2x1x128xf32, #tpu.memory_space<vmem>>, %arg15: memref<2x1x128xf32, #tpu.memory_space<vmem>>, %arg16: memref<2x1x128xf32, #tpu.memory_space<vmem>>, %arg17: memref<128x128xf32, #tpu.memory_space<vmem>>, %arg18: memref<1x128xf32, #tpu.memory_space<vmem>>, %arg19: memref<1x128xf32, #tpu.memory_space<vmem>>, %arg20: memref<1x128xf32, #tpu.memory_space<vmem>>, %arg21: memref<1x128xf32, #tpu.memory_space<vmem>>, %arg22: memref<1x1xf32, #tpu.memory_space<smem>>, %arg23: memref<1x1x128xf32, #tpu.memory_space<vmem>>) attributes {dimension_semantics = [#tpu.dimension_semantics<parallel>], iteration_bounds = array<i64: 2>, scalar_prefetch = 0 : i64, scratch_operands = 0 : i64, tpu.core_type = #tpu.core_type<tc>, window_params = [{transform_indices = @transform_0, window_bounds = array<i64: 1, 8, 128>}, {transform_indices = @transform_1, window_bounds = array<i64: 1, 1, 8>}, {pipeline_mode = #tpu.pipeline_mode<synchronous>, transform_indices = @transform_2, window_bounds = array<i64: 1, 128>}, {pipeline_mode = #tpu.pipeline_mode<synchronous>, transform_indices = @transform_3, window_bounds = array<i64: 1, 128>}, {pipeline_mode = #tpu.pipeline_mode<synchronous>, transform_indices = @transform_4, window_bounds = array<i64: 2, 128, 384>}, {pipeline_mode = #tpu.pipeline_mode<synchronous>, transform_indices = @transform_5, window_bounds = array<i64: 2, 1, 384>}, {pipeline_mode = #tpu.pipeline_mode<synchronous>, transform_indices = @transform_6, window_bounds = array<i64: 2, 128, 128>}, {pipeline_mode = #tpu.pipeline_mode<synchronous>, transform_indices = @transform_7, window_bounds = array<i64: 2, 1, 128>}, {pipeline_mode = #tpu.pipeline_mode<synchronous>, transform_indices = @transform_8, window_bounds = array<i64: 2, 1, 128>}, {pipeline_mode = #tpu.pipeline_mode<synchronous>, transform_indices = @transform_9, window_bounds = array<i64: 2, 1, 128>}, {pipeline_mode = #tpu.pipeline_mode<synchronous>, transform_indices = @transform_10, window_bounds = array<i64: 2, 128, 128>}, {pipeline_mode = #tpu.pipeline_mode<synchronous>, transform_indices = @transform_11, window_bounds = array<i64: 2, 1, 128>}, {pipeline_mode = #tpu.pipeline_mode<synchronous>, transform_indices = @transform_12, window_bounds = array<i64: 2, 128, 128>}, {pipeline_mode = #tpu.pipeline_mode<synchronous>, transform_indices = @transform_13, window_bounds = array<i64: 2, 1, 128>}, {pipeline_mode = #tpu.pipeline_mode<synchronous>, transform_indices = @transform_14, window_bounds = array<i64: 2, 1, 128>}, {pipeline_mode = #tpu.pipeline_mode<synchronous>, transform_indices = @transform_15, window_bounds = array<i64: 2, 1, 128>}, {pipeline_mode = #tpu.pipeline_mode<synchronous>, transform_indices = @transform_16, window_bounds = array<i64: 128, 128>}, {pipeline_mode = #tpu.pipeline_mode<synchronous>, transform_indices = @transform_17, window_bounds = array<i64: 1, 128>}, {pipeline_mode = #tpu.pipeline_mode<synchronous>, transform_indices = @transform_18, window_bounds = array<i64: 1, 128>}, {pipeline_mode = #tpu.pipeline_mode<synchronous>, transform_indices = @transform_19, window_bounds = array<i64: 1, 128>}, {pipeline_mode = #tpu.pipeline_mode<synchronous>, transform_indices = @transform_20, window_bounds = array<i64: 1, 128>}, {transform_indices = @transform_21, window_bounds = array<i64: 1, 1>}, {transform_indices = @transform_22, window_bounds = array<i64: 1, 1, 128>}]} {
    %c0 = arith.constant 0 : index
    %c0_0 = arith.constant 0 : index
    %c0_1 = arith.constant 0 : index
    %0 = vector.load %arg1[%c0, %c0_0, %c0_1] : memref<1x8x128xf32, #tpu.memory_space<vmem>>, vector<1x8x128xf32>
    %1 = vector.shape_cast %0 : vector<1x8x128xf32> to vector<8x128xf32>
    %c0_2 = arith.constant 0 : index
    %c0_3 = arith.constant 0 : index
    %c0_4 = arith.constant 0 : index
    %2 = vector.load %arg2[%c0_2, %c0_3, %c0_4] : memref<1x1x8xf32, #tpu.memory_space<vmem>>, vector<1x1x8xf32>
    %c0_5 = arith.constant 0 : index
    %c0_6 = arith.constant 0 : index
    %3 = vector.load %arg3[%c0_5, %c0_6] : memref<1x128xf32, #tpu.memory_space<vmem>>, vector<1x128xf32>
    %c0_7 = arith.constant 0 : index
    %c0_8 = arith.constant 0 : index
    %4 = vector.load %arg4[%c0_7, %c0_8] : memref<1x128xf32, #tpu.memory_space<vmem>>, vector<1x128xf32>
    %cst = arith.constant dense<0.000000e+00> : vector<8xf32>
    %5 = vector.multi_reduction <add>, %1, %cst [1] : vector<8x128xf32> to vector<8xf32>
    %6 = vector.shape_cast %5 : vector<8xf32> to vector<8x1xf32>
    %cst_9 = arith.constant 1.280000e+02 : f32
    %7 = vector.broadcast %cst_9 : f32 to vector<8x1xf32>
    %8 = arith.divf %6, %7 : vector<8x1xf32>
    %9 = vector.broadcast %8 : vector<8x1xf32> to vector<8x128xf32>
    %10 = arith.subf %1, %9 : vector<8x128xf32>
    %11 = arith.mulf %10, %10 : vector<8x128xf32>
    %cst_10 = arith.constant dense<0.000000e+00> : vector<8xf32>
    %12 = vector.multi_reduction <add>, %11, %cst_10 [1] : vector<8x128xf32> to vector<8xf32>
    %13 = vector.shape_cast %12 : vector<8xf32> to vector<8x1xf32>
    %cst_11 = arith.constant 1.280000e+02 : f32
    %14 = vector.broadcast %cst_11 : f32 to vector<8x1xf32>
    %15 = arith.divf %13, %14 : vector<8x1xf32>
    %16 = vector.broadcast %8 : vector<8x1xf32> to vector<8x128xf32>
    %17 = arith.subf %1, %16 : vector<8x128xf32>
    %cst_12 = arith.constant 9.99999996E-13 : f32
    %18 = vector.broadcast %cst_12 : f32 to vector<8x1xf32>
    %19 = arith.addf %15, %18 : vector<8x1xf32>
    %20 = math.rsqrt %19 : vector<8x1xf32>
    %21 = vector.broadcast %20 : vector<8x1xf32> to vector<8x128xf32>
    %22 = arith.mulf %17, %21 : vector<8x128xf32>
    %23 = vector.broadcast %3 : vector<1x128xf32> to vector<8x128xf32>
    %24 = arith.mulf %22, %23 : vector<8x128xf32>
    %25 = vector.broadcast %4 : vector<1x128xf32> to vector<8x128xf32>
    %26 = arith.addf %24, %25 : vector<8x128xf32>
    %c0_13 = arith.constant 0 : index
    %c0_14 = arith.constant 0 : index
    %c0_15 = arith.constant 0 : index
    %27 = vector.load %arg5[%c0_13, %c0_14, %c0_15] : memref<2x128x384xf32, #tpu.memory_space<vmem>>, vector<1x128x384xf32>
    %28 = vector.shape_cast %27 : vector<1x128x384xf32> to vector<128x384xf32>
    %cst_16 = arith.constant dense<0.000000e+00> : vector<8x384xf32>
    %29 = tpu.matmul %26, %28, %cst_16 {dimension_numbers = #tpu.dot_dimension_numbers<[1], [0], [0], [1], [0, 0, 1, 1], [], []>} : vector<8x128xf32>, vector<128x384xf32>, vector<8x384xf32> -> vector<8x384xf32>
    %c0_17 = arith.constant 0 : index
    %c0_18 = arith.constant 0 : index
    %c0_19 = arith.constant 0 : index
    %30 = vector.load %arg6[%c0_17, %c0_18, %c0_19] : memref<2x1x384xf32, #tpu.memory_space<vmem>>, vector<1x1x384xf32>
    %31 = vector.shape_cast %30 : vector<1x1x384xf32> to vector<1x384xf32>
    %32 = vector.broadcast %31 : vector<1x384xf32> to vector<8x384xf32>
    %33 = arith.addf %29, %32 : vector<8x384xf32>
    %34 = vector.extract_strided_slice %33 {offsets = [0, 0], sizes = [8, 128], strides = [1, 1]} : vector<8x384xf32> to vector<8x128xf32>
    %35 = vector.extract_strided_slice %33 {offsets = [0, 128], sizes = [8, 128], strides = [1, 1]} : vector<8x384xf32> to vector<8x128xf32>
    %36 = vector.extract_strided_slice %33 {offsets = [0, 256], sizes = [8, 128], strides = [1, 1]} : vector<8x384xf32> to vector<8x128xf32>
    %37 = vector.extract_strided_slice %34 {offsets = [0, 0], sizes = [8, 64], strides = [1, 1]} : vector<8x128xf32> to vector<8x64xf32>
    %38 = vector.shape_cast %37 : vector<8x64xf32> to vector<1x8x64xf32>
    %39 = vector.extract_strided_slice %34 {offsets = [0, 64], sizes = [8, 64], strides = [1, 1]} : vector<8x128xf32> to vector<8x64xf32>
    %40 = vector.shape_cast %39 : vector<8x64xf32> to vector<1x8x64xf32>
    %41 = tpu.concatenate %38, %40 in 0 : vector<1x8x64xf32>, vector<1x8x64xf32> -> vector<2x8x64xf32>
    %42 = vector.extract_strided_slice %35 {offsets = [0, 0], sizes = [8, 64], strides = [1, 1]} : vector<8x128xf32> to vector<8x64xf32>
    %43 = vector.shape_cast %42 : vector<8x64xf32> to vector<1x8x64xf32>
    %44 = vector.extract_strided_slice %35 {offsets = [0, 64], sizes = [8, 64], strides = [1, 1]} : vector<8x128xf32> to vector<8x64xf32>
    %45 = vector.shape_cast %44 : vector<8x64xf32> to vector<1x8x64xf32>
    %46 = tpu.concatenate %43, %45 in 0 : vector<1x8x64xf32>, vector<1x8x64xf32> -> vector<2x8x64xf32>
    %47 = vector.extract_strided_slice %36 {offsets = [0, 0], sizes = [8, 64], strides = [1, 1]} : vector<8x128xf32> to vector<8x64xf32>
    %48 = vector.shape_cast %47 : vector<8x64xf32> to vector<1x8x64xf32>
    %49 = vector.extract_strided_slice %36 {offsets = [0, 64], sizes = [8, 64], strides = [1, 1]} : vector<8x128xf32> to vector<8x64xf32>
    %50 = vector.shape_cast %49 : vector<8x64xf32> to vector<1x8x64xf32>
    %51 = tpu.concatenate %48, %50 in 0 : vector<1x8x64xf32>, vector<1x8x64xf32> -> vector<2x8x64xf32>
    "tpu.trace_start"() <{level = 10 : i32, message = "hqd,hkd->hqk"}> : () -> ()
    %cst_20 = arith.constant dense<0.000000e+00> : vector<2x8x8xf32>
    %52 = tpu.matmul %41, %46, %cst_20 {dimension_numbers = #tpu.dot_dimension_numbers<[2], [2], [1], [1], [0, 0, 0, 1, 1, 1], [0], [0]>} : vector<2x8x64xf32>, vector<2x8x64xf32>, vector<2x8x8xf32> -> vector<2x8x8xf32>
    "tpu.trace_stop"() : () -> ()
    %cst_21 = arith.constant 1.250000e-01 : f32
    %53 = vector.broadcast %cst_21 : f32 to vector<2x8x8xf32>
    %54 = arith.mulf %52, %53 : vector<2x8x8xf32>
    %55 = vector.broadcast %2 : vector<1x1x8xf32> to vector<2x8x8xf32>
    %56 = arith.addf %54, %55 : vector<2x8x8xf32>
    %cst_22 = arith.constant dense<0xFF800000> : vector<2x8xf32>
    %57 = vector.multi_reduction <maximumf>, %56, %cst_22 [2] : vector<2x8x8xf32> to vector<2x8xf32>
    %58 = vector.shape_cast %57 : vector<2x8xf32> to vector<2x8x1xf32>
    %59 = vector.broadcast %58 : vector<2x8x1xf32> to vector<2x8x8xf32>
    %60 = arith.subf %56, %59 : vector<2x8x8xf32>
    %61 = math.exp %60 : vector<2x8x8xf32>
    %cst_23 = arith.constant dense<0.000000e+00> : vector<2x8xf32>
    %62 = vector.multi_reduction <add>, %61, %cst_23 [2] : vector<2x8x8xf32> to vector<2x8xf32>
    %63 = vector.shape_cast %62 : vector<2x8xf32> to vector<2x8x1xf32>
    %64 = tpu.reciprocal %63 {approx = true} : vector<2x8x1xf32> -> vector<2x8x1xf32>
    %65 = vector.broadcast %64 : vector<2x8x1xf32> to vector<2x8x8xf32>
    %66 = arith.mulf %61, %65 : vector<2x8x8xf32>
    "tpu.trace_start"() <{level = 10 : i32, message = "hqk,hkd->hqd"}> : () -> ()
    %cst_24 = arith.constant dense<0.000000e+00> : vector<2x8x64xf32>
    %67 = tpu.matmul %66, %51, %cst_24 {dimension_numbers = #tpu.dot_dimension_numbers<[2], [1], [1], [2], [0, 0, 0, 1, 1, 2], [0], [0]>} : vector<2x8x8xf32>, vector<2x8x64xf32>, vector<2x8x64xf32> -> vector<2x8x64xf32>
    "tpu.trace_stop"() : () -> ()
    %68 = vector.extract_strided_slice %67 {offsets = [0, 0, 0], sizes = [1, 8, 64], strides = [1, 1, 1]} : vector<2x8x64xf32> to vector<1x8x64xf32>
    %69 = vector.shape_cast %68 : vector<1x8x64xf32> to vector<8x64xf32>
    %70 = vector.extract_strided_slice %67 {offsets = [1, 0, 0], sizes = [1, 8, 64], strides = [1, 1, 1]} : vector<2x8x64xf32> to vector<1x8x64xf32>
    %71 = vector.shape_cast %70 : vector<1x8x64xf32> to vector<8x64xf32>
    %72 = tpu.concatenate %69, %71 in 1 : vector<8x64xf32>, vector<8x64xf32> -> vector<8x128xf32>
    %c0_25 = arith.constant 0 : index
    %c0_26 = arith.constant 0 : index
    %c0_27 = arith.constant 0 : index
    %73 = vector.load %arg7[%c0_25, %c0_26, %c0_27] : memref<2x128x128xf32, #tpu.memory_space<vmem>>, vector<1x128x128xf32>
    %74 = vector.shape_cast %73 : vector<1x128x128xf32> to vector<128x128xf32>
    %cst_28 = arith.constant dense<0.000000e+00> : vector<8x128xf32>
    %75 = tpu.matmul %72, %74, %cst_28 {dimension_numbers = #tpu.dot_dimension_numbers<[1], [0], [0], [1], [0, 0, 1, 1], [], []>} : vector<8x128xf32>, vector<128x128xf32>, vector<8x128xf32> -> vector<8x128xf32>
    %c0_29 = arith.constant 0 : index
    %c0_30 = arith.constant 0 : index
    %c0_31 = arith.constant 0 : index
    %76 = vector.load %arg8[%c0_29, %c0_30, %c0_31] : memref<2x1x128xf32, #tpu.memory_space<vmem>>, vector<1x1x128xf32>
    %77 = vector.shape_cast %76 : vector<1x1x128xf32> to vector<1x128xf32>
    %78 = vector.broadcast %77 : vector<1x128xf32> to vector<8x128xf32>
    %79 = arith.addf %75, %78 : vector<8x128xf32>
    %80 = arith.addf %26, %79 : vector<8x128xf32>
    %c0_32 = arith.constant 0 : index
    %c0_33 = arith.constant 0 : index
    %c0_34 = arith.constant 0 : index
    %81 = vector.load %arg9[%c0_32, %c0_33, %c0_34] : memref<2x1x128xf32, #tpu.memory_space<vmem>>, vector<1x1x128xf32>
    %82 = vector.shape_cast %81 : vector<1x1x128xf32> to vector<1x128xf32>
    %c0_35 = arith.constant 0 : index
    %c0_36 = arith.constant 0 : index
    %c0_37 = arith.constant 0 : index
    %83 = vector.load %arg10[%c0_35, %c0_36, %c0_37] : memref<2x1x128xf32, #tpu.memory_space<vmem>>, vector<1x1x128xf32>
    %84 = vector.shape_cast %83 : vector<1x1x128xf32> to vector<1x128xf32>
    %cst_38 = arith.constant dense<0.000000e+00> : vector<8xf32>
    %85 = vector.multi_reduction <add>, %80, %cst_38 [1] : vector<8x128xf32> to vector<8xf32>
    %86 = vector.shape_cast %85 : vector<8xf32> to vector<8x1xf32>
    %cst_39 = arith.constant 1.280000e+02 : f32
    %87 = vector.broadcast %cst_39 : f32 to vector<8x1xf32>
    %88 = arith.divf %86, %87 : vector<8x1xf32>
    %89 = vector.broadcast %88 : vector<8x1xf32> to vector<8x128xf32>
    %90 = arith.subf %80, %89 : vector<8x128xf32>
    %91 = arith.mulf %90, %90 : vector<8x128xf32>
    %cst_40 = arith.constant dense<0.000000e+00> : vector<8xf32>
    %92 = vector.multi_reduction <add>, %91, %cst_40 [1] : vector<8x128xf32> to vector<8xf32>
    %93 = vector.shape_cast %92 : vector<8xf32> to vector<8x1xf32>
    %cst_41 = arith.constant 1.280000e+02 : f32
    %94 = vector.broadcast %cst_41 : f32 to vector<8x1xf32>
    %95 = arith.divf %93, %94 : vector<8x1xf32>
    %96 = vector.broadcast %88 : vector<8x1xf32> to vector<8x128xf32>
    %97 = arith.subf %80, %96 : vector<8x128xf32>
    %cst_42 = arith.constant 9.99999996E-13 : f32
    %98 = vector.broadcast %cst_42 : f32 to vector<8x1xf32>
    %99 = arith.addf %95, %98 : vector<8x1xf32>
    %100 = math.rsqrt %99 : vector<8x1xf32>
    %101 = vector.broadcast %100 : vector<8x1xf32> to vector<8x128xf32>
    %102 = arith.mulf %97, %101 : vector<8x128xf32>
    %103 = vector.broadcast %82 : vector<1x128xf32> to vector<8x128xf32>
    %104 = arith.mulf %102, %103 : vector<8x128xf32>
    %105 = vector.broadcast %84 : vector<1x128xf32> to vector<8x128xf32>
    %106 = arith.addf %104, %105 : vector<8x128xf32>
    %c0_43 = arith.constant 0 : index
    %c0_44 = arith.constant 0 : index
    %c0_45 = arith.constant 0 : index
    %107 = vector.load %arg11[%c0_43, %c0_44, %c0_45] : memref<2x128x128xf32, #tpu.memory_space<vmem>>, vector<1x128x128xf32>
    %108 = vector.shape_cast %107 : vector<1x128x128xf32> to vector<128x128xf32>
    %cst_46 = arith.constant dense<0.000000e+00> : vector<8x128xf32>
    %109 = tpu.matmul %106, %108, %cst_46 {dimension_numbers = #tpu.dot_dimension_numbers<[1], [0], [0], [1], [0, 0, 1, 1], [], []>} : vector<8x128xf32>, vector<128x128xf32>, vector<8x128xf32> -> vector<8x128xf32>
    %c0_47 = arith.constant 0 : index
    %c0_48 = arith.constant 0 : index
    %c0_49 = arith.constant 0 : index
    %110 = vector.load %arg12[%c0_47, %c0_48, %c0_49] : memref<2x1x128xf32, #tpu.memory_space<vmem>>, vector<1x1x128xf32>
    %111 = vector.shape_cast %110 : vector<1x1x128xf32> to vector<1x128xf32>
    %112 = vector.broadcast %111 : vector<1x128xf32> to vector<8x128xf32>
    %113 = arith.addf %109, %112 : vector<8x128xf32>
    %cst_50 = arith.constant 5.000000e-01 : f32
    %114 = vector.broadcast %cst_50 : f32 to vector<8x128xf32>
    %115 = arith.mulf %114, %113 : vector<8x128xf32>
    %cst_51 = arith.constant 4.471500e-02 : f32
    %116 = vector.broadcast %cst_51 : f32 to vector<8x128xf32>
    %117 = arith.mulf %116, %113 : vector<8x128xf32>
    %118 = arith.mulf %117, %113 : vector<8x128xf32>
    %119 = arith.mulf %118, %113 : vector<8x128xf32>
    %120 = arith.addf %113, %119 : vector<8x128xf32>
    %cst_52 = arith.constant 0.797884583 : f32
    %121 = vector.broadcast %cst_52 : f32 to vector<8x128xf32>
    %122 = arith.mulf %121, %120 : vector<8x128xf32>
    %123 = math.tanh %122 : vector<8x128xf32>
    %cst_53 = arith.constant 1.000000e+00 : f32
    %124 = vector.broadcast %cst_53 : f32 to vector<8x128xf32>
    %125 = arith.addf %124, %123 : vector<8x128xf32>
    %126 = arith.mulf %115, %125 : vector<8x128xf32>
    %c0_54 = arith.constant 0 : index
    %c0_55 = arith.constant 0 : index
    %c0_56 = arith.constant 0 : index
    %127 = vector.load %arg13[%c0_54, %c0_55, %c0_56] : memref<2x128x128xf32, #tpu.memory_space<vmem>>, vector<1x128x128xf32>
    %128 = vector.shape_cast %127 : vector<1x128x128xf32> to vector<128x128xf32>
    %cst_57 = arith.constant dense<0.000000e+00> : vector<8x128xf32>
    %129 = tpu.matmul %126, %128, %cst_57 {dimension_numbers = #tpu.dot_dimension_numbers<[1], [0], [0], [1], [0, 0, 1, 1], [], []>} : vector<8x128xf32>, vector<128x128xf32>, vector<8x128xf32> -> vector<8x128xf32>
    %c0_58 = arith.constant 0 : index
    %c0_59 = arith.constant 0 : index
    %c0_60 = arith.constant 0 : index
    %130 = vector.load %arg14[%c0_58, %c0_59, %c0_60] : memref<2x1x128xf32, #tpu.memory_space<vmem>>, vector<1x1x128xf32>
    %131 = vector.shape_cast %130 : vector<1x1x128xf32> to vector<1x128xf32>
    %132 = vector.broadcast %131 : vector<1x128xf32> to vector<8x128xf32>
    %133 = arith.addf %129, %132 : vector<8x128xf32>
    %134 = arith.addf %106, %133 : vector<8x128xf32>
    %c0_61 = arith.constant 0 : index
    %c0_62 = arith.constant 0 : index
    %c0_63 = arith.constant 0 : index
    %135 = vector.load %arg15[%c0_61, %c0_62, %c0_63] : memref<2x1x128xf32, #tpu.memory_space<vmem>>, vector<1x1x128xf32>
    %136 = vector.shape_cast %135 : vector<1x1x128xf32> to vector<1x128xf32>
    %c0_64 = arith.constant 0 : index
    %c0_65 = arith.constant 0 : index
    %c0_66 = arith.constant 0 : index
    %137 = vector.load %arg16[%c0_64, %c0_65, %c0_66] : memref<2x1x128xf32, #tpu.memory_space<vmem>>, vector<1x1x128xf32>
    %138 = vector.shape_cast %137 : vector<1x1x128xf32> to vector<1x128xf32>
    %cst_67 = arith.constant dense<0.000000e+00> : vector<8xf32>
    %139 = vector.multi_reduction <add>, %134, %cst_67 [1] : vector<8x128xf32> to vector<8xf32>
    %140 = vector.shape_cast %139 : vector<8xf32> to vector<8x1xf32>
    %cst_68 = arith.constant 1.280000e+02 : f32
    %141 = vector.broadcast %cst_68 : f32 to vector<8x1xf32>
    %142 = arith.divf %140, %141 : vector<8x1xf32>
    %143 = vector.broadcast %142 : vector<8x1xf32> to vector<8x128xf32>
    %144 = arith.subf %134, %143 : vector<8x128xf32>
    %145 = arith.mulf %144, %144 : vector<8x128xf32>
    %cst_69 = arith.constant dense<0.000000e+00> : vector<8xf32>
    %146 = vector.multi_reduction <add>, %145, %cst_69 [1] : vector<8x128xf32> to vector<8xf32>
    %147 = vector.shape_cast %146 : vector<8xf32> to vector<8x1xf32>
    %cst_70 = arith.constant 1.280000e+02 : f32
    %148 = vector.broadcast %cst_70 : f32 to vector<8x1xf32>
    %149 = arith.divf %147, %148 : vector<8x1xf32>
    %150 = vector.broadcast %142 : vector<8x1xf32> to vector<8x128xf32>
    %151 = arith.subf %134, %150 : vector<8x128xf32>
    %cst_71 = arith.constant 9.99999996E-13 : f32
    %152 = vector.broadcast %cst_71 : f32 to vector<8x1xf32>
    %153 = arith.addf %149, %152 : vector<8x1xf32>
    %154 = math.rsqrt %153 : vector<8x1xf32>
    %155 = vector.broadcast %154 : vector<8x1xf32> to vector<8x128xf32>
    %156 = arith.mulf %151, %155 : vector<8x128xf32>
    %157 = vector.broadcast %136 : vector<1x128xf32> to vector<8x128xf32>
    %158 = arith.mulf %156, %157 : vector<8x128xf32>
    %159 = vector.broadcast %138 : vector<1x128xf32> to vector<8x128xf32>
    %160 = arith.addf %158, %159 : vector<8x128xf32>
    %c1 = arith.constant 1 : index
    %c0_72 = arith.constant 0 : index
    %c0_73 = arith.constant 0 : index
    %161 = vector.load %arg5[%c1, %c0_72, %c0_73] : memref<2x128x384xf32, #tpu.memory_space<vmem>>, vector<1x128x384xf32>
    %162 = vector.shape_cast %161 : vector<1x128x384xf32> to vector<128x384xf32>
    %cst_74 = arith.constant dense<0.000000e+00> : vector<8x384xf32>
    %163 = tpu.matmul %160, %162, %cst_74 {dimension_numbers = #tpu.dot_dimension_numbers<[1], [0], [0], [1], [0, 0, 1, 1], [], []>} : vector<8x128xf32>, vector<128x384xf32>, vector<8x384xf32> -> vector<8x384xf32>
    %c1_75 = arith.constant 1 : index
    %c0_76 = arith.constant 0 : index
    %c0_77 = arith.constant 0 : index
    %164 = vector.load %arg6[%c1_75, %c0_76, %c0_77] : memref<2x1x384xf32, #tpu.memory_space<vmem>>, vector<1x1x384xf32>
    %165 = vector.shape_cast %164 : vector<1x1x384xf32> to vector<1x384xf32>
    %166 = vector.broadcast %165 : vector<1x384xf32> to vector<8x384xf32>
    %167 = arith.addf %163, %166 : vector<8x384xf32>
    %168 = vector.extract_strided_slice %167 {offsets = [0, 0], sizes = [8, 128], strides = [1, 1]} : vector<8x384xf32> to vector<8x128xf32>
    %169 = vector.extract_strided_slice %167 {offsets = [0, 128], sizes = [8, 128], strides = [1, 1]} : vector<8x384xf32> to vector<8x128xf32>
    %170 = vector.extract_strided_slice %167 {offsets = [0, 256], sizes = [8, 128], strides = [1, 1]} : vector<8x384xf32> to vector<8x128xf32>
    %171 = vector.extract_strided_slice %168 {offsets = [0, 0], sizes = [8, 64], strides = [1, 1]} : vector<8x128xf32> to vector<8x64xf32>
    %172 = vector.shape_cast %171 : vector<8x64xf32> to vector<1x8x64xf32>
    %173 = vector.extract_strided_slice %168 {offsets = [0, 64], sizes = [8, 64], strides = [1, 1]} : vector<8x128xf32> to vector<8x64xf32>
    %174 = vector.shape_cast %173 : vector<8x64xf32> to vector<1x8x64xf32>
    %175 = tpu.concatenate %172, %174 in 0 : vector<1x8x64xf32>, vector<1x8x64xf32> -> vector<2x8x64xf32>
    %176 = vector.extract_strided_slice %169 {offsets = [0, 0], sizes = [8, 64], strides = [1, 1]} : vector<8x128xf32> to vector<8x64xf32>
    %177 = vector.shape_cast %176 : vector<8x64xf32> to vector<1x8x64xf32>
    %178 = vector.extract_strided_slice %169 {offsets = [0, 64], sizes = [8, 64], strides = [1, 1]} : vector<8x128xf32> to vector<8x64xf32>
    %179 = vector.shape_cast %178 : vector<8x64xf32> to vector<1x8x64xf32>
    %180 = tpu.concatenate %177, %179 in 0 : vector<1x8x64xf32>, vector<1x8x64xf32> -> vector<2x8x64xf32>
    %181 = vector.extract_strided_slice %170 {offsets = [0, 0], sizes = [8, 64], strides = [1, 1]} : vector<8x128xf32> to vector<8x64xf32>
    %182 = vector.shape_cast %181 : vector<8x64xf32> to vector<1x8x64xf32>
    %183 = vector.extract_strided_slice %170 {offsets = [0, 64], sizes = [8, 64], strides = [1, 1]} : vector<8x128xf32> to vector<8x64xf32>
    %184 = vector.shape_cast %183 : vector<8x64xf32> to vector<1x8x64xf32>
    %185 = tpu.concatenate %182, %184 in 0 : vector<1x8x64xf32>, vector<1x8x64xf32> -> vector<2x8x64xf32>
    "tpu.trace_start"() <{level = 10 : i32, message = "hqd,hkd->hqk"}> : () -> ()
    %cst_78 = arith.constant dense<0.000000e+00> : vector<2x8x8xf32>
    %186 = tpu.matmul %175, %180, %cst_78 {dimension_numbers = #tpu.dot_dimension_numbers<[2], [2], [1], [1], [0, 0, 0, 1, 1, 1], [0], [0]>} : vector<2x8x64xf32>, vector<2x8x64xf32>, vector<2x8x8xf32> -> vector<2x8x8xf32>
    "tpu.trace_stop"() : () -> ()
    %cst_79 = arith.constant 1.250000e-01 : f32
    %187 = vector.broadcast %cst_79 : f32 to vector<2x8x8xf32>
    %188 = arith.mulf %186, %187 : vector<2x8x8xf32>
    %189 = vector.broadcast %2 : vector<1x1x8xf32> to vector<2x8x8xf32>
    %190 = arith.addf %188, %189 : vector<2x8x8xf32>
    %cst_80 = arith.constant dense<0xFF800000> : vector<2x8xf32>
    %191 = vector.multi_reduction <maximumf>, %190, %cst_80 [2] : vector<2x8x8xf32> to vector<2x8xf32>
    %192 = vector.shape_cast %191 : vector<2x8xf32> to vector<2x8x1xf32>
    %193 = vector.broadcast %192 : vector<2x8x1xf32> to vector<2x8x8xf32>
    %194 = arith.subf %190, %193 : vector<2x8x8xf32>
    %195 = math.exp %194 : vector<2x8x8xf32>
    %cst_81 = arith.constant dense<0.000000e+00> : vector<2x8xf32>
    %196 = vector.multi_reduction <add>, %195, %cst_81 [2] : vector<2x8x8xf32> to vector<2x8xf32>
    %197 = vector.shape_cast %196 : vector<2x8xf32> to vector<2x8x1xf32>
    %198 = tpu.reciprocal %197 {approx = true} : vector<2x8x1xf32> -> vector<2x8x1xf32>
    %199 = vector.broadcast %198 : vector<2x8x1xf32> to vector<2x8x8xf32>
    %200 = arith.mulf %195, %199 : vector<2x8x8xf32>
    "tpu.trace_start"() <{level = 10 : i32, message = "hqk,hkd->hqd"}> : () -> ()
    %cst_82 = arith.constant dense<0.000000e+00> : vector<2x8x64xf32>
    %201 = tpu.matmul %200, %185, %cst_82 {dimension_numbers = #tpu.dot_dimension_numbers<[2], [1], [1], [2], [0, 0, 0, 1, 1, 2], [0], [0]>} : vector<2x8x8xf32>, vector<2x8x64xf32>, vector<2x8x64xf32> -> vector<2x8x64xf32>
    "tpu.trace_stop"() : () -> ()
    %202 = vector.extract_strided_slice %201 {offsets = [0, 0, 0], sizes = [1, 8, 64], strides = [1, 1, 1]} : vector<2x8x64xf32> to vector<1x8x64xf32>
    %203 = vector.shape_cast %202 : vector<1x8x64xf32> to vector<8x64xf32>
    %204 = vector.extract_strided_slice %201 {offsets = [1, 0, 0], sizes = [1, 8, 64], strides = [1, 1, 1]} : vector<2x8x64xf32> to vector<1x8x64xf32>
    %205 = vector.shape_cast %204 : vector<1x8x64xf32> to vector<8x64xf32>
    %206 = tpu.concatenate %203, %205 in 1 : vector<8x64xf32>, vector<8x64xf32> -> vector<8x128xf32>
    %c1_83 = arith.constant 1 : index
    %c0_84 = arith.constant 0 : index
    %c0_85 = arith.constant 0 : index
    %207 = vector.load %arg7[%c1_83, %c0_84, %c0_85] : memref<2x128x128xf32, #tpu.memory_space<vmem>>, vector<1x128x128xf32>
    %208 = vector.shape_cast %207 : vector<1x128x128xf32> to vector<128x128xf32>
    %cst_86 = arith.constant dense<0.000000e+00> : vector<8x128xf32>
    %209 = tpu.matmul %206, %208, %cst_86 {dimension_numbers = #tpu.dot_dimension_numbers<[1], [0], [0], [1], [0, 0, 1, 1], [], []>} : vector<8x128xf32>, vector<128x128xf32>, vector<8x128xf32> -> vector<8x128xf32>
    %c1_87 = arith.constant 1 : index
    %c0_88 = arith.constant 0 : index
    %c0_89 = arith.constant 0 : index
    %210 = vector.load %arg8[%c1_87, %c0_88, %c0_89] : memref<2x1x128xf32, #tpu.memory_space<vmem>>, vector<1x1x128xf32>
    %211 = vector.shape_cast %210 : vector<1x1x128xf32> to vector<1x128xf32>
    %212 = vector.broadcast %211 : vector<1x128xf32> to vector<8x128xf32>
    %213 = arith.addf %209, %212 : vector<8x128xf32>
    %214 = arith.addf %160, %213 : vector<8x128xf32>
    %c1_90 = arith.constant 1 : index
    %c0_91 = arith.constant 0 : index
    %c0_92 = arith.constant 0 : index
    %215 = vector.load %arg9[%c1_90, %c0_91, %c0_92] : memref<2x1x128xf32, #tpu.memory_space<vmem>>, vector<1x1x128xf32>
    %216 = vector.shape_cast %215 : vector<1x1x128xf32> to vector<1x128xf32>
    %c1_93 = arith.constant 1 : index
    %c0_94 = arith.constant 0 : index
    %c0_95 = arith.constant 0 : index
    %217 = vector.load %arg10[%c1_93, %c0_94, %c0_95] : memref<2x1x128xf32, #tpu.memory_space<vmem>>, vector<1x1x128xf32>
    %218 = vector.shape_cast %217 : vector<1x1x128xf32> to vector<1x128xf32>
    %cst_96 = arith.constant dense<0.000000e+00> : vector<8xf32>
    %219 = vector.multi_reduction <add>, %214, %cst_96 [1] : vector<8x128xf32> to vector<8xf32>
    %220 = vector.shape_cast %219 : vector<8xf32> to vector<8x1xf32>
    %cst_97 = arith.constant 1.280000e+02 : f32
    %221 = vector.broadcast %cst_97 : f32 to vector<8x1xf32>
    %222 = arith.divf %220, %221 : vector<8x1xf32>
    %223 = vector.broadcast %222 : vector<8x1xf32> to vector<8x128xf32>
    %224 = arith.subf %214, %223 : vector<8x128xf32>
    %225 = arith.mulf %224, %224 : vector<8x128xf32>
    %cst_98 = arith.constant dense<0.000000e+00> : vector<8xf32>
    %226 = vector.multi_reduction <add>, %225, %cst_98 [1] : vector<8x128xf32> to vector<8xf32>
    %227 = vector.shape_cast %226 : vector<8xf32> to vector<8x1xf32>
    %cst_99 = arith.constant 1.280000e+02 : f32
    %228 = vector.broadcast %cst_99 : f32 to vector<8x1xf32>
    %229 = arith.divf %227, %228 : vector<8x1xf32>
    %230 = vector.broadcast %222 : vector<8x1xf32> to vector<8x128xf32>
    %231 = arith.subf %214, %230 : vector<8x128xf32>
    %cst_100 = arith.constant 9.99999996E-13 : f32
    %232 = vector.broadcast %cst_100 : f32 to vector<8x1xf32>
    %233 = arith.addf %229, %232 : vector<8x1xf32>
    %234 = math.rsqrt %233 : vector<8x1xf32>
    %235 = vector.broadcast %234 : vector<8x1xf32> to vector<8x128xf32>
    %236 = arith.mulf %231, %235 : vector<8x128xf32>
    %237 = vector.broadcast %216 : vector<1x128xf32> to vector<8x128xf32>
    %238 = arith.mulf %236, %237 : vector<8x128xf32>
    %239 = vector.broadcast %218 : vector<1x128xf32> to vector<8x128xf32>
    %240 = arith.addf %238, %239 : vector<8x128xf32>
    %c1_101 = arith.constant 1 : index
    %c0_102 = arith.constant 0 : index
    %c0_103 = arith.constant 0 : index
    %241 = vector.load %arg11[%c1_101, %c0_102, %c0_103] : memref<2x128x128xf32, #tpu.memory_space<vmem>>, vector<1x128x128xf32>
    %242 = vector.shape_cast %241 : vector<1x128x128xf32> to vector<128x128xf32>
    %cst_104 = arith.constant dense<0.000000e+00> : vector<8x128xf32>
    %243 = tpu.matmul %240, %242, %cst_104 {dimension_numbers = #tpu.dot_dimension_numbers<[1], [0], [0], [1], [0, 0, 1, 1], [], []>} : vector<8x128xf32>, vector<128x128xf32>, vector<8x128xf32> -> vector<8x128xf32>
    %c1_105 = arith.constant 1 : index
    %c0_106 = arith.constant 0 : index
    %c0_107 = arith.constant 0 : index
    %244 = vector.load %arg12[%c1_105, %c0_106, %c0_107] : memref<2x1x128xf32, #tpu.memory_space<vmem>>, vector<1x1x128xf32>
    %245 = vector.shape_cast %244 : vector<1x1x128xf32> to vector<1x128xf32>
    %246 = vector.broadcast %245 : vector<1x128xf32> to vector<8x128xf32>
    %247 = arith.addf %243, %246 : vector<8x128xf32>
    %cst_108 = arith.constant 5.000000e-01 : f32
    %248 = vector.broadcast %cst_108 : f32 to vector<8x128xf32>
    %249 = arith.mulf %248, %247 : vector<8x128xf32>
    %cst_109 = arith.constant 4.471500e-02 : f32
    %250 = vector.broadcast %cst_109 : f32 to vector<8x128xf32>
    %251 = arith.mulf %250, %247 : vector<8x128xf32>
    %252 = arith.mulf %251, %247 : vector<8x128xf32>
    %253 = arith.mulf %252, %247 : vector<8x128xf32>
    %254 = arith.addf %247, %253 : vector<8x128xf32>
    %cst_110 = arith.constant 0.797884583 : f32
    %255 = vector.broadcast %cst_110 : f32 to vector<8x128xf32>
    %256 = arith.mulf %255, %254 : vector<8x128xf32>
    %257 = math.tanh %256 : vector<8x128xf32>
    %cst_111 = arith.constant 1.000000e+00 : f32
    %258 = vector.broadcast %cst_111 : f32 to vector<8x128xf32>
    %259 = arith.addf %258, %257 : vector<8x128xf32>
    %260 = arith.mulf %249, %259 : vector<8x128xf32>
    %c1_112 = arith.constant 1 : index
    %c0_113 = arith.constant 0 : index
    %c0_114 = arith.constant 0 : index
    %261 = vector.load %arg13[%c1_112, %c0_113, %c0_114] : memref<2x128x128xf32, #tpu.memory_space<vmem>>, vector<1x128x128xf32>
    %262 = vector.shape_cast %261 : vector<1x128x128xf32> to vector<128x128xf32>
    %cst_115 = arith.constant dense<0.000000e+00> : vector<8x128xf32>
    %263 = tpu.matmul %260, %262, %cst_115 {dimension_numbers = #tpu.dot_dimension_numbers<[1], [0], [0], [1], [0, 0, 1, 1], [], []>} : vector<8x128xf32>, vector<128x128xf32>, vector<8x128xf32> -> vector<8x128xf32>
    %c1_116 = arith.constant 1 : index
    %c0_117 = arith.constant 0 : index
    %c0_118 = arith.constant 0 : index
    %264 = vector.load %arg14[%c1_116, %c0_117, %c0_118] : memref<2x1x128xf32, #tpu.memory_space<vmem>>, vector<1x1x128xf32>
    %265 = vector.shape_cast %264 : vector<1x1x128xf32> to vector<1x128xf32>
    %266 = vector.broadcast %265 : vector<1x128xf32> to vector<8x128xf32>
    %267 = arith.addf %263, %266 : vector<8x128xf32>
    %268 = arith.addf %240, %267 : vector<8x128xf32>
    %c1_119 = arith.constant 1 : index
    %c0_120 = arith.constant 0 : index
    %c0_121 = arith.constant 0 : index
    %269 = vector.load %arg15[%c1_119, %c0_120, %c0_121] : memref<2x1x128xf32, #tpu.memory_space<vmem>>, vector<1x1x128xf32>
    %270 = vector.shape_cast %269 : vector<1x1x128xf32> to vector<1x128xf32>
    %c1_122 = arith.constant 1 : index
    %c0_123 = arith.constant 0 : index
    %c0_124 = arith.constant 0 : index
    %271 = vector.load %arg16[%c1_122, %c0_123, %c0_124] : memref<2x1x128xf32, #tpu.memory_space<vmem>>, vector<1x1x128xf32>
    %272 = vector.shape_cast %271 : vector<1x1x128xf32> to vector<1x128xf32>
    %cst_125 = arith.constant dense<0.000000e+00> : vector<8xf32>
    %273 = vector.multi_reduction <add>, %268, %cst_125 [1] : vector<8x128xf32> to vector<8xf32>
    %274 = vector.shape_cast %273 : vector<8xf32> to vector<8x1xf32>
    %cst_126 = arith.constant 1.280000e+02 : f32
    %275 = vector.broadcast %cst_126 : f32 to vector<8x1xf32>
    %276 = arith.divf %274, %275 : vector<8x1xf32>
    %277 = vector.broadcast %276 : vector<8x1xf32> to vector<8x128xf32>
    %278 = arith.subf %268, %277 : vector<8x128xf32>
    %279 = arith.mulf %278, %278 : vector<8x128xf32>
    %cst_127 = arith.constant dense<0.000000e+00> : vector<8xf32>
    %280 = vector.multi_reduction <add>, %279, %cst_127 [1] : vector<8x128xf32> to vector<8xf32>
    %281 = vector.shape_cast %280 : vector<8xf32> to vector<8x1xf32>
    %cst_128 = arith.constant 1.280000e+02 : f32
    %282 = vector.broadcast %cst_128 : f32 to vector<8x1xf32>
    %283 = arith.divf %281, %282 : vector<8x1xf32>
    %284 = vector.broadcast %276 : vector<8x1xf32> to vector<8x128xf32>
    %285 = arith.subf %268, %284 : vector<8x128xf32>
    %cst_129 = arith.constant 9.99999996E-13 : f32
    %286 = vector.broadcast %cst_129 : f32 to vector<8x1xf32>
    %287 = arith.addf %283, %286 : vector<8x1xf32>
    %288 = math.rsqrt %287 : vector<8x1xf32>
    %289 = vector.broadcast %288 : vector<8x1xf32> to vector<8x128xf32>
    %290 = arith.mulf %285, %289 : vector<8x128xf32>
    %291 = vector.broadcast %270 : vector<1x128xf32> to vector<8x128xf32>
    %292 = arith.mulf %290, %291 : vector<8x128xf32>
    %293 = vector.broadcast %272 : vector<1x128xf32> to vector<8x128xf32>
    %294 = arith.addf %292, %293 : vector<8x128xf32>
    %295 = vector.extract_strided_slice %294 {offsets = [0, 0], sizes = [1, 128], strides = [1, 1]} : vector<8x128xf32> to vector<1x128xf32>
    %c0_130 = arith.constant 0 : index
    %c0_131 = arith.constant 0 : index
    %296 = vector.load %arg17[%c0_130, %c0_131] : memref<128x128xf32, #tpu.memory_space<vmem>>, vector<128x128xf32>
    %cst_132 = arith.constant dense<0.000000e+00> : vector<1x128xf32>
    %297 = tpu.matmul %295, %296, %cst_132 {dimension_numbers = #tpu.dot_dimension_numbers<[1], [0], [0], [1], [0, 0, 1, 1], [], []>} : vector<1x128xf32>, vector<128x128xf32>, vector<1x128xf32> -> vector<1x128xf32>
    %c0_133 = arith.constant 0 : index
    %c0_134 = arith.constant 0 : index
    %298 = vector.load %arg18[%c0_133, %c0_134] : memref<1x128xf32, #tpu.memory_space<vmem>>, vector<1x128xf32>
    %299 = arith.addf %297, %298 : vector<1x128xf32>
    %300 = math.tanh %299 : vector<1x128xf32>
    %c0_135 = arith.constant 0 : index
    %c0_136 = arith.constant 0 : index
    %301 = vector.load %arg19[%c0_135, %c0_136] : memref<1x128xf32, #tpu.memory_space<vmem>>, vector<1x128xf32>
    %302 = arith.mulf %300, %301 : vector<1x128xf32>
    %cst_137 = arith.constant dense<0.000000e+00> : vector<1xf32>
    %303 = vector.multi_reduction <add>, %302, %cst_137 [1] : vector<1x128xf32> to vector<1xf32>
    %304 = vector.shape_cast %303 : vector<1xf32> to vector<1x1xf32>
    %c0_138 = arith.constant 0 : index
    %c0_139 = arith.constant 0 : index
    %305 = vector.load %arg20[%c0_138, %c0_139] : memref<1x128xf32, #tpu.memory_space<vmem>>, vector<1x128xf32>
    "tpu.trace_start"() <{level = 10 : i32, message = "ch,sh->cs"}> : () -> ()
    %cst_140 = arith.constant dense<0.000000e+00> : vector<1x8xf32>
    %306 = tpu.matmul %305, %294, %cst_140 {dimension_numbers = #tpu.dot_dimension_numbers<[1], [1], [0], [0], [0, 0, 1, 0], [], []>} : vector<1x128xf32>, vector<8x128xf32>, vector<1x8xf32> -> vector<1x8xf32>
    "tpu.trace_stop"() : () -> ()
    %c0_141 = arith.constant 0 : index
    %c0_142 = arith.constant 0 : index
    %307 = vector.load %arg21[%c0_141, %c0_142] : memref<1x128xf32, #tpu.memory_space<vmem>>, vector<1x128xf32>
    "tpu.trace_start"() <{level = 10 : i32, message = "ch,sh->cs"}> : () -> ()
    %cst_143 = arith.constant dense<0.000000e+00> : vector<1x8xf32>
    %308 = tpu.matmul %307, %26, %cst_143 {dimension_numbers = #tpu.dot_dimension_numbers<[1], [1], [0], [0], [0, 0, 1, 0], [], []>} : vector<1x128xf32>, vector<8x128xf32>, vector<1x8xf32> -> vector<1x8xf32>
    "tpu.trace_stop"() : () -> ()
    %309 = arith.addf %306, %308 : vector<1x8xf32>
    %310 = vector.broadcast %304 : vector<1x1xf32> to vector<1x8xf32>
    %311 = arith.addf %309, %310 : vector<1x8xf32>
    %c0_144 = arith.constant 0 : index
    %c0_145 = arith.constant 0 : index
    %312 = memref.load %arg22[%c0_144, %c0_145] : memref<1x1xf32, #tpu.memory_space<smem>>
    %313 = vector.broadcast %312 : f32 to vector<1x8xf32>
    %314 = arith.addf %311, %313 : vector<1x8xf32>
    %cst_146 = arith.constant 0.000000e+00 : f32
    %315 = vector.broadcast %cst_146 : f32 to vector<1x8xf32>
    %316 = arith.subf %315, %314 : vector<1x8xf32>
    %317 = math.exp %316 : vector<1x8xf32>
    %cst_147 = arith.constant 1.000000e+00 : f32
    %318 = vector.broadcast %cst_147 : f32 to vector<1x8xf32>
    %319 = arith.addf %318, %317 : vector<1x8xf32>
    %320 = tpu.reciprocal %319 {approx = true} : vector<1x8xf32> -> vector<1x8xf32>
    %cst_148 = arith.constant 0.000000e+00 : f32
    %321 = vector.broadcast %cst_148 : f32 to vector<1x120xf32>
    %322 = tpu.concatenate %320, %321 in 1 : vector<1x8xf32>, vector<1x120xf32> -> vector<1x128xf32>
    %323 = vector.shape_cast %322 : vector<1x128xf32> to vector<1x1x128xf32>
    %c0_149 = arith.constant 0 : index
    %c0_150 = arith.constant 0 : index
    %c0_151 = arith.constant 0 : index
    %324 = vector.load %arg23[%c0_149, %c0_150, %c0_151] : memref<1x1x128xf32, #tpu.memory_space<vmem>>, vector<1x1x128xf32>
    tpu.vector_store %arg23[%c0_149, %c0_150, %c0_151], %323 {strides = array<i32>} : memref<1x1x128xf32, #tpu.memory_space<vmem>>, vector<1x1x128xf32>,
    return
  }
  func.func @transform_0(%arg0: i32) -> (i32, i32, i32) {
    %c0_i32 = arith.constant 0 : i32
    %c0_i32_0 = arith.constant 0 : i32
    %c0_i32_1 = arith.constant 0 : i32
    return %arg0, %c0_i32, %c0_i32_0 : i32, i32, i32
  }
  func.func @transform_1(%arg0: i32) -> (i32, i32, i32) {
    %c0_i32 = arith.constant 0 : i32
    %c0_i32_0 = arith.constant 0 : i32
    %c0_i32_1 = arith.constant 0 : i32
    return %arg0, %c0_i32, %c0_i32_0 : i32, i32, i32
  }
  func.func @transform_2(%arg0: i32) -> (i32, i32) {
    %c0_i32 = arith.constant 0 : i32
    %c0_i32_0 = arith.constant 0 : i32
    %c0_i32_1 = arith.constant 0 : i32
    return %c0_i32, %c0_i32_0 : i32, i32
  }
  func.func @transform_3(%arg0: i32) -> (i32, i32) {
    %c0_i32 = arith.constant 0 : i32
    %c0_i32_0 = arith.constant 0 : i32
    %c0_i32_1 = arith.constant 0 : i32
    return %c0_i32, %c0_i32_0 : i32, i32
  }
  func.func @transform_4(%arg0: i32) -> (i32, i32, i32) {
    %c0_i32 = arith.constant 0 : i32
    %c0_i32_0 = arith.constant 0 : i32
    %c0_i32_1 = arith.constant 0 : i32
    %c0_i32_2 = arith.constant 0 : i32
    return %c0_i32, %c0_i32_0, %c0_i32_1 : i32, i32, i32
  }
  func.func @transform_5(%arg0: i32) -> (i32, i32, i32) {
    %c0_i32 = arith.constant 0 : i32
    %c0_i32_0 = arith.constant 0 : i32
    %c0_i32_1 = arith.constant 0 : i32
    %c0_i32_2 = arith.constant 0 : i32
    return %c0_i32, %c0_i32_0, %c0_i32_1 : i32, i32, i32
  }
  func.func @transform_6(%arg0: i32) -> (i32, i32, i32) {
    %c0_i32 = arith.constant 0 : i32
    %c0_i32_0 = arith.constant 0 : i32
    %c0_i32_1 = arith.constant 0 : i32
    %c0_i32_2 = arith.constant 0 : i32
    return %c0_i32, %c0_i32_0, %c0_i32_1 : i32, i32, i32
  }
  func.func @transform_7(%arg0: i32) -> (i32, i32, i32) {
    %c0_i32 = arith.constant 0 : i32
    %c0_i32_0 = arith.constant 0 : i32
    %c0_i32_1 = arith.constant 0 : i32
    %c0_i32_2 = arith.constant 0 : i32
    return %c0_i32, %c0_i32_0, %c0_i32_1 : i32, i32, i32
  }
  func.func @transform_8(%arg0: i32) -> (i32, i32, i32) {
    %c0_i32 = arith.constant 0 : i32
    %c0_i32_0 = arith.constant 0 : i32
    %c0_i32_1 = arith.constant 0 : i32
    %c0_i32_2 = arith.constant 0 : i32
    return %c0_i32, %c0_i32_0, %c0_i32_1 : i32, i32, i32
  }
  func.func @transform_9(%arg0: i32) -> (i32, i32, i32) {
    %c0_i32 = arith.constant 0 : i32
    %c0_i32_0 = arith.constant 0 : i32
    %c0_i32_1 = arith.constant 0 : i32
    %c0_i32_2 = arith.constant 0 : i32
    return %c0_i32, %c0_i32_0, %c0_i32_1 : i32, i32, i32
  }
  func.func @transform_10(%arg0: i32) -> (i32, i32, i32) {
    %c0_i32 = arith.constant 0 : i32
    %c0_i32_0 = arith.constant 0 : i32
    %c0_i32_1 = arith.constant 0 : i32
    %c0_i32_2 = arith.constant 0 : i32
    return %c0_i32, %c0_i32_0, %c0_i32_1 : i32, i32, i32
  }
  func.func @transform_11(%arg0: i32) -> (i32, i32, i32) {
    %c0_i32 = arith.constant 0 : i32
    %c0_i32_0 = arith.constant 0 : i32
    %c0_i32_1 = arith.constant 0 : i32
    %c0_i32_2 = arith.constant 0 : i32
    return %c0_i32, %c0_i32_0, %c0_i32_1 : i32, i32, i32
  }
  func.func @transform_12(%arg0: i32) -> (i32, i32, i32) {
    %c0_i32 = arith.constant 0 : i32
    %c0_i32_0 = arith.constant 0 : i32
    %c0_i32_1 = arith.constant 0 : i32
    %c0_i32_2 = arith.constant 0 : i32
    return %c0_i32, %c0_i32_0, %c0_i32_1 : i32, i32, i32
  }
  func.func @transform_13(%arg0: i32) -> (i32, i32, i32) {
    %c0_i32 = arith.constant 0 : i32
    %c0_i32_0 = arith.constant 0 : i32
    %c0_i32_1 = arith.constant 0 : i32
    %c0_i32_2 = arith.constant 0 : i32
    return %c0_i32, %c0_i32_0, %c0_i32_1 : i32, i32, i32
  }
  func.func @transform_14(%arg0: i32) -> (i32, i32, i32) {
    %c0_i32 = arith.constant 0 : i32
    %c0_i32_0 = arith.constant 0 : i32
    %c0_i32_1 = arith.constant 0 : i32
    %c0_i32_2 = arith.constant 0 : i32
    return %c0_i32, %c0_i32_0, %c0_i32_1 : i32, i32, i32
  }
  func.func @transform_15(%arg0: i32) -> (i32, i32, i32) {
    %c0_i32 = arith.constant 0 : i32
    %c0_i32_0 = arith.constant 0 : i32
    %c0_i32_1 = arith.constant 0 : i32
    %c0_i32_2 = arith.constant 0 : i32
    return %c0_i32, %c0_i32_0, %c0_i32_1 : i32, i32, i32
  }
  func.func @transform_16(%arg0: i32) -> (i32, i32) {
    %c0_i32 = arith.constant 0 : i32
    %c0_i32_0 = arith.constant 0 : i32
    %c0_i32_1 = arith.constant 0 : i32
    return %c0_i32, %c0_i32_0 : i32, i32
  }
  func.func @transform_17(%arg0: i32) -> (i32, i32) {
    %c0_i32 = arith.constant 0 : i32
    %c0_i32_0 = arith.constant 0 : i32
    %c0_i32_1 = arith.constant 0 : i32
    return %c0_i32, %c0_i32_0 : i32, i32
  }
  func.func @transform_18(%arg0: i32) -> (i32, i32) {
    %c0_i32 = arith.constant 0 : i32
    %c0_i32_0 = arith.constant 0 : i32
    %c0_i32_1 = arith.constant 0 : i32
    return %c0_i32, %c0_i32_0 : i32, i32
  }
  func.func @transform_19(%arg0: i32) -> (i32, i32) {
    %c0_i32 = arith.constant 0 : i32
    %c0_i32_0 = arith.constant 0 : i32
    %c0_i32_1 = arith.constant 0 : i32
    return %c0_i32, %c0_i32_0 : i32, i32
  }
  func.func @transform_20(%arg0: i32) -> (i32, i32) {
    %c0_i32 = arith.constant 0 : i32
    %c0_i32_0 = arith.constant 0 : i32
    %c0_i32_1 = arith.constant 0 : i32
    return %c0_i32, %c0_i32_0 : i32, i32
  }
  func.func @transform_21(%arg0: i32) -> (i32, i32) {
    %c0_i32 = arith.constant 0 : i32
    %c0_i32_0 = arith.constant 0 : i32
    %c0_i32_1 = arith.constant 0 : i32
    return %c0_i32, %c0_i32_0 : i32, i32
  }
  func.func @transform_22(%arg0: i32) -> (i32, i32, i32) {
    %c0_i32 = arith.constant 0 : i32
    %c0_i32_0 = arith.constant 0 : i32
    %c0_i32_1 = arith.constant 0 : i32
    return %arg0, %c0_i32, %c0_i32_0 : i32, i32, i32
  }
}

</mosaic_0001>

<llo_original>
// kernel: tpu_custom_call.1
$region0: #{tpu_custom_call.1}
  #allocation0 [shape = 'u32[]', space=smem, size = 0x4, offset = 0x4, fixed_abs, tag = 'smem constant byte address 0x4 - core index']
  #allocation1 [shape = 'u32[144,128]{1,0:T(1,128)}', space=vmem, size = 0x12000, scoped, tag = 'internal scratch']
  #allocation2 [shape = 'f32[1,1]{1,0:T(1,128)S(6)}', space=smem, size = 0x200, scoped, tag = 'scoped memory for tpu_custom_call.1']
  %s0 = inlined_call_operand.hbm [shape: f32[2,8,128], index: 0, kind: input, shape index: {}]
  %s1 = inlined_call_operand.vmem [shape: f32[2,1,8], index: 1, kind: input, shape index: {}]
  %s2 = inlined_call_operand.hbm [shape: f32[1,128], index: 2, kind: input, shape index: {}]
  %s3 = inlined_call_operand.hbm [shape: f32[1,128], index: 3, kind: input, shape index: {}]
  %s4 = inlined_call_operand.hbm [shape: f32[2,128,384], index: 4, kind: input, shape index: {}]
  %s5 = inlined_call_operand.vmem [shape: f32[2,1,384], index: 5, kind: input, shape index: {}]
  %s6 = inlined_call_operand.hbm [shape: f32[2,128,128], index: 6, kind: input, shape index: {}]
  %s7 = inlined_call_operand.vmem [shape: f32[2,1,128], index: 7, kind: input, shape index: {}]
  %s8 = inlined_call_operand.vmem [shape: f32[2,1,128], index: 8, kind: input, shape index: {}]
  %s9 = inlined_call_operand.vmem [shape: f32[2,1,128], index: 9, kind: input, shape index: {}]
  %s10 = inlined_call_operand.hbm [shape: f32[2,128,128], index: 10, kind: input, shape index: {}]
  %s11 = inlined_call_operand.vmem [shape: f32[2,1,128], index: 11, kind: input, shape index: {}]
  %s12 = inlined_call_operand.hbm [shape: f32[2,128,128], index: 12, kind: input, shape index: {}]
  %s13 = inlined_call_operand.vmem [shape: f32[2,1,128], index: 13, kind: input, shape index: {}]
  %s14 = inlined_call_operand.vmem [shape: f32[2,1,128], index: 14, kind: input, shape index: {}]
  %s15 = inlined_call_operand.vmem [shape: f32[2,1,128], index: 15, kind: input, shape index: {}]
  %s16 = inlined_call_operand.hbm [shape: f32[128,128], index: 16, kind: input, shape index: {}]
  %s17 = inlined_call_operand.vmem [shape: f32[1,128], index: 17, kind: input, shape index: {}]
  %s18 = inlined_call_operand.vmem [shape: f32[1,128], index: 18, kind: input, shape index: {}]
  %s19 = inlined_call_operand.vmem [shape: f32[1,128], index: 19, kind: input, shape index: {}]
  %s20 = inlined_call_operand.vmem [shape: f32[1,128], index: 20, kind: input, shape index: {}]
  %s21 = inlined_call_operand.<no memory space> [shape: f32[1,1], index: 21, kind: input, shape index: {}]
  %s22 = inlined_call_operand.hbm [shape: f32[2,1,128], index: 22, kind: output, shape index: {}]
  %s23 = sld [smem:[#allocation0]]
  $region153: #{tpu_custom_call.1} parent=0
    _
  %s25 = ssub.s32 1, %s23
  %s26 = scalar_select 0, %s25, %s23
  %27 = sst [smem:[#allocation2]] %s21
  $region1: #{tpu_custom_call.1} parent=0
    #allocation3 [shape = 'u8[8192]{0}', space=vmem, size = 0x2000, scoped, tag = 'input window, operand 0']
    #allocation4 [shape = 's32[2]{0}', space=sflag, size = 0x8, scoped, tag = 'scoped memory for tpu_custom_call.1']
    #allocation5 [shape = 's32[2]{0}', space=sflag, size = 0x8, scoped, tag = 'scoped memory for tpu_custom_call.1']
    #allocation6 [shape = 'u8[512]{0}', space=vmem, size = 0x400, scoped, tag = 'input window, operand 2, single buffered']
    #allocation7 [shape = 's32[1]{0}', space=sflag, size = 0x4, scoped, tag = 'scoped memory for tpu_custom_call.1']
    #allocation8 [shape = 'u8[512]{0}', space=vmem, size = 0x400, scoped, tag = 'input window, operand 3, single buffered']
    #allocation9 [shape = 'u8[393216]{0}', space=vmem, size = 0x60000, scoped, tag = 'input window, operand 4, single buffered']
    #allocation10 [shape = 's32[1]{0}', space=sflag, size = 0x4, scoped, tag = 'scoped memory for tpu_custom_call.1']
    #allocation11 [shape = 'u8[131072]{0}', space=vmem, size = 0x20000, scoped, tag = 'input window, operand 6, single buffered']
    #allocation12 [shape = 'u8[131072]{0}', space=vmem, size = 0x20000, scoped, tag = 'input window, operand 10, single buffered']
    #allocation13 [shape = 's32[1]{0}', space=sflag, size = 0x4, scoped, tag = 'scoped memory for tpu_custom_call.1']
    #allocation14 [shape = 'u8[131072]{0}', space=vmem, size = 0x20000, scoped, tag = 'input window, operand 12, single buffered']
    #allocation15 [shape = 'u8[65536]{0}', space=vmem, size = 0x10000, scoped, tag = 'input window, operand 16, single buffered']
    #allocation16 [shape = 's32[1]{0}', space=sflag, size = 0x4, scoped, tag = 'scoped memory for tpu_custom_call.1']
    #allocation17 [shape = 'u8[1024]{0}', space=vmem, size = 0x400, scoped, tag = 'output window, operand 0']
    %28 = vsyncpa [#allocation4], 0
    %s29 = scalar_lea.sflag [#allocation4], 1
    %30 = vsyncpa %s29, 0
    %31 = vsyncpa [#allocation7], 0
    %32 = vsyncpa [#allocation10], 0
    %33 = vsyncpa [#allocation13], 0
    %34 = vsyncpa [#allocation16], 0
    %35 = vsyncpa [#allocation5], 0
    %s36 = scalar_lea.sflag [#allocation5], 1
    %37 = vsyncpa %s36, 0
    loop: start=0, step=1, limit=4
    $region2: #{tpu_custom_call.1} parent=1 // loop_pre_header
      _
    $region3: #{tpu_custom_call.1} parent=1 // loop_header
      %s39 = sphi 0, %s43
      %p40 = scmp.ge.s32.totalorder %s39, 4
      %s49 = sphi 0, %s51
      %s52 = sphi 0, %s49
      %s53 = sphi 0, %s52
      %s69 = sphi 0, %s53
      %s75 = sphi 0, %s77
      %s78 = sphi 0, %s75
      %s79 = sphi 0, %s78
      %s95 = sphi 0, %s79
      %s99 = sphi 0, %s99
      %s101 = sphi 0, %s99
      %s102 = sphi 0, %s101
      %s116 = sphi 0, %s102
      %s120 = sphi 0, %s120
      %s122 = sphi 0, %s120
      %s123 = sphi 0, %s122
      %s137 = sphi 0, %s123
      %s141 = sphi 0, %s141
      %s143 = sphi 0, %s141
      %s144 = sphi 0, %s143
      %s158 = sphi 0, %s144
      %s162 = sphi 0, %s162
      %s164 = sphi 0, %s162
      %s165 = sphi 0, %s164
      %s179 = sphi 0, %s165
      %s183 = sphi 0, %s183
      %s185 = sphi 0, %s183
      %s186 = sphi 0, %s185
      %s200 = sphi 0, %s186
      %s204 = sphi 0, %s204
      %s206 = sphi 0, %s204
      %s207 = sphi 0, %s206
      %s221 = sphi 0, %s207
      %s225 = sphi 0, %s225
      %s227 = sphi 0, %s225
      %s228 = sphi 0, %s227
      %s242 = sphi 0, %s228
      %s246 = sphi 0, %s246
      %s248 = sphi 0, %s246
      %s249 = sphi 0, %s248
      %s263 = sphi 0, %s249
      %s267 = sphi 0, %s267
      %s269 = sphi 0, %s267
      %s270 = sphi 0, %s269
      %s284 = sphi 0, %s270
      %s288 = sphi 0, %s288
      %s290 = sphi 0, %s288
      %s291 = sphi 0, %s290
      %s305 = sphi 0, %s291
      %s309 = sphi 0, %s309
      %s311 = sphi 0, %s309
      %s312 = sphi 0, %s311
      %s326 = sphi 0, %s312
      %s330 = sphi 0, %s330
      %s332 = sphi 0, %s330
      %s333 = sphi 0, %s332
      %s347 = sphi 0, %s333
      %s351 = sphi 0, %s351
      %s353 = sphi 0, %s351
      %s354 = sphi 0, %s353
      %s368 = sphi 0, %s354
      %s372 = sphi 0, %s372
      %s374 = sphi 0, %s372
      %s375 = sphi 0, %s374
      %s389 = sphi 0, %s375
      %s393 = sphi 0, %s393
      %s395 = sphi 0, %s393
      %s396 = sphi 0, %s395
      %s410 = sphi 0, %s396
      %s414 = sphi 0, %s414
      %s416 = sphi 0, %s414
      %s417 = sphi 0, %s416
      %s431 = sphi 0, %s417
      %s435 = sphi 0, %s435
      %s437 = sphi 0, %s435
      %s438 = sphi 0, %s437
      %s452 = sphi 0, %s438
      %s456 = sphi 0, %s456
      %s458 = sphi 0, %s456
      %s459 = sphi 0, %s458
      %s473 = sphi 0, %s459
      %s477 = sphi 0, %s477
      %s479 = sphi 0, %s477
      %s480 = sphi 0, %s479
      %s494 = sphi 0, %s480
      %s498 = sphi 0, %s498
      %s500 = sphi 0, %s498
      %s501 = sphi 0, %s500
      %s515 = sphi 0, %s501
      %s521 = sphi 0, %s523
      %s524 = sphi 0, %s521
      %s525 = sphi 0, %s524
      %s541 = sphi 0, %s525
    $region4: #{tpu_custom_call.1} parent=1 // loop_header_branch
      %42 = sbr.rel (%p40) target = $region8
    $region5: #{tpu_custom_call.1} parent=1 // loop_body
      %s44 = ssub.s32 %s39, 1
      %s45 = ssub.s32 %s39, 2
      %s46 = sadd.s32 %s39, 1
      %s47 = ssub.s32 %s39, %s46
      %p48 = scmp.eq.s32.totalorder %s47, 0
      %s50 = sadd.s32 %s49, 1
      %s51 = scalar_select %p48, %s49, %s50
      %p54 = pneg %p48
      %p55 = scmp.eq.s32.totalorder %s39, 1
      %p56 = por %p54, %p55
      %p57 = scmp.ne.s32.totalorder %s49, %s52
      %p58 = scmp.eq.s32.totalorder %s39, 0
      %p59 = por %p57, %p58
      %p60 = scmp.ne.s32.totalorder %s49, %s52
      %p61 = scmp.eq.s32.totalorder %s44, 1
      %p62 = por %p60, %p61
      %p63 = scmp.ne.s32.totalorder %s52, %s53
      %p64 = scmp.eq.s32.totalorder %s44, 0
      %p65 = por %p63, %p64
      %p66 = scmp.ne.s32.totalorder %s52, %s53
      %p67 = scmp.eq.s32.totalorder %s45, 1
      %p68 = por %p66, %p67
      %p70 = scmp.ne.s32.totalorder %s53, %s69
      %p71 = scmp.eq.s32.totalorder %s45, 0
      %p72 = por %p70, %p71
      %s73 = ssub.s32 %s39, %s46
      %p74 = scmp.eq.s32.totalorder %s73, 0
      %s76 = sadd.s32 %s75, 1
      %s77 = scalar_select %p74, %s75, %s76
      %p80 = pneg %p74
      %p81 = scmp.eq.s32.totalorder %s39, 1
      %p82 = por %p80, %p81
      %p83 = scmp.ne.s32.totalorder %s75, %s78
      %p84 = scmp.eq.s32.totalorder %s39, 0
      %p85 = por %p83, %p84
      %p86 = scmp.ne.s32.totalorder %s75, %s78
      %p87 = scmp.eq.s32.totalorder %s44, 1
      %p88 = por %p86, %p87
      %p89 = scmp.ne.s32.totalorder %s78, %s79
      %p90 = scmp.eq.s32.totalorder %s44, 0
      %p91 = por %p89, %p90
      %p92 = scmp.ne.s32.totalorder %s78, %s79
      %p93 = scmp.eq.s32.totalorder %s45, 1
      %p94 = por %p92, %p93
      %p96 = scmp.ne.s32.totalorder %s79, %s95
      %p97 = scmp.eq.s32.totalorder %s45, 0
      %p98 = por %p96, %p97
      %s100 = sadd.s32 %s99, 1
      %p103 = scmp.eq.s32.totalorder %s39, 1
      %p104 = scmp.ne.s32.totalorder %s99, %s101
      %p105 = scmp.eq.s32.totalorder %s39, 0
      %p106 = por %p104, %p105
      %p107 = scmp.ne.s32.totalorder %s99, %s101
      %p108 = scmp.eq.s32.totalorder %s44, 1
      %p109 = por %p107, %p108
      %p110 = scmp.ne.s32.totalorder %s101, %s102
      %p111 = scmp.eq.s32.totalorder %s44, 0
      %p112 = por %p110, %p111
      %p113 = scmp.ne.s32.totalorder %s101, %s102
      %p114 = scmp.eq.s32.totalorder %s45, 1
      %p115 = por %p113, %p114
      %p117 = scmp.ne.s32.totalorder %s102, %s116
      %p118 = scmp.eq.s32.totalorder %s45, 0
      %p119 = por %p117, %p118
      %s121 = sadd.s32 %s120, 1
      %p124 = scmp.eq.s32.totalorder %s39, 1
      %p125 = scmp.ne.s32.totalorder %s120, %s122
      %p126 = scmp.eq.s32.totalorder %s39, 0
      %p127 = por %p125, %p126
      %p128 = scmp.ne.s32.totalorder %s120, %s122
      %p129 = scmp.eq.s32.totalorder %s44, 1
      %p130 = por %p128, %p129
      %p131 = scmp.ne.s32.totalorder %s122, %s123
      %p132 = scmp.eq.s32.totalorder %s44, 0
      %p133 = por %p131, %p132
      %p134 = scmp.ne.s32.totalorder %s122, %s123
      %p135 = scmp.eq.s32.totalorder %s45, 1
      %p136 = por %p134, %p135
      %p138 = scmp.ne.s32.totalorder %s123, %s137
      %p139 = scmp.eq.s32.totalorder %s45, 0
      %p140 = por %p138, %p139
      %s142 = sadd.s32 %s141, 1
      %p145 = scmp.eq.s32.totalorder %s39, 1
      %p146 = scmp.ne.s32.totalorder %s141, %s143
      %p147 = scmp.eq.s32.totalorder %s39, 0
      %p148 = por %p146, %p147
      %p149 = scmp.ne.s32.totalorder %s141, %s143
      %p150 = scmp.eq.s32.totalorder %s44, 1
      %p151 = por %p149, %p150
      %p152 = scmp.ne.s32.totalorder %s143, %s144
      %p153 = scmp.eq.s32.totalorder %s44, 0
      %p154 = por %p152, %p153
      %p155 = scmp.ne.s32.totalorder %s143, %s144
      %p156 = scmp.eq.s32.totalorder %s45, 1
      %p157 = por %p155, %p156
      %p159 = scmp.ne.s32.totalorder %s144, %s158
      %p160 = scmp.eq.s32.totalorder %s45, 0
      %p161 = por %p159, %p160
      %s163 = sadd.s32 %s162, 1
      %p166 = scmp.eq.s32.totalorder %s39, 1
      %p167 = scmp.ne.s32.totalorder %s162, %s164
      %p168 = scmp.eq.s32.totalorder %s39, 0
      %p169 = por %p167, %p168
      %p170 = scmp.ne.s32.totalorder %s162, %s164
      %p171 = scmp.eq.s32.totalorder %s44, 1
      %p172 = por %p170, %p171
      %p173 = scmp.ne.s32.totalorder %s164, %s165
      %p174 = scmp.eq.s32.totalorder %s44, 0
      %p175 = por %p173, %p174
      %p176 = scmp.ne.s32.totalorder %s164, %s165
      %p177 = scmp.eq.s32.totalorder %s45, 1
      %p178 = por %p176, %p177
      %p180 = scmp.ne.s32.totalorder %s165, %s179
      %p181 = scmp.eq.s32.totalorder %s45, 0
      %p182 = por %p180, %p181
      %s184 = sadd.s32 %s183, 1
      %p187 = scmp.eq.s32.totalorder %s39, 1
      %p188 = scmp.ne.s32.totalorder %s183, %s185
      %p189 = scmp.eq.s32.totalorder %s39, 0
      %p190 = por %p188, %p189
      %p191 = scmp.ne.s32.totalorder %s183, %s185
      %p192 = scmp.eq.s32.totalorder %s44, 1
      %p193 = por %p191, %p192
      %p194 = scmp.ne.s32.totalorder %s185, %s186
      %p195 = scmp.eq.s32.totalorder %s44, 0
      %p196 = por %p194, %p195
      %p197 = scmp.ne.s32.totalorder %s185, %s186
      %p198 = scmp.eq.s32.totalorder %s45, 1
      %p199 = por %p197, %p198
      %p201 = scmp.ne.s32.totalorder %s186, %s200
      %p202 = scmp.eq.s32.totalorder %s45, 0
      %p203 = por %p201, %p202
      %s205 = sadd.s32 %s204, 1
      %p208 = scmp.eq.s32.totalorder %s39, 1
      %p209 = scmp.ne.s32.totalorder %s204, %s206
      %p210 = scmp.eq.s32.totalorder %s39, 0
      %p211 = por %p209, %p210
      %p212 = scmp.ne.s32.totalorder %s204, %s206
      %p213 = scmp.eq.s32.totalorder %s44, 1
      %p214 = por %p212, %p213
      %p215 = scmp.ne.s32.totalorder %s206, %s207
      %p216 = scmp.eq.s32.totalorder %s44, 0
      %p217 = por %p215, %p216
      %p218 = scmp.ne.s32.totalorder %s206, %s207
      %p219 = scmp.eq.s32.totalorder %s45, 1
      %p220 = por %p218, %p219
      %p222 = scmp.ne.s32.totalorder %s207, %s221
      %p223 = scmp.eq.s32.totalorder %s45, 0
      %p224 = por %p222, %p223
      %s226 = sadd.s32 %s225, 1
      %p229 = scmp.eq.s32.totalorder %s39, 1
      %p230 = scmp.ne.s32.totalorder %s225, %s227
      %p231 = scmp.eq.s32.totalorder %s39, 0
      %p232 = por %p230, %p231
      %p233 = scmp.ne.s32.totalorder %s225, %s227
      %p234 = scmp.eq.s32.totalorder %s44, 1
      %p235 = por %p233, %p234
      %p236 = scmp.ne.s32.totalorder %s227, %s228
      %p237 = scmp.eq.s32.totalorder %s44, 0
      %p238 = por %p236, %p237
      %p239 = scmp.ne.s32.totalorder %s227, %s228
      %p240 = scmp.eq.s32.totalorder %s45, 1
      %p241 = por %p239, %p240
      %p243 = scmp.ne.s32.totalorder %s228, %s242
      %p244 = scmp.eq.s32.totalorder %s45, 0
      %p245 = por %p243, %p244
      %s247 = sadd.s32 %s246, 1
      %p250 = scmp.eq.s32.totalorder %s39, 1
      %p251 = scmp.ne.s32.totalorder %s246, %s248
      %p252 = scmp.eq.s32.totalorder %s39, 0
      %p253 = por %p251, %p252
      %p254 = scmp.ne.s32.totalorder %s246, %s248
      %p255 = scmp.eq.s32.totalorder %s44, 1
      %p256 = por %p254, %p255
      %p257 = scmp.ne.s32.totalorder %s248, %s249
      %p258 = scmp.eq.s32.totalorder %s44, 0
      %p259 = por %p257, %p258
      %p260 = scmp.ne.s32.totalorder %s248, %s249
      %p261 = scmp.eq.s32.totalorder %s45, 1
      %p262 = por %p260, %p261
      %p264 = scmp.ne.s32.totalorder %s249, %s263
      %p265 = scmp.eq.s32.totalorder %s45, 0
      %p266 = por %p264, %p265
      %s268 = sadd.s32 %s267, 1
      %p271 = scmp.eq.s32.totalorder %s39, 1
      %p272 = scmp.ne.s32.totalorder %s267, %s269
      %p273 = scmp.eq.s32.totalorder %s39, 0
      %p274 = por %p272, %p273
      %p275 = scmp.ne.s32.totalorder %s267, %s269
      %p276 = scmp.eq.s32.totalorder %s44, 1
      %p277 = por %p275, %p276
      %p278 = scmp.ne.s32.totalorder %s269, %s270
      %p279 = scmp.eq.s32.totalorder %s44, 0
      %p280 = por %p278, %p279
      %p281 = scmp.ne.s32.totalorder %s269, %s270
      %p282 = scmp.eq.s32.totalorder %s45, 1
      %p283 = por %p281, %p282
      %p285 = scmp.ne.s32.totalorder %s270, %s284
      %p286 = scmp.eq.s32.totalorder %s45, 0
      %p287 = por %p285, %p286
      %s289 = sadd.s32 %s288, 1
      %p292 = scmp.eq.s32.totalorder %s39, 1
      %p293 = scmp.ne.s32.totalorder %s288, %s290
      %p294 = scmp.eq.s32.totalorder %s39, 0
      %p295 = por %p293, %p294
      %p296 = scmp.ne.s32.totalorder %s288, %s290
      %p297 = scmp.eq.s32.totalorder %s44, 1
      %p298 = por %p296, %p297
      %p299 = scmp.ne.s32.totalorder %s290, %s291
      %p300 = scmp.eq.s32.totalorder %s44, 0
      %p301 = por %p299, %p300
      %p302 = scmp.ne.s32.totalorder %s290, %s291
      %p303 = scmp.eq.s32.totalorder %s45, 1
      %p304 = por %p302, %p303
      %p306 = scmp.ne.s32.totalorder %s291, %s305
      %p307 = scmp.eq.s32.totalorder %s45, 0
      %p308 = por %p306, %p307
      %s310 = sadd.s32 %s309, 1
      %p313 = scmp.eq.s32.totalorder %s39, 1
      %p314 = scmp.ne.s32.totalorder %s309, %s311
      %p315 = scmp.eq.s32.totalorder %s39, 0
      %p316 = por %p314, %p315
      %p317 = scmp.ne.s32.totalorder %s309, %s311
      %p318 = scmp.eq.s32.totalorder %s44, 1
      %p319 = por %p317, %p318
      %p320 = scmp.ne.s32.totalorder %s311, %s312
      %p321 = scmp.eq.s32.totalorder %s44, 0
      %p322 = por %p320, %p321
      %p323 = scmp.ne.s32.totalorder %s311, %s312
      %p324 = scmp.eq.s32.totalorder %s45, 1
      %p325 = por %p323, %p324
      %p327 = scmp.ne.s32.totalorder %s312, %s326
      %p328 = scmp.eq.s32.totalorder %s45, 0
      %p329 = por %p327, %p328
      %s331 = sadd.s32 %s330, 1
      %p334 = scmp.eq.s32.totalorder %s39, 1
      %p335 = scmp.ne.s32.totalorder %s330, %s332
      %p336 = scmp.eq.s32.totalorder %s39, 0
      %p337 = por %p335, %p336
      %p338 = scmp.ne.s32.totalorder %s330, %s332
      %p339 = scmp.eq.s32.totalorder %s44, 1
      %p340 = por %p338, %p339
      %p341 = scmp.ne.s32.totalorder %s332, %s333
      %p342 = scmp.eq.s32.totalorder %s44, 0
      %p343 = por %p341, %p342
      %p344 = scmp.ne.s32.totalorder %s332, %s333
      %p345 = scmp.eq.s32.totalorder %s45, 1
      %p346 = por %p344, %p345
      %p348 = scmp.ne.s32.totalorder %s333, %s347
      %p349 = scmp.eq.s32.totalorder %s45, 0
      %p350 = por %p348, %p349
      %s352 = sadd.s32 %s351, 1
      %p355 = scmp.eq.s32.totalorder %s39, 1
      %p356 = scmp.ne.s32.totalorder %s351, %s353
      %p357 = scmp.eq.s32.totalorder %s39, 0
      %p358 = por %p356, %p357
      %p359 = scmp.ne.s32.totalorder %s351, %s353
      %p360 = scmp.eq.s32.totalorder %s44, 1
      %p361 = por %p359, %p360
      %p362 = scmp.ne.s32.totalorder %s353, %s354
      %p363 = scmp.eq.s32.totalorder %s44, 0
      %p364 = por %p362, %p363
      %p365 = scmp.ne.s32.totalorder %s353, %s354
      %p366 = scmp.eq.s32.totalorder %s45, 1
      %p367 = por %p365, %p366
      %p369 = scmp.ne.s32.totalorder %s354, %s368
      %p370 = scmp.eq.s32.totalorder %s45, 0
      %p371 = por %p369, %p370
      %s373 = sadd.s32 %s372, 1
      %p376 = scmp.eq.s32.totalorder %s39, 1
      %p377 = scmp.ne.s32.totalorder %s372, %s374
      %p378 = scmp.eq.s32.totalorder %s39, 0
      %p379 = por %p377, %p378
      %p380 = scmp.ne.s32.totalorder %s372, %s374
      %p381 = scmp.eq.s32.totalorder %s44, 1
      %p382 = por %p380, %p381
      %p383 = scmp.ne.s32.totalorder %s374, %s375
      %p384 = scmp.eq.s32.totalorder %s44, 0
      %p385 = por %p383, %p384
      %p386 = scmp.ne.s32.totalorder %s374, %s375
      %p387 = scmp.eq.s32.totalorder %s45, 1
      %p388 = por %p386, %p387
      %p390 = scmp.ne.s32.totalorder %s375, %s389
      %p391 = scmp.eq.s32.totalorder %s45, 0
      %p392 = por %p390, %p391
      %s394 = sadd.s32 %s393, 1
      %p397 = scmp.eq.s32.totalorder %s39, 1
      %p398 = scmp.ne.s32.totalorder %s393, %s395
      %p399 = scmp.eq.s32.totalorder %s39, 0
      %p400 = por %p398, %p399
      %p401 = scmp.ne.s32.totalorder %s393, %s395
      %p402 = scmp.eq.s32.totalorder %s44, 1
      %p403 = por %p401, %p402
      %p404 = scmp.ne.s32.totalorder %s395, %s396
      %p405 = scmp.eq.s32.totalorder %s44, 0
      %p406 = por %p404, %p405
      %p407 = scmp.ne.s32.totalorder %s395, %s396
      %p408 = scmp.eq.s32.totalorder %s45, 1
      %p409 = por %p407, %p408
      %p411 = scmp.ne.s32.totalorder %s396, %s410
      %p412 = scmp.eq.s32.totalorder %s45, 0
      %p413 = por %p411, %p412
      %s415 = sadd.s32 %s414, 1
      %p418 = scmp.eq.s32.totalorder %s39, 1
      %p419 = scmp.ne.s32.totalorder %s414, %s416
      %p420 = scmp.eq.s32.totalorder %s39, 0
      %p421 = por %p419, %p420
      %p422 = scmp.ne.s32.totalorder %s414, %s416
      %p423 = scmp.eq.s32.totalorder %s44, 1
      %p424 = por %p422, %p423
      %p425 = scmp.ne.s32.totalorder %s416, %s417
      %p426 = scmp.eq.s32.totalorder %s44, 0
      %p427 = por %p425, %p426
      %p428 = scmp.ne.s32.totalorder %s416, %s417
      %p429 = scmp.eq.s32.totalorder %s45, 1
      %p430 = por %p428, %p429
      %p432 = scmp.ne.s32.totalorder %s417, %s431
      %p433 = scmp.eq.s32.totalorder %s45, 0
      %p434 = por %p432, %p433
      %s436 = sadd.s32 %s435, 1
      %p439 = scmp.eq.s32.totalorder %s39, 1
      %p440 = scmp.ne.s32.totalorder %s435, %s437
      %p441 = scmp.eq.s32.totalorder %s39, 0
      %p442 = por %p440, %p441
      %p443 = scmp.ne.s32.totalorder %s435, %s437
      %p444 = scmp.eq.s32.totalorder %s44, 1
      %p445 = por %p443, %p444
      %p446 = scmp.ne.s32.totalorder %s437, %s438
      %p447 = scmp.eq.s32.totalorder %s44, 0
      %p448 = por %p446, %p447
      %p449 = scmp.ne.s32.totalorder %s437, %s438
      %p450 = scmp.eq.s32.totalorder %s45, 1
      %p451 = por %p449, %p450
      %p453 = scmp.ne.s32.totalorder %s438, %s452
      %p454 = scmp.eq.s32.totalorder %s45, 0
      %p455 = por %p453, %p454
      %s457 = sadd.s32 %s456, 1
      %p460 = scmp.eq.s32.totalorder %s39, 1
      %p461 = scmp.ne.s32.totalorder %s456, %s458
      %p462 = scmp.eq.s32.totalorder %s39, 0
      %p463 = por %p461, %p462
      %p464 = scmp.ne.s32.totalorder %s456, %s458
      %p465 = scmp.eq.s32.totalorder %s44, 1
      %p466 = por %p464, %p465
      %p467 = scmp.ne.s32.totalorder %s458, %s459
      %p468 = scmp.eq.s32.totalorder %s44, 0
      %p469 = por %p467, %p468
      %p470 = scmp.ne.s32.totalorder %s458, %s459
      %p471 = scmp.eq.s32.totalorder %s45, 1
      %p472 = por %p470, %p471
      %p474 = scmp.ne.s32.totalorder %s459, %s473
      %p475 = scmp.eq.s32.totalorder %s45, 0
      %p476 = por %p474, %p475
      %s478 = sadd.s32 %s477, 1
      %p481 = scmp.eq.s32.totalorder %s39, 1
      %p482 = scmp.ne.s32.totalorder %s477, %s479
      %p483 = scmp.eq.s32.totalorder %s39, 0
      %p484 = por %p482, %p483
      %p485 = scmp.ne.s32.totalorder %s477, %s479
      %p486 = scmp.eq.s32.totalorder %s44, 1
      %p487 = por %p485, %p486
      %p488 = scmp.ne.s32.totalorder %s479, %s480
      %p489 = scmp.eq.s32.totalorder %s44, 0
      %p490 = por %p488, %p489
      %p491 = scmp.ne.s32.totalorder %s479, %s480
      %p492 = scmp.eq.s32.totalorder %s45, 1
      %p493 = por %p491, %p492
      %p495 = scmp.ne.s32.totalorder %s480, %s494
      %p496 = scmp.eq.s32.totalorder %s45, 0
      %p497 = por %p495, %p496
      %s499 = sadd.s32 %s498, 1
      %p502 = scmp.eq.s32.totalorder %s39, 1
      %p503 = scmp.ne.s32.totalorder %s498, %s500
      %p504 = scmp.eq.s32.totalorder %s39, 0
      %p505 = por %p503, %p504
      %p506 = scmp.ne.s32.totalorder %s498, %s500
      %p507 = scmp.eq.s32.totalorder %s44, 1
      %p508 = por %p506, %p507
      %p509 = scmp.ne.s32.totalorder %s500, %s501
      %p510 = scmp.eq.s32.totalorder %s44, 0
      %p511 = por %p509, %p510
      %p512 = scmp.ne.s32.totalorder %s500, %s501
      %p513 = scmp.eq.s32.totalorder %s45, 1
      %p514 = por %p512, %p513
      %p516 = scmp.ne.s32.totalorder %s501, %s515
      %p517 = scmp.eq.s32.totalorder %s45, 0
      %p518 = por %p516, %p517
      %s519 = ssub.s32 %s39, %s46
      %p520 = scmp.eq.s32.totalorder %s519, 0
      %s522 = sadd.s32 %s521, 1
      %s523 = scalar_select %p520, %s521, %s522
      %p526 = pneg %p520
      %p527 = scmp.eq.s32.totalorder %s39, 1
      %p528 = por %p526, %p527
      %p529 = scmp.ne.s32.totalorder %s521, %s524
      %p530 = scmp.eq.s32.totalorder %s39, 0
      %p531 = por %p529, %p530
      %p532 = scmp.ne.s32.totalorder %s521, %s524
      %p533 = scmp.eq.s32.totalorder %s44, 1
      %p534 = por %p532, %p533
      %p535 = scmp.ne.s32.totalorder %s524, %s525
      %p536 = scmp.eq.s32.totalorder %s44, 0
      %p537 = por %p535, %p536
      %p538 = scmp.ne.s32.totalorder %s524, %s525
      %p539 = scmp.eq.s32.totalorder %s45, 1
      %p540 = por %p538, %p539
      %p542 = scmp.ne.s32.totalorder %s525, %s541
      %p543 = scmp.eq.s32.totalorder %s45, 0
      %p544 = por %p542, %p543
      %p545 = scmp.le.s32.totalorder 1, %s39
      %p546 = scmp.lt.s32.totalorder %s39, 3
      %p547 = pnand %p545, %p546
      %p548 = pneg %p547
      // Predicated region
      $region9: #{tpu_custom_call.1} parent=5 // pred_check
        _
      $region10: #{tpu_custom_call.1} parent=5 // pred_check_branch
        %550 = sbr.rel (%p547) target = $region12
      $region11: #{tpu_custom_call.1} parent=5 // pred_region
        %s551 = ssub.s32 %s39, 1
        // Predicated region
        $region13: #{tpu_custom_call.1} parent=11 // pred_check
          %p552 = pneg %p112
        $region14: #{tpu_custom_call.1} parent=11 // pred_check_branch
          %554 = sbr.rel (%p552) target = $region16
        $region15: #{tpu_custom_call.1} parent=11 // pred_region
          %s556 = ssub.s32 16, 16
          %557 = vsyncadd [#allocation7], %s556
          %s559 = sshll.u32 [#allocation6], 4
          %s560 = int_to_ptr.vmem [resolvable:$true] %s559
          %562 = dma.hbm_to_vmem [thread:$0]  %s2, 16, %s560, [#allocation7]
        $region16: #{tpu_custom_call.1} parent=11 // pred_fallthru
          _
        // Predicated region
        $region17: #{tpu_custom_call.1} parent=11 // pred_check
          %p563 = pneg %p133
        $region18: #{tpu_custom_call.1} parent=11 // pred_check_branch
          %565 = sbr.rel (%p563) target = $region20
        $region19: #{tpu_custom_call.1} parent=11 // pred_region
          %s567 = ssub.s32 16, 16
          %568 = vsyncadd [#allocation7], %s567
          %s570 = sshll.u32 [#allocation8], 4
          %s571 = int_to_ptr.vmem [resolvable:$true] %s570
          %573 = dma.hbm_to_vmem [thread:$0]  %s3, 16, %s571, [#allocation7]
        $region20: #{tpu_custom_call.1} parent=11 // pred_fallthru
          _
        // Predicated region
        $region21: #{tpu_custom_call.1} parent=11 // pred_check
          %p574 = pneg %p154
        $region22: #{tpu_custom_call.1} parent=11 // pred_check_branch
          %576 = sbr.rel (%p574) target = $region24
        $region23: #{tpu_custom_call.1} parent=11 // pred_region
          %s578 = ssub.s32 12288, 12288
          %579 = vsyncadd [#allocation10], %s578
          %s580 = sshll.u32 [#allocation9], 4
          %s581 = int_to_ptr.vmem [resolvable:$true] %s580
          %586 = dma.hbm_to_vmem [thread:$0]  %s4, 12288, %s581, [#allocation10], 384, 384, 24
        $region24: #{tpu_custom_call.1} parent=11 // pred_fallthru
          _
        // Predicated region
        $region25: #{tpu_custom_call.1} parent=11 // pred_check
          %p587 = pneg %p175
        $region26: #{tpu_custom_call.1} parent=11 // pred_check_branch
          %589 = sbr.rel (%p587) target = $region28
        $region27: #{tpu_custom_call.1} parent=11 // pred_region
          _
        $region28: #{tpu_custom_call.1} parent=11 // pred_fallthru
          _
        // Predicated region
        $region29: #{tpu_custom_call.1} parent=11 // pred_check
          %p590 = pneg %p196
        $region30: #{tpu_custom_call.1} parent=11 // pred_check_branch
          %592 = sbr.rel (%p590) target = $region32
        $region31: #{tpu_custom_call.1} parent=11 // pred_region
          %s594 = ssub.s32 4096, 4096
          %595 = vsyncadd [#allocation10], %s594
          %s596 = sshll.u32 [#allocation11], 4
          %s597 = int_to_ptr.vmem [resolvable:$true] %s596
          %602 = dma.hbm_to_vmem [thread:$0]  %s6, 4096, %s597, [#allocation10], 128, 128, 8
        $region32: #{tpu_custom_call.1} parent=11 // pred_fallthru
          _
        // Predicated region
        $region33: #{tpu_custom_call.1} parent=11 // pred_check
          %p603 = pneg %p217
        $region34: #{tpu_custom_call.1} parent=11 // pred_check_branch
          %605 = sbr.rel (%p603) target = $region36
        $region35: #{tpu_custom_call.1} parent=11 // pred_region
          _
        $region36: #{tpu_custom_call.1} parent=11 // pred_fallthru
          _
        // Predicated region
        $region37: #{tpu_custom_call.1} parent=11 // pred_check
          %p606 = pneg %p238
        $region38: #{tpu_custom_call.1} parent=11 // pred_check_branch
          %608 = sbr.rel (%p606) target = $region40
        $region39: #{tpu_custom_call.1} parent=11 // pred_region
          _
        $region40: #{tpu_custom_call.1} parent=11 // pred_fallthru
          _
        // Predicated region
        $region41: #{tpu_custom_call.1} parent=11 // pred_check
          %p609 = pneg %p259
        $region42: #{tpu_custom_call.1} parent=11 // pred_check_branch
          %611 = sbr.rel (%p609) target = $region44
        $region43: #{tpu_custom_call.1} parent=11 // pred_region
          _
        $region44: #{tpu_custom_call.1} parent=11 // pred_fallthru
          _
        // Predicated region
        $region45: #{tpu_custom_call.1} parent=11 // pred_check
          %p612 = pneg %p280
        $region46: #{tpu_custom_call.1} parent=11 // pred_check_branch
          %614 = sbr.rel (%p612) target = $region48
        $region47: #{tpu_custom_call.1} parent=11 // pred_region
          %s616 = ssub.s32 4096, 4096
          %617 = vsyncadd [#allocation13], %s616
          %s618 = sshll.u32 [#allocation12], 4
          %s619 = int_to_ptr.vmem [resolvable:$true] %s618
          %624 = dma.hbm_to_vmem [thread:$0]  %s10, 4096, %s619, [#allocation13], 128, 128, 8
        $region48: #{tpu_custom_call.1} parent=11 // pred_fallthru
          _
        // Predicated region
        $region49: #{tpu_custom_call.1} parent=11 // pred_check
          %p625 = pneg %p301
        $region50: #{tpu_custom_call.1} parent=11 // pred_check_branch
          %627 = sbr.rel (%p625) target = $region52
        $region51: #{tpu_custom_call.1} parent=11 // pred_region
          _
        $region52: #{tpu_custom_call.1} parent=11 // pred_fallthru
          _
        // Predicated region
        $region53: #{tpu_custom_call.1} parent=11 // pred_check
          %p628 = pneg %p322
        $region54: #{tpu_custom_call.1} parent=11 // pred_check_branch
          %630 = sbr.rel (%p628) target = $region56
        $region55: #{tpu_custom_call.1} parent=11 // pred_region
          %s632 = ssub.s32 4096, 4096
          %633 = vsyncadd [#allocation13], %s632
          %s634 = sshll.u32 [#allocation14], 4
          %s635 = int_to_ptr.vmem [resolvable:$true] %s634
          %640 = dma.hbm_to_vmem [thread:$0]  %s12, 4096, %s635, [#allocation13], 128, 128, 8
        $region56: #{tpu_custom_call.1} parent=11 // pred_fallthru
          _
        // Predicated region
        $region57: #{tpu_custom_call.1} parent=11 // pred_check
          %p641 = pneg %p343
        $region58: #{tpu_custom_call.1} parent=11 // pred_check_branch
          %643 = sbr.rel (%p641) target = $region60
        $region59: #{tpu_custom_call.1} parent=11 // pred_region
          _
        $region60: #{tpu_custom_call.1} parent=11 // pred_fallthru
          _
        // Predicated region
        $region61: #{tpu_custom_call.1} parent=11 // pred_check
          %p644 = pneg %p364
        $region62: #{tpu_custom_call.1} parent=11 // pred_check_branch
          %646 = sbr.rel (%p644) target = $region64
        $region63: #{tpu_custom_call.1} parent=11 // pred_region
          _
        $region64: #{tpu_custom_call.1} parent=11 // pred_fallthru
          _
        // Predicated region
        $region65: #{tpu_custom_call.1} parent=11 // pred_check
          %p647 = pneg %p385
        $region66: #{tpu_custom_call.1} parent=11 // pred_check_branch
          %649 = sbr.rel (%p647) target = $region68
        $region67: #{tpu_custom_call.1} parent=11 // pred_region
          _
        $region68: #{tpu_custom_call.1} parent=11 // pred_fallthru
          _
        // Predicated region
        $region69: #{tpu_custom_call.1} parent=11 // pred_check
          %p650 = pneg %p406
        $region70: #{tpu_custom_call.1} parent=11 // pred_check_branch
          %652 = sbr.rel (%p650) target = $region72
        $region71: #{tpu_custom_call.1} parent=11 // pred_region
          %s654 = ssub.s32 2048, 2048
          %655 = vsyncadd [#allocation16], %s654
          %s656 = sshll.u32 [#allocation15], 4
          %s657 = int_to_ptr.vmem [resolvable:$true] %s656
          %662 = dma.hbm_to_vmem [thread:$0]  %s16, 2048, %s657, [#allocation16], 128, 128, 8
        $region72: #{tpu_custom_call.1} parent=11 // pred_fallthru
          _
        // Predicated region
        $region73: #{tpu_custom_call.1} parent=11 // pred_check
          %p663 = pneg %p427
        $region74: #{tpu_custom_call.1} parent=11 // pred_check_branch
          %665 = sbr.rel (%p663) target = $region76
        $region75: #{tpu_custom_call.1} parent=11 // pred_region
          _
        $region76: #{tpu_custom_call.1} parent=11 // pred_fallthru
          _
        // Predicated region
        $region77: #{tpu_custom_call.1} parent=11 // pred_check
          %p666 = pneg %p448
        $region78: #{tpu_custom_call.1} parent=11 // pred_check_branch
          %668 = sbr.rel (%p666) target = $region80
        $region79: #{tpu_custom_call.1} parent=11 // pred_region
          _
        $region80: #{tpu_custom_call.1} parent=11 // pred_fallthru
          _
        // Predicated region
        $region81: #{tpu_custom_call.1} parent=11 // pred_check
          %p669 = pneg %p469
        $region82: #{tpu_custom_call.1} parent=11 // pred_check_branch
          %671 = sbr.rel (%p669) target = $region84
        $region83: #{tpu_custom_call.1} parent=11 // pred_region
          _
        $region84: #{tpu_custom_call.1} parent=11 // pred_fallthru
          _
        // Predicated region
        $region85: #{tpu_custom_call.1} parent=11 // pred_check
          %p672 = pneg %p490
        $region86: #{tpu_custom_call.1} parent=11 // pred_check_branch
          %674 = sbr.rel (%p672) target = $region88
        $region87: #{tpu_custom_call.1} parent=11 // pred_region
          _
        $region88: #{tpu_custom_call.1} parent=11 // pred_fallthru
          _
        // Predicated region
        $region89: #{tpu_custom_call.1} parent=11 // pred_check
          %p675 = pneg %p511
        $region90: #{tpu_custom_call.1} parent=11 // pred_check_branch
          %677 = sbr.rel (%p675) target = $region92
        $region91: #{tpu_custom_call.1} parent=11 // pred_region
          _
        $region92: #{tpu_custom_call.1} parent=11 // pred_fallthru
          _
      $region12: #{tpu_custom_call.1} parent=5 // pred_fallthru
        _
      %p678 = scmp.lt.s32.totalorder %s39, 2
      // Predicated region
      $region93: #{tpu_custom_call.1} parent=5 // pred_check
        %p679 = pneg %p678
      $region94: #{tpu_custom_call.1} parent=5 // pred_check_branch
        %681 = sbr.rel (%p679) target = $region96
      $region95: #{tpu_custom_call.1} parent=5 // pred_region
        // Predicated region
        $region97: #{tpu_custom_call.1} parent=95 // pred_check
          %p682 = pneg %p59
        $region98: #{tpu_custom_call.1} parent=95 // pred_check_branch
          %684 = sbr.rel (%p682) target = $region100
        $region99: #{tpu_custom_call.1} parent=95 // pred_region
          %s685 = sand.u32 %s49, 1
          %s686 = scalar_lea.sflag [#allocation4], %s685
          %s687 = sand.u32 %s49, 1
          %s688 = smul.addr %s687, 8
          %s689 = scalar_lea.vmem [#allocation3], %s688
          %s691 = ssub.s32 128, 128
          %692 = vsyncadd %s686, %s691
          %s693 = smul.addr %s39, 128
          %s694 = scalar_lea.hbm %s0, %s693
          %s696 = sshll.u32 %s689, 4
          %s697 = int_to_ptr.vmem [resolvable:$true] %s696
          %699 = dma.hbm_to_vmem [thread:$0]  %s694, 128, %s697, %s686
        $region100: #{tpu_custom_call.1} parent=95 // pred_fallthru
          _
        // Predicated region
        $region101: #{tpu_custom_call.1} parent=95 // pred_check
          %p700 = pneg %p85
        $region102: #{tpu_custom_call.1} parent=95 // pred_check_branch
          %702 = sbr.rel (%p700) target = $region104
        $region103: #{tpu_custom_call.1} parent=95 // pred_region
          %p703 = scmp.lt.s32.totalorder %s39, 1
          %s704 = scalar_select %p703, %s39, 1
          %s705 = scalar_lea.vmem %s1, %s704
        $region104: #{tpu_custom_call.1} parent=95 // pred_fallthru
          _
      $region96: #{tpu_custom_call.1} parent=5 // pred_fallthru
        _
      %p706 = scmp.le.s32.totalorder 1, %s39
      %p707 = scmp.lt.s32.totalorder %s39, 3
      %p708 = pnand %p706, %p707
      %p709 = pneg %p708
      // Predicated region
      $region105: #{tpu_custom_call.1} parent=5 // pred_check
        _
      $region106: #{tpu_custom_call.1} parent=5 // pred_check_branch
        %711 = sbr.rel (%p708) target = $region108
      $region107: #{tpu_custom_call.1} parent=5 // pred_region
        %s712 = ssub.s32 %s39, 1
        %s713 = sand.u32 %s52, 1
        %s714 = scalar_lea.sflag [#allocation4], %s713
        %s715 = sand.u32 %s52, 1
        %s716 = smul.addr %s715, 8
        %s717 = scalar_lea.vmem [#allocation3], %s716
        // Predicated region
        $region109: #{tpu_custom_call.1} parent=107 // pred_check
          %p718 = pneg %p65
        $region110: #{tpu_custom_call.1} parent=107 // pred_check_branch
          %720 = sbr.rel (%p718) target = $region112
        $region111: #{tpu_custom_call.1} parent=107 // pred_region
          %721 = dma.done %s714, 128
        $region112: #{tpu_custom_call.1} parent=107 // pred_fallthru
          _
        // Predicated region
        $region113: #{tpu_custom_call.1} parent=107 // pred_check
          %p722 = pneg %p112
        $region114: #{tpu_custom_call.1} parent=107 // pred_check_branch
          %724 = sbr.rel (%p722) target = $region116
        $region115: #{tpu_custom_call.1} parent=107 // pred_region
          %725 = dma.done [#allocation7], 16
        $region116: #{tpu_custom_call.1} parent=107 // pred_fallthru
          _
        // Predicated region
        $region117: #{tpu_custom_call.1} parent=107 // pred_check
          %p726 = pneg %p133
        $region118: #{tpu_custom_call.1} parent=107 // pred_check_branch
          %728 = sbr.rel (%p726) target = $region120
        $region119: #{tpu_custom_call.1} parent=107 // pred_region
          %729 = dma.done [#allocation7], 16
        $region120: #{tpu_custom_call.1} parent=107 // pred_fallthru
          _
        // Predicated region
        $region121: #{tpu_custom_call.1} parent=107 // pred_check
          %p730 = pneg %p154
        $region122: #{tpu_custom_call.1} parent=107 // pred_check_branch
          %732 = sbr.rel (%p730) target = $region124
        $region123: #{tpu_custom_call.1} parent=107 // pred_region
          %733 = dma.done [#allocation10], 12288
        $region124: #{tpu_custom_call.1} parent=107 // pred_fallthru
          _
        // Predicated region
        $region125: #{tpu_custom_call.1} parent=107 // pred_check
          %p734 = pneg %p196
        $region126: #{tpu_custom_call.1} parent=107 // pred_check_branch
          %736 = sbr.rel (%p734) target = $region128
        $region127: #{tpu_custom_call.1} parent=107 // pred_region
          %737 = dma.done [#allocation10], 4096
        $region128: #{tpu_custom_call.1} parent=107 // pred_fallthru
          _
        // Predicated region
        $region129: #{tpu_custom_call.1} parent=107 // pred_check
          %p738 = pneg %p280
        $region130: #{tpu_custom_call.1} parent=107 // pred_check_branch
          %740 = sbr.rel (%p738) target = $region132
        $region131: #{tpu_custom_call.1} parent=107 // pred_region
          %741 = dma.done [#allocation13], 4096
        $region132: #{tpu_custom_call.1} parent=107 // pred_fallthru
          _
        // Predicated region
        $region133: #{tpu_custom_call.1} parent=107 // pred_check
          %p742 = pneg %p322
        $region134: #{tpu_custom_call.1} parent=107 // pred_check_branch
          %744 = sbr.rel (%p742) target = $region136
        $region135: #{tpu_custom_call.1} parent=107 // pred_region
          %745 = dma.done [#allocation13], 4096
        $region136: #{tpu_custom_call.1} parent=107 // pred_fallthru
          _
        // Predicated region
        $region137: #{tpu_custom_call.1} parent=107 // pred_check
          %p746 = pneg %p406
        $region138: #{tpu_custom_call.1} parent=107 // pred_check_branch
          %748 = sbr.rel (%p746) target = $region140
        $region139: #{tpu_custom_call.1} parent=107 // pred_region
          %749 = dma.done [#allocation16], 2048
        $region140: #{tpu_custom_call.1} parent=107 // pred_fallthru
          _
        %s750 = sand.u32 %s52, 1
        %s751 = scalar_lea.sflag [#allocation4], %s750
        %s752 = sand.u32 %s52, 1
        %s753 = smul.addr %s752, 8
        %s754 = scalar_lea.vmem [#allocation3], %s753
        %p755 = pneg %p65
        %p756 = pneg %p62
        %p757 = scmp.lt.s32.totalorder %s44, 1
        %s758 = scalar_select %p757, %s44, 1
        %s759 = scalar_lea.vmem %s1, %s758
        %p760 = pneg %p91
        %p761 = pneg %p88
        %p762 = pneg %p112
        %p763 = pneg %p109
        %p764 = pneg %p133
        %p765 = pneg %p130
        %p766 = pneg %p154
        %p767 = pneg %p151
        %p768 = pneg %p175
        %p769 = pneg %p172
        %p770 = pneg %p196
        %p771 = pneg %p193
        %p772 = pneg %p217
        %p773 = pneg %p214
        %p774 = pneg %p238
        %p775 = pneg %p235
        %p776 = pneg %p259
        %p777 = pneg %p256
        %p778 = pneg %p280
        %p779 = pneg %p277
        %p780 = pneg %p301
        %p781 = pneg %p298
        %p782 = pneg %p322
        %p783 = pneg %p319
        %p784 = pneg %p343
        %p785 = pneg %p340
        %p786 = pneg %p364
        %p787 = pneg %p361
        %p788 = pneg %p385
        %p789 = pneg %p382
        %p790 = pneg %p406
        %p791 = pneg %p403
        %p792 = pneg %p427
        %p793 = pneg %p424
        %p794 = pneg %p448
        %p795 = pneg %p445
        %p796 = pneg %p469
        %p797 = pneg %p466
        %p798 = pneg %p490
        %p799 = pneg %p487
        %p800 = pneg %p511
        %p801 = pneg %p508
        %p802 = pneg %p537
        %p803 = pneg %p534
        %s804 = sand.u32 %s524, 1
        %s805 = scalar_lea.sflag [#allocation5], %s804
        %s806 = sand.u32 %s524, 1
        %s807 = scalar_lea.vmem [#allocation17], %s806
        %p808 = scmp.lt.s32.totalorder %s44, 1
        %s809 = scalar_select %p808, %s44, 1
        %s810 = scalar_lea.vmem %s1, %s809
        %v811 = vld [vmem:[%s717] sm:$0xff]
        %v812 = vld [vmem:[%s810] sm:$0x1]
        %v813 = vld [vmem:[#allocation6] sm:$0x1]
        %v814 = vld [vmem:[#allocation8] sm:$0x1]
        %815 = vadd.xlane.f32.xlu0 %v811
        %v816 = vpop.xlane.xlu0 %815
        %v817 = vrcp.pop 128.0
        %v818 = vmul.f32 %v816, %v817
        %v819 = vsub.f32 %v811, %v818
        %v820 = vmul.f32 %v819, %v819
        %821 = vadd.xlane.f32.xlu0 %v820
        %v822 = vpop.xlane.xlu0 %821
        %v823 = vmul.f32 %v822, %v817
        %v824 = vadd.f32 %v823, 1e-12
        %v825 = vrsqrt.pop %v824
        %v826 = vmul.f32 %v819, %v825
        %v828 = vlaneseq
        %v829 = vshrl.u32 %v828, 7
        %v830 = vsub.s32 0, %v829
        %v831 = vrot.slane %v813, %v830
        %v833 = vmul.f32 %v826, %v831
        %v835 = vlaneseq
        %v836 = vshrl.u32 %v835, 7
        %v837 = vsub.s32 0, %v836
        %v838 = vrot.slane %v814, %v837
        %v840 = vadd.f32 %v833, %v838
        %v841 = vld [vmem:[#allocation9] sm:$0xff]
        %v842 = vld [vmem:[#allocation9 + $0x8] sm:$0xff]
        %v843 = vld [vmem:[#allocation9 + $0x10] sm:$0xff]
        %v844 = vld [vmem:[#allocation9 + $0x18] sm:$0xff]
        %v845 = vld [vmem:[#allocation9 + $0x20] sm:$0xff]
        %v846 = vld [vmem:[#allocation9 + $0x28] sm:$0xff]
        %v847 = vld [vmem:[#allocation9 + $0x30] sm:$0xff]
        %v848 = vld [vmem:[#allocation9 + $0x38] sm:$0xff]
        %v849 = vld [vmem:[#allocation9 + $0x40] sm:$0xff]
        %v850 = vld [vmem:[#allocation9 + $0x48] sm:$0xff]
        %v851 = vld [vmem:[#allocation9 + $0x50] sm:$0xff]
        %v852 = vld [vmem:[#allocation9 + $0x58] sm:$0xff]
        %v853 = vld [vmem:[#allocation9 + $0x60] sm:$0xff]
        %v854 = vld [vmem:[#allocation9 + $0x68] sm:$0xff]
        %v855 = vld [vmem:[#allocation9 + $0x70] sm:$0xff]
        %v856 = vld [vmem:[#allocation9 + $0x78] sm:$0xff]
        %v857 = vld [vmem:[#allocation9 + $0x80] sm:$0xff]
        %v858 = vld [vmem:[#allocation9 + $0x88] sm:$0xff]
        %v859 = vld [vmem:[#allocation9 + $0x90] sm:$0xff]
        %v860 = vld [vmem:[#allocation9 + $0x98] sm:$0xff]
        %v861 = vld [vmem:[#allocation9 + $0xa0] sm:$0xff]
        %v862 = vld [vmem:[#allocation9 + $0xa8] sm:$0xff]
        %v863 = vld [vmem:[#allocation9 + $0xb0] sm:$0xff]
        %v864 = vld [vmem:[#allocation9 + $0xb8] sm:$0xff]
        %v865 = vld [vmem:[#allocation9 + $0xc0] sm:$0xff]
        %v866 = vld [vmem:[#allocation9 + $0xc8] sm:$0xff]
        %v867 = vld [vmem:[#allocation9 + $0xd0] sm:$0xff]
        %v868 = vld [vmem:[#allocation9 + $0xd8] sm:$0xff]
        %v869 = vld [vmem:[#allocation9 + $0xe0] sm:$0xff]
        %v870 = vld [vmem:[#allocation9 + $0xe8] sm:$0xff]
        %v871 = vld [vmem:[#allocation9 + $0xf0] sm:$0xff]
        %v872 = vld [vmem:[#allocation9 + $0xf8] sm:$0xff]
        %v873 = vld [vmem:[#allocation9 + $0x100] sm:$0xff]
        %v874 = vld [vmem:[#allocation9 + $0x108] sm:$0xff]
        %v875 = vld [vmem:[#allocation9 + $0x110] sm:$0xff]
        %v876 = vld [vmem:[#allocation9 + $0x118] sm:$0xff]
        %v877 = vld [vmem:[#allocation9 + $0x120] sm:$0xff]
        %v878 = vld [vmem:[#allocation9 + $0x128] sm:$0xff]
        %v879 = vld [vmem:[#allocation9 + $0x130] sm:$0xff]
        %v880 = vld [vmem:[#allocation9 + $0x138] sm:$0xff]
        %v881 = vld [vmem:[#allocation9 + $0x140] sm:$0xff]
        %v882 = vld [vmem:[#allocation9 + $0x148] sm:$0xff]
        %v883 = vld [vmem:[#allocation9 + $0x150] sm:$0xff]
        %v884 = vld [vmem:[#allocation9 + $0x158] sm:$0xff]
        %v885 = vld [vmem:[#allocation9 + $0x160] sm:$0xff]
        %v886 = vld [vmem:[#allocation9 + $0x168] sm:$0xff]
        %v887 = vld [vmem:[#allocation9 + $0x170] sm:$0xff]
        %v888 = vld [vmem:[#allocation9 + $0x178] sm:$0xff]
        %v889 = vld [vmem:[%s5] sm:$0x7]
        %v891 = vlaneseq
        %v892 = vshrl.u32 %v891, 7
        %v893 = vsub.s32 0, %v892
        %v894 = vrot.slane %v889, %v893
        %v895 = vlaneseq
        %v896 = vshrl.u32 %v895, 7
        %v897 = vsub.s32 1, %v896
        %v898 = vrot.slane %v889, %v897
        %v899 = vlaneseq
        %v900 = vshrl.u32 %v899, 7
        %v901 = vsub.s32 2, %v900
        %v902 = vrot.slane %v889, %v901
        %906 = vmatprep.subr.mxu0 %v887
        %907 = vmatpush1.msra.mxu0 %v886
        %908 = vmatprep.subr.mxu0 %v884
        %909 = vmatpush1.msra.mxu0 %v883
        %910 = vmatprep.subr.mxu0 %v881
        %911 = vmatpush1.msra.mxu0 %v880
        %912 = vmatprep.subr.mxu0 %v878
        %913 = vmatpush1.msra.mxu0 %v877
        %914 = vmatprep.subr.mxu0 %v875
        %915 = vmatpush1.msra.mxu0 %v874
        %916 = vmatprep.subr.mxu0 %v872
        %917 = vmatpush1.msra.mxu0 %v871
        %918 = vmatprep.subr.mxu0 %v869
        %919 = vmatpush1.msra.mxu0 %v868
        %920 = vmatprep.subr.mxu0 %v866
        %921 = vmatpush1.msra.mxu0 %v865
        %922 = vmatprep.subr.mxu0 %v863
        %923 = vmatpush1.msra.mxu0 %v862
        %924 = vmatprep.subr.mxu0 %v860
        %925 = vmatpush1.msra.mxu0 %v859
        %926 = vmatprep.subr.mxu0 %v857
        %927 = vmatpush1.msra.mxu0 %v856
        %928 = vmatprep.subr.mxu0 %v854
        %929 = vmatpush1.msra.mxu0 %v853
        %930 = vmatprep.subr.mxu0 %v851
        %931 = vmatpush1.msra.mxu0 %v850
        %932 = vmatprep.subr.mxu0 %v848
        %933 = vmatpush1.msra.mxu0 %v847
        %934 = vmatprep.subr.mxu0 %v845
        %935 = vmatpush1.msra.mxu0 %v844
        %936 = vmatprep.subr.mxu0 %v842
        %937 = vmatpush1.msra.mxu0 %v841
        %938 = vmatprep.subr.mxu0 0.0
        %939 = vmatpush2.msra.mxu0 0.0
        %940 = vmatprep.subr.mxu0 0.0
        %941 = vmatpush2.msra.mxu0 0.0
        %942 = vmatprep.subr.mxu0 0.0
        %943 = vmatpush2.msra.mxu0 0.0
        %944 = vmatprep.subr.mxu0 0.0
        %945 = vmatpush2.msra.mxu0 0.0
        %946 = vmatprep.subr.mxu0 0.0
        %947 = vmatpush2.msra.mxu0 0.0
        %948 = vmatprep.subr.mxu0 0.0
        %949 = vmatpush2.msra.mxu0 0.0
        %950 = vmatprep.subr.mxu0 0.0
        %951 = vmatpush2.msra.mxu0 0.0
        %952 = vmatprep.subr.mxu0 0.0
        %953 = vmatpush2.msra.mxu0 0.0
        %954 = vmatprep.subr.mxu0 0.0
        %955 = vmatpush2.msra.mxu0 0.0
        %956 = vmatprep.subr.mxu0 0.0
        %957 = vmatpush2.msra.mxu0 0.0
        %958 = vmatprep.subr.mxu0 0.0
        %959 = vmatpush2.msra.mxu0 0.0
        %960 = vmatprep.subr.mxu0 0.0
        %961 = vmatpush2.msra.mxu0 0.0
        %962 = vmatprep.subr.mxu0 0.0
        %963 = vmatpush2.msra.mxu0 0.0
        %964 = vmatprep.subr.mxu0 0.0
        %965 = vmatpush2.msra.mxu0 0.0
        %966 = vmatprep.subr.mxu0 0.0
        %967 = vmatpush2.msra.mxu0 0.0
        %968 = vmatprep.subr.mxu0 0.0
        %969 = vmatpush2.msra.mxu0 0.0
        %970 = vmatprep.mubr.f32.mxu0 0.0
        %971 = vmatmul.mubr.f32.gmra.mxu0 %v840
        %v972 = vpop.f32.mrf.mxu0
        %v973 = vadd.f32 %v894, %v972
        %v974 = vpop.f32.mrf.mxu0
        %v975 = vadd.f32 %v898, %v974
        %976 = vdwg.mxu0
        %977 = vmatprep.subr.mxu0 0.0
        %978 = vmatpush1.msra.mxu0 %v888
        %979 = vmatprep.subr.mxu0 0.0
        %980 = vmatpush1.msra.mxu0 %v885
        %981 = vmatprep.subr.mxu0 0.0
        %982 = vmatpush1.msra.mxu0 %v882
        %983 = vmatprep.subr.mxu0 0.0
        %984 = vmatpush1.msra.mxu0 %v879
        %985 = vmatprep.subr.mxu0 0.0
        %986 = vmatpush1.msra.mxu0 %v876
        %987 = vmatprep.subr.mxu0 0.0
        %988 = vmatpush1.msra.mxu0 %v873
        %989 = vmatprep.subr.mxu0 0.0
        %990 = vmatpush1.msra.mxu0 %v870
        %991 = vmatprep.subr.mxu0 0.0
        %992 = vmatpush1.msra.mxu0 %v867
        %993 = vmatprep.subr.mxu0 0.0
        %994 = vmatpush1.msra.mxu0 %v864
        %995 = vmatprep.subr.mxu0 0.0
        %996 = vmatpush1.msra.mxu0 %v861
        %997 = vmatprep.subr.mxu0 0.0
        %998 = vmatpush1.msra.mxu0 %v858
        %999 = vmatprep.subr.mxu0 0.0
        %1000 = vmatpush1.msra.mxu0 %v855
        %1001 = vmatprep.subr.mxu0 0.0
        %1002 = vmatpush1.msra.mxu0 %v852
        %1003 = vmatprep.subr.mxu0 0.0
        %1004 = vmatpush1.msra.mxu0 %v849
        %1005 = vmatprep.subr.mxu0 0.0
        %1006 = vmatpush1.msra.mxu0 %v846
        %1007 = vmatprep.subr.mxu0 0.0
        %1008 = vmatpush1.msra.mxu0 %v843
        %1009 = vmatprep.subr.mxu0 0.0
        %1010 = vmatpush2.msra.mxu0 0.0
        %1011 = vmatprep.subr.mxu0 0.0
        %1012 = vmatpush2.msra.mxu0 0.0
        %1013 = vmatprep.subr.mxu0 0.0
        %1014 = vmatpush2.msra.mxu0 0.0
        %1015 = vmatprep.subr.mxu0 0.0
        %1016 = vmatpush2.msra.mxu0 0.0
        %1017 = vmatprep.subr.mxu0 0.0
        %1018 = vmatpush2.msra.mxu0 0.0
        %1019 = vmatprep.subr.mxu0 0.0
        %1020 = vmatpush2.msra.mxu0 0.0
        %1021 = vmatprep.subr.mxu0 0.0
        %1022 = vmatpush2.msra.mxu0 0.0
        %1023 = vmatprep.subr.mxu0 0.0
        %1024 = vmatpush2.msra.mxu0 0.0
        %1025 = vmatprep.subr.mxu0 0.0
        %1026 = vmatpush2.msra.mxu0 0.0
        %1027 = vmatprep.subr.mxu0 0.0
        %1028 = vmatpush2.msra.mxu0 0.0
        %1029 = vmatprep.subr.mxu0 0.0
        %1030 = vmatpush2.msra.mxu0 0.0
        %1031 = vmatprep.subr.mxu0 0.0
        %1032 = vmatpush2.msra.mxu0 0.0
        %1033 = vmatprep.subr.mxu0 0.0
        %1034 = vmatpush2.msra.mxu0 0.0
        %1035 = vmatprep.subr.mxu0 0.0
        %1036 = vmatpush2.msra.mxu0 0.0
        %1037 = vmatprep.subr.mxu0 0.0
        %1038 = vmatpush2.msra.mxu0 0.0
        %1039 = vmatprep.subr.mxu0 0.0
        %1040 = vmatpush2.msra.mxu0 0.0
        %1041 = vmatprep.mubr.f32.mxu0 0.0
        %1042 = vmatmul.mubr.f32.gmra.mxu0 %v840
        %v1043 = vpop.f32.mrf.mxu0
        %v1044 = vadd.f32 %v902, %v1043
        %v1045 = vpop.f32.mrf.mxu0
        %1046 = vdwg.mxu0
        %1048 = vrot.lane.b32.xlu0 %v973, 64
        %v1049 = vpop.permute.xlu0 %1048
        %1051 = vrot.lane.b32.xlu0 %v975, 64
        %v1052 = vpop.permute.xlu0 %1051
        %1054 = vrot.lane.b32.xlu0 %v1044, 64
        %v1055 = vpop.permute.xlu0 %1054
        %vm1057 = vcmask 523264
        %v1058 = vsel %vm1057, %v973, 0
        %v1060 = vsel %vm1057, %v975, 0
        %1062 = vmatprep.subr.mxu0 0.0
        %1063 = vmatpush1.xpose.msra.mxu0 0.0
        %1064 = vmatprep.subr.mxu0 0.0
        %1065 = vmatpush1.xpose.msra.mxu0 0.0
        %1066 = vmatprep.subr.mxu0 0.0
        %1067 = vmatpush1.xpose.msra.mxu0 0.0
        %1068 = vmatprep.subr.mxu0 0.0
        %1069 = vmatpush1.xpose.msra.mxu0 0.0
        %1070 = vmatprep.subr.mxu0 0.0
        %1071 = vmatpush1.xpose.msra.mxu0 0.0
        %1072 = vmatprep.subr.mxu0 0.0
        %1073 = vmatpush1.xpose.msra.mxu0 0.0
        %1074 = vmatprep.subr.mxu0 0.0
        %1075 = vmatpush1.xpose.msra.mxu0 0.0
        %1076 = vmatprep.subr.mxu0 0.0
        %1077 = vmatpush1.xpose.msra.mxu0 0.0
        %1078 = vmatprep.subr.mxu0 0.0
        %1079 = vmatpush1.xpose.msra.mxu0 0.0
        %1080 = vmatprep.subr.mxu0 0.0
        %1081 = vmatpush1.xpose.msra.mxu0 0.0
        %1082 = vmatprep.subr.mxu0 0.0
        %1083 = vmatpush1.xpose.msra.mxu0 0.0
        %1084 = vmatprep.subr.mxu0 0.0
        %1085 = vmatpush1.xpose.msra.mxu0 0.0
        %1086 = vmatprep.subr.mxu0 0.0
        %1087 = vmatpush1.xpose.msra.mxu0 0.0
        %1088 = vmatprep.subr.mxu0 0.0
        %1089 = vmatpush1.xpose.msra.mxu0 0.0
        %1090 = vmatprep.subr.mxu0 0.0
        %1091 = vmatpush1.xpose.msra.mxu0 0.0
        %1092 = vmatprep.subr.mxu0 0.0
        %1093 = vmatpush1.xpose.msra.mxu0 %v1060
        %1094 = vmatprep.subr.mxu0 0.0
        %1095 = vmatpush2.xpose.msra.mxu0 0.0
        %1096 = vmatprep.subr.mxu0 0.0
        %1097 = vmatpush2.xpose.msra.mxu0 0.0
        %1098 = vmatprep.subr.mxu0 0.0
        %1099 = vmatpush2.xpose.msra.mxu0 0.0
        %1100 = vmatprep.subr.mxu0 0.0
        %1101 = vmatpush2.xpose.msra.mxu0 0.0
        %1102 = vmatprep.subr.mxu0 0.0
        %1103 = vmatpush2.xpose.msra.mxu0 0.0
        %1104 = vmatprep.subr.mxu0 0.0
        %1105 = vmatpush2.xpose.msra.mxu0 0.0
        %1106 = vmatprep.subr.mxu0 0.0
        %1107 = vmatpush2.xpose.msra.mxu0 0.0
        %1108 = vmatprep.subr.mxu0 0.0
        %1109 = vmatpush2.xpose.msra.mxu0 0.0
        %1110 = vmatprep.subr.mxu0 0.0
        %1111 = vmatpush2.xpose.msra.mxu0 0.0
        %1112 = vmatprep.subr.mxu0 0.0
        %1113 = vmatpush2.xpose.msra.mxu0 0.0
        %1114 = vmatprep.subr.mxu0 0.0
        %1115 = vmatpush2.xpose.msra.mxu0 0.0
        %1116 = vmatprep.subr.mxu0 0.0
        %1117 = vmatpush2.xpose.msra.mxu0 0.0
        %1118 = vmatprep.subr.mxu0 0.0
        %1119 = vmatpush2.xpose.msra.mxu0 0.0
        %1120 = vmatprep.subr.mxu0 0.0
        %1121 = vmatpush2.xpose.msra.mxu0 0.0
        %1122 = vmatprep.subr.mxu0 0.0
        %1123 = vmatpush2.xpose.msra.mxu0 0.0
        %1124 = vmatprep.subr.mxu0 0.0
        %1125 = vmatpush2.xpose.msra.mxu0 0.0
        %1126 = vmatprep.mubr.f32.mxu0 0.0
        %1127 = vmatmul.mubr.f32.gmra.mxu0 %v1058
        %v1128 = vpop.f32.mrf.mxu0
        %v1129 = vadd.f32 0.0, %v1128
        %v1130 = vpop.f32.mrf.mxu0
        %1131 = vdwg.mxu0
        %v1132 = vsel %vm1057, %v1049, 0
        %v1134 = vsel %vm1057, %v1052, 0
        %1136 = vmatprep.subr.mxu0 0.0
        %1137 = vmatpush1.xpose.msra.mxu0 0.0
        %1138 = vmatprep.subr.mxu0 0.0
        %1139 = vmatpush1.xpose.msra.mxu0 0.0
        %1140 = vmatprep.subr.mxu0 0.0
        %1141 = vmatpush1.xpose.msra.mxu0 0.0
        %1142 = vmatprep.subr.mxu0 0.0
        %1143 = vmatpush1.xpose.msra.mxu0 0.0
        %1144 = vmatprep.subr.mxu0 0.0
        %1145 = vmatpush1.xpose.msra.mxu0 0.0
        %1146 = vmatprep.subr.mxu0 0.0
        %1147 = vmatpush1.xpose.msra.mxu0 0.0
        %1148 = vmatprep.subr.mxu0 0.0
        %1149 = vmatpush1.xpose.msra.mxu0 0.0
        %1150 = vmatprep.subr.mxu0 0.0
        %1151 = vmatpush1.xpose.msra.mxu0 0.0
        %1152 = vmatprep.subr.mxu0 0.0
        %1153 = vmatpush1.xpose.msra.mxu0 0.0
        %1154 = vmatprep.subr.mxu0 0.0
        %1155 = vmatpush1.xpose.msra.mxu0 0.0
        %1156 = vmatprep.subr.mxu0 0.0
        %1157 = vmatpush1.xpose.msra.mxu0 0.0
        %1158 = vmatprep.subr.mxu0 0.0
        %1159 = vmatpush1.xpose.msra.mxu0 0.0
        %1160 = vmatprep.subr.mxu0 0.0
        %1161 = vmatpush1.xpose.msra.mxu0 0.0
        %1162 = vmatprep.subr.mxu0 0.0
        %1163 = vmatpush1.xpose.msra.mxu0 0.0
        %1164 = vmatprep.subr.mxu0 0.0
        %1165 = vmatpush1.xpose.msra.mxu0 0.0
        %1166 = vmatprep.subr.mxu0 0.0
        %1167 = vmatpush1.xpose.msra.mxu0 %v1134
        %1168 = vmatprep.subr.mxu0 0.0
        %1169 = vmatpush2.xpose.msra.mxu0 0.0
        %1170 = vmatprep.subr.mxu0 0.0
        %1171 = vmatpush2.xpose.msra.mxu0 0.0
        %1172 = vmatprep.subr.mxu0 0.0
        %1173 = vmatpush2.xpose.msra.mxu0 0.0
        %1174 = vmatprep.subr.mxu0 0.0
        %1175 = vmatpush2.xpose.msra.mxu0 0.0
        %1176 = vmatprep.subr.mxu0 0.0
        %1177 = vmatpush2.xpose.msra.mxu0 0.0
        %1178 = vmatprep.subr.mxu0 0.0
        %1179 = vmatpush2.xpose.msra.mxu0 0.0
        %1180 = vmatprep.subr.mxu0 0.0
        %1181 = vmatpush2.xpose.msra.mxu0 0.0
        %1182 = vmatprep.subr.mxu0 0.0
        %1183 = vmatpush2.xpose.msra.mxu0 0.0
        %1184 = vmatprep.subr.mxu0 0.0
        %1185 = vmatpush2.xpose.msra.mxu0 0.0
        %1186 = vmatprep.subr.mxu0 0.0
        %1187 = vmatpush2.xpose.msra.mxu0 0.0
        %1188 = vmatprep.subr.mxu0 0.0
        %1189 = vmatpush2.xpose.msra.mxu0 0.0
        %1190 = vmatprep.subr.mxu0 0.0
        %1191 = vmatpush2.xpose.msra.mxu0 0.0
        %1192 = vmatprep.subr.mxu0 0.0
        %1193 = vmatpush2.xpose.msra.mxu0 0.0
        %1194 = vmatprep.subr.mxu0 0.0
        %1195 = vmatpush2.xpose.msra.mxu0 0.0
        %1196 = vmatprep.subr.mxu0 0.0
        %1197 = vmatpush2.xpose.msra.mxu0 0.0
        %1198 = vmatprep.subr.mxu0 0.0
        %1199 = vmatpush2.xpose.msra.mxu0 0.0
        %1200 = vmatprep.mubr.f32.mxu0 0.0
        %1201 = vmatmul.mubr.f32.gmra.mxu0 %v1132
        %v1202 = vpop.f32.mrf.mxu0
        %v1203 = vadd.f32 0.0, %v1202
        %v1204 = vpop.f32.mrf.mxu0
        %1205 = vdwg.mxu0
        %v1206 = vmul.f32 %v1129, 0.125
        %v1207 = vmul.f32 %v1203, 0.125
        %v1209 = vlaneseq
        %v1210 = vshrl.u32 %v1209, 7
        %v1211 = vsub.s32 0, %v1210
        %v1212 = vrot.slane %v812, %v1211
        %v1214 = vadd.f32 %v1206, %v1212
        %v1215 = vadd.f32 %v1207, %v1212
        %vm1216 = vcmask 64512
        %v1217 = vsel %vm1216, %v1214, -inf
        %1218 = vmax.xlane.f32.xlu0 %v1217
        %v1219 = vpop.xlane.xlu0 %1218
        %v1220 = vsel %vm1216, %v1215, -inf
        %1221 = vmax.xlane.f32.xlu0 %v1220
        %v1222 = vpop.xlane.xlu0 %1221
        %v1223 = vsub.f32 %v1214, %v1219
        %v1224 = vsub.f32 %v1215, %v1222
        %v1225 = vmul.f32 %v1223, 1.442695
        %v1226 = vpow.pop %v1225
        %v1227 = vmul.f32 %v1224, 1.442695
        %v1228 = vpow.pop %v1227
        %v1229 = vsel %vm1216, %v1226, 0.0
        %1230 = vadd.xlane.f32.xlu0 %v1229
        %v1231 = vpop.xlane.xlu0 %1230
        %v1232 = vsel %vm1216, %v1228, 0.0
        %1233 = vadd.xlane.f32.xlu0 %v1232
        %v1234 = vpop.xlane.xlu0 %1233
        %v1235 = vrcp.pop %v1231
        %v1236 = vrcp.pop %v1234
        %v1237 = vmul.f32 %v1226, %v1235
        %v1238 = vmul.f32 %v1228, %v1236
        %v1240 = vsel %vm1216, %v1237, 0
        %1242 = vmatprep.subr.mxu0 0.0
        %1243 = vmatpush1.msra.mxu0 0.0
        %1244 = vmatprep.subr.mxu0 0.0
        %1245 = vmatpush1.msra.mxu0 0.0
        %1246 = vmatprep.subr.mxu0 0.0
        %1247 = vmatpush1.msra.mxu0 0.0
        %1248 = vmatprep.subr.mxu0 0.0
        %1249 = vmatpush1.msra.mxu0 0.0
        %1250 = vmatprep.subr.mxu0 0.0
        %1251 = vmatpush1.msra.mxu0 0.0
        %1252 = vmatprep.subr.mxu0 0.0
        %1253 = vmatpush1.msra.mxu0 0.0
        %1254 = vmatprep.subr.mxu0 0.0
        %1255 = vmatpush1.msra.mxu0 0.0
        %1256 = vmatprep.subr.mxu0 0.0
        %1257 = vmatpush1.msra.mxu0 0.0
        %1258 = vmatprep.subr.mxu0 0.0
        %1259 = vmatpush1.msra.mxu0 0.0
        %1260 = vmatprep.subr.mxu0 0.0
        %1261 = vmatpush1.msra.mxu0 0.0
        %1262 = vmatprep.subr.mxu0 0.0
        %1263 = vmatpush1.msra.mxu0 0.0
        %1264 = vmatprep.subr.mxu0 0.0
        %1265 = vmatpush1.msra.mxu0 0.0
        %1266 = vmatprep.subr.mxu0 0.0
        %1267 = vmatpush1.msra.mxu0 0.0
        %1268 = vmatprep.subr.mxu0 0.0
        %1269 = vmatpush1.msra.mxu0 0.0
        %1270 = vmatprep.subr.mxu0 0.0
        %1271 = vmatpush1.msra.mxu0 0.0
        %1272 = vmatprep.subr.mxu0 0.0
        %1273 = vmatpush1.msra.mxu0 %v1044
        %1274 = vmatprep.subr.mxu0 0.0
        %1275 = vmatpush2.msra.mxu0 0.0
        %1276 = vmatprep.subr.mxu0 0.0
        %1277 = vmatpush2.msra.mxu0 0.0
        %1278 = vmatprep.subr.mxu0 0.0
        %1279 = vmatpush2.msra.mxu0 0.0
        %1280 = vmatprep.subr.mxu0 0.0
        %1281 = vmatpush2.msra.mxu0 0.0
        %1282 = vmatprep.subr.mxu0 0.0
        %1283 = vmatpush2.msra.mxu0 0.0
        %1284 = vmatprep.subr.mxu0 0.0
        %1285 = vmatpush2.msra.mxu0 0.0
        %1286 = vmatprep.subr.mxu0 0.0
        %1287 = vmatpush2.msra.mxu0 0.0
        %1288 = vmatprep.subr.mxu0 0.0
        %1289 = vmatpush2.msra.mxu0 0.0
        %1290 = vmatprep.subr.mxu0 0.0
        %1291 = vmatpush2.msra.mxu0 0.0
        %1292 = vmatprep.subr.mxu0 0.0
        %1293 = vmatpush2.msra.mxu0 0.0
        %1294 = vmatprep.subr.mxu0 0.0
        %1295 = vmatpush2.msra.mxu0 0.0
        %1296 = vmatprep.subr.mxu0 0.0
        %1297 = vmatpush2.msra.mxu0 0.0
        %1298 = vmatprep.subr.mxu0 0.0
        %1299 = vmatpush2.msra.mxu0 0.0
        %1300 = vmatprep.subr.mxu0 0.0
        %1301 = vmatpush2.msra.mxu0 0.0
        %1302 = vmatprep.subr.mxu0 0.0
        %1303 = vmatpush2.msra.mxu0 0.0
        %1304 = vmatprep.subr.mxu0 0.0
        %1305 = vmatpush2.msra.mxu0 0.0
        %1306 = vmatprep.mubr.f32.mxu0 0.0
        %1307 = vmatmul.mubr.f32.gmra.mxu0 %v1240
        %v1308 = vpop.f32.mrf.mxu0
        %v1309 = vadd.f32 0.0, %v1308
        %v1310 = vpop.f32.mrf.mxu0
        %1311 = vdwg.mxu0
        %v1313 = vsel %vm1216, %v1238, 0
        %1315 = vmatprep.subr.mxu0 0.0
        %1316 = vmatpush1.msra.mxu0 0.0
        %1317 = vmatprep.subr.mxu0 0.0
        %1318 = vmatpush1.msra.mxu0 0.0
        %1319 = vmatprep.subr.mxu0 0.0
        %1320 = vmatpush1.msra.mxu0 0.0
        %1321 = vmatprep.subr.mxu0 0.0
        %1322 = vmatpush1.msra.mxu0 0.0
        %1323 = vmatprep.subr.mxu0 0.0
        %1324 = vmatpush1.msra.mxu0 0.0
        %1325 = vmatprep.subr.mxu0 0.0
        %1326 = vmatpush1.msra.mxu0 0.0
        %1327 = vmatprep.subr.mxu0 0.0
        %1328 = vmatpush1.msra.mxu0 0.0
        %1329 = vmatprep.subr.mxu0 0.0
        %1330 = vmatpush1.msra.mxu0 0.0
        %1331 = vmatprep.subr.mxu0 0.0
        %1332 = vmatpush1.msra.mxu0 0.0
        %1333 = vmatprep.subr.mxu0 0.0
        %1334 = vmatpush1.msra.mxu0 0.0
        %1335 = vmatprep.subr.mxu0 0.0
        %1336 = vmatpush1.msra.mxu0 0.0
        %1337 = vmatprep.subr.mxu0 0.0
        %1338 = vmatpush1.msra.mxu0 0.0
        %1339 = vmatprep.subr.mxu0 0.0
        %1340 = vmatpush1.msra.mxu0 0.0
        %1341 = vmatprep.subr.mxu0 0.0
        %1342 = vmatpush1.msra.mxu0 0.0
        %1343 = vmatprep.subr.mxu0 0.0
        %1344 = vmatpush1.msra.mxu0 0.0
        %1345 = vmatprep.subr.mxu0 0.0
        %1346 = vmatpush1.msra.mxu0 %v1055
        %1347 = vmatprep.subr.mxu0 0.0
        %1348 = vmatpush2.msra.mxu0 0.0
        %1349 = vmatprep.subr.mxu0 0.0
        %1350 = vmatpush2.msra.mxu0 0.0
        %1351 = vmatprep.subr.mxu0 0.0
        %1352 = vmatpush2.msra.mxu0 0.0
        %1353 = vmatprep.subr.mxu0 0.0
        %1354 = vmatpush2.msra.mxu0 0.0
        %1355 = vmatprep.subr.mxu0 0.0
        %1356 = vmatpush2.msra.mxu0 0.0
        %1357 = vmatprep.subr.mxu0 0.0
        %1358 = vmatpush2.msra.mxu0 0.0
        %1359 = vmatprep.subr.mxu0 0.0
        %1360 = vmatpush2.msra.mxu0 0.0
        %1361 = vmatprep.subr.mxu0 0.0
        %1362 = vmatpush2.msra.mxu0 0.0
        %1363 = vmatprep.subr.mxu0 0.0
        %1364 = vmatpush2.msra.mxu0 0.0
        %1365 = vmatprep.subr.mxu0 0.0
        %1366 = vmatpush2.msra.mxu0 0.0
        %1367 = vmatprep.subr.mxu0 0.0
        %1368 = vmatpush2.msra.mxu0 0.0
        %1369 = vmatprep.subr.mxu0 0.0
        %1370 = vmatpush2.msra.mxu0 0.0
        %1371 = vmatprep.subr.mxu0 0.0
        %1372 = vmatpush2.msra.mxu0 0.0
        %1373 = vmatprep.subr.mxu0 0.0
        %1374 = vmatpush2.msra.mxu0 0.0
        %1375 = vmatprep.subr.mxu0 0.0
        %1376 = vmatpush2.msra.mxu0 0.0
        %1377 = vmatprep.subr.mxu0 0.0
        %1378 = vmatpush2.msra.mxu0 0.0
        %1379 = vmatprep.mubr.f32.mxu0 0.0
        %1380 = vmatmul.mubr.f32.gmra.mxu0 %v1313
        %v1381 = vpop.f32.mrf.mxu0
        %v1382 = vadd.f32 0.0, %v1381
        %v1383 = vpop.f32.mrf.mxu0
        %1384 = vdwg.mxu0
        %1386 = vrot.lane.b32.xlu0 %v1382, 64
        %v1387 = vpop.permute.xlu0 %1386
        %v1389 = vsel %vm1057, %v1309, %v1387
        %v1390 = vld [vmem:[#allocation11] sm:$0xff]
        %v1391 = vld [vmem:[#allocation11 + $0x8] sm:$0xff]
        %v1392 = vld [vmem:[#allocation11 + $0x10] sm:$0xff]
        %v1393 = vld [vmem:[#allocation11 + $0x18] sm:$0xff]
        %v1394 = vld [vmem:[#allocation11 + $0x20] sm:$0xff]
        %v1395 = vld [vmem:[#allocation11 + $0x28] sm:$0xff]
        %v1396 = vld [vmem:[#allocation11 + $0x30] sm:$0xff]
        %v1397 = vld [vmem:[#allocation11 + $0x38] sm:$0xff]
        %v1398 = vld [vmem:[#allocation11 + $0x40] sm:$0xff]
        %v1399 = vld [vmem:[#allocation11 + $0x48] sm:$0xff]
        %v1400 = vld [vmem:[#allocation11 + $0x50] sm:$0xff]
        %v1401 = vld [vmem:[#allocation11 + $0x58] sm:$0xff]
        %v1402 = vld [vmem:[#allocation11 + $0x60] sm:$0xff]
        %v1403 = vld [vmem:[#allocation11 + $0x68] sm:$0xff]
        %v1404 = vld [vmem:[#allocation11 + $0x70] sm:$0xff]
        %v1405 = vld [vmem:[#allocation11 + $0x78] sm:$0xff]
        %v1406 = vld [vmem:[%s7] sm:$0x1]
        %v1408 = vlaneseq
        %v1409 = vshrl.u32 %v1408, 7
        %v1410 = vsub.s32 0, %v1409
        %v1411 = vrot.slane %v1406, %v1410
        %1413 = vmatprep.subr.mxu0 0.0
        %1414 = vmatpush1.msra.mxu0 %v1405
        %1415 = vmatprep.subr.mxu0 0.0
        %1416 = vmatpush1.msra.mxu0 %v1404
        %1417 = vmatprep.subr.mxu0 0.0
        %1418 = vmatpush1.msra.mxu0 %v1403
        %1419 = vmatprep.subr.mxu0 0.0
        %1420 = vmatpush1.msra.mxu0 %v1402
        %1421 = vmatprep.subr.mxu0 0.0
        %1422 = vmatpush1.msra.mxu0 %v1401
        %1423 = vmatprep.subr.mxu0 0.0
        %1424 = vmatpush1.msra.mxu0 %v1400
        %1425 = vmatprep.subr.mxu0 0.0
        %1426 = vmatpush1.msra.mxu0 %v1399
        %1427 = vmatprep.subr.mxu0 0.0
        %1428 = vmatpush1.msra.mxu0 %v1398
        %1429 = vmatprep.subr.mxu0 0.0
        %1430 = vmatpush1.msra.mxu0 %v1397
        %1431 = vmatprep.subr.mxu0 0.0
        %1432 = vmatpush1.msra.mxu0 %v1396
        %1433 = vmatprep.subr.mxu0 0.0
        %1434 = vmatpush1.msra.mxu0 %v1395
        %1435 = vmatprep.subr.mxu0 0.0
        %1436 = vmatpush1.msra.mxu0 %v1394
        %1437 = vmatprep.subr.mxu0 0.0
        %1438 = vmatpush1.msra.mxu0 %v1393
        %1439 = vmatprep.subr.mxu0 0.0
        %1440 = vmatpush1.msra.mxu0 %v1392
        %1441 = vmatprep.subr.mxu0 0.0
        %1442 = vmatpush1.msra.mxu0 %v1391
        %1443 = vmatprep.subr.mxu0 0.0
        %1444 = vmatpush1.msra.mxu0 %v1390
        %1445 = vmatprep.subr.mxu0 0.0
        %1446 = vmatpush2.msra.mxu0 0.0
        %1447 = vmatprep.subr.mxu0 0.0
        %1448 = vmatpush2.msra.mxu0 0.0
        %1449 = vmatprep.subr.mxu0 0.0
        %1450 = vmatpush2.msra.mxu0 0.0
        %1451 = vmatprep.subr.mxu0 0.0
        %1452 = vmatpush2.msra.mxu0 0.0
        %1453 = vmatprep.subr.mxu0 0.0
        %1454 = vmatpush2.msra.mxu0 0.0
        %1455 = vmatprep.subr.mxu0 0.0
        %1456 = vmatpush2.msra.mxu0 0.0
        %1457 = vmatprep.subr.mxu0 0.0
        %1458 = vmatpush2.msra.mxu0 0.0
        %1459 = vmatprep.subr.mxu0 0.0
        %1460 = vmatpush2.msra.mxu0 0.0
        %1461 = vmatprep.subr.mxu0 0.0
        %1462 = vmatpush2.msra.mxu0 0.0
        %1463 = vmatprep.subr.mxu0 0.0
        %1464 = vmatpush2.msra.mxu0 0.0
        %1465 = vmatprep.subr.mxu0 0.0
        %1466 = vmatpush2.msra.mxu0 0.0
        %1467 = vmatprep.subr.mxu0 0.0
        %1468 = vmatpush2.msra.mxu0 0.0
        %1469 = vmatprep.subr.mxu0 0.0
        %1470 = vmatpush2.msra.mxu0 0.0
        %1471 = vmatprep.subr.mxu0 0.0
        %1472 = vmatpush2.msra.mxu0 0.0
        %1473 = vmatprep.subr.mxu0 0.0
        %1474 = vmatpush2.msra.mxu0 0.0
        %1475 = vmatprep.subr.mxu0 0.0
        %1476 = vmatpush2.msra.mxu0 0.0
        %1477 = vmatprep.mubr.f32.mxu0 0.0
        %1478 = vmatmul.mubr.f32.gmra.mxu0 %v1389
        %v1479 = vpop.f32.mrf.mxu0
        %v1480 = vadd.f32 %v1411, %v1479
        %v1481 = vpop.f32.mrf.mxu0
        %1482 = vdwg.mxu0
        %v1483 = vadd.f32 %v840, %v1480
        %v1484 = vld [vmem:[%s8] sm:$0x1]
        %v1485 = vld [vmem:[%s9] sm:$0x1]
        %1486 = vadd.xlane.f32.xlu0 %v1483
        %v1487 = vpop.xlane.xlu0 %1486
        %v1488 = vmul.f32 %v1487, %v817
        %v1489 = vsub.f32 %v1483, %v1488
        %v1490 = vmul.f32 %v1489, %v1489
        %1491 = vadd.xlane.f32.xlu0 %v1490
        %v1492 = vpop.xlane.xlu0 %1491
        %v1493 = vmul.f32 %v1492, %v817
        %v1494 = vadd.f32 %v1493, 1e-12
        %v1495 = vrsqrt.pop %v1494
        %v1496 = vmul.f32 %v1489, %v1495
        %v1498 = vlaneseq
        %v1499 = vshrl.u32 %v1498, 7
        %v1500 = vsub.s32 0, %v1499
        %v1501 = vrot.slane %v1484, %v1500
        %v1503 = vmul.f32 %v1496, %v1501
        %v1505 = vlaneseq
        %v1506 = vshrl.u32 %v1505, 7
        %v1507 = vsub.s32 0, %v1506
        %v1508 = vrot.slane %v1485, %v1507
        %v1510 = vadd.f32 %v1503, %v1508
        %v1511 = vld [vmem:[#allocation12] sm:$0xff]
        %v1512 = vld [vmem:[#allocation12 + $0x8] sm:$0xff]
        %v1513 = vld [vmem:[#allocation12 + $0x10] sm:$0xff]
        %v1514 = vld [vmem:[#allocation12 + $0x18] sm:$0xff]
        %v1515 = vld [vmem:[#allocation12 + $0x20] sm:$0xff]
        %v1516 = vld [vmem:[#allocation12 + $0x28] sm:$0xff]
        %v1517 = vld [vmem:[#allocation12 + $0x30] sm:$0xff]
        %v1518 = vld [vmem:[#allocation12 + $0x38] sm:$0xff]
        %v1519 = vld [vmem:[#allocation12 + $0x40] sm:$0xff]
        %v1520 = vld [vmem:[#allocation12 + $0x48] sm:$0xff]
        %v1521 = vld [vmem:[#allocation12 + $0x50] sm:$0xff]
        %v1522 = vld [vmem:[#allocation12 + $0x58] sm:$0xff]
        %v1523 = vld [vmem:[#allocation12 + $0x60] sm:$0xff]
        %v1524 = vld [vmem:[#allocation12 + $0x68] sm:$0xff]
        %v1525 = vld [vmem:[#allocation12 + $0x70] sm:$0xff]
        %v1526 = vld [vmem:[#allocation12 + $0x78] sm:$0xff]
        %v1527 = vld [vmem:[%s11] sm:$0x1]
        %v1529 = vlaneseq
        %v1530 = vshrl.u32 %v1529, 7
        %v1531 = vsub.s32 0, %v1530
        %v1532 = vrot.slane %v1527, %v1531
        %1534 = vmatprep.subr.mxu0 0.0
        %1535 = vmatpush1.msra.mxu0 %v1526
        %1536 = vmatprep.subr.mxu0 0.0
        %1537 = vmatpush1.msra.mxu0 %v1525
        %1538 = vmatprep.subr.mxu0 0.0
        %1539 = vmatpush1.msra.mxu0 %v1524
        %1540 = vmatprep.subr.mxu0 0.0
        %1541 = vmatpush1.msra.mxu0 %v1523
        %1542 = vmatprep.subr.mxu0 0.0
        %1543 = vmatpush1.msra.mxu0 %v1522
        %1544 = vmatprep.subr.mxu0 0.0
        %1545 = vmatpush1.msra.mxu0 %v1521
        %1546 = vmatprep.subr.mxu0 0.0
        %1547 = vmatpush1.msra.mxu0 %v1520
        %1548 = vmatprep.subr.mxu0 0.0
        %1549 = vmatpush1.msra.mxu0 %v1519
        %1550 = vmatprep.subr.mxu0 0.0
        %1551 = vmatpush1.msra.mxu0 %v1518
        %1552 = vmatprep.subr.mxu0 0.0
        %1553 = vmatpush1.msra.mxu0 %v1517
        %1554 = vmatprep.subr.mxu0 0.0
        %1555 = vmatpush1.msra.mxu0 %v1516
        %1556 = vmatprep.subr.mxu0 0.0
        %1557 = vmatpush1.msra.mxu0 %v1515
        %1558 = vmatprep.subr.mxu0 0.0
        %1559 = vmatpush1.msra.mxu0 %v1514
        %1560 = vmatprep.subr.mxu0 0.0
        %1561 = vmatpush1.msra.mxu0 %v1513
        %1562 = vmatprep.subr.mxu0 0.0
        %1563 = vmatpush1.msra.mxu0 %v1512
        %1564 = vmatprep.subr.mxu0 0.0
        %1565 = vmatpush1.msra.mxu0 %v1511
        %1566 = vmatprep.subr.mxu0 0.0
        %1567 = vmatpush2.msra.mxu0 0.0
        %1568 = vmatprep.subr.mxu0 0.0
        %1569 = vmatpush2.msra.mxu0 0.0
        %1570 = vmatprep.subr.mxu0 0.0
        %1571 = vmatpush2.msra.mxu0 0.0
        %1572 = vmatprep.subr.mxu0 0.0
        %1573 = vmatpush2.msra.mxu0 0.0
        %1574 = vmatprep.subr.mxu0 0.0
        %1575 = vmatpush2.msra.mxu0 0.0
        %1576 = vmatprep.subr.mxu0 0.0
        %1577 = vmatpush2.msra.mxu0 0.0
        %1578 = vmatprep.subr.mxu0 0.0
        %1579 = vmatpush2.msra.mxu0 0.0
        %1580 = vmatprep.subr.mxu0 0.0
        %1581 = vmatpush2.msra.mxu0 0.0
        %1582 = vmatprep.subr.mxu0 0.0
        %1583 = vmatpush2.msra.mxu0 0.0
        %1584 = vmatprep.subr.mxu0 0.0
        %1585 = vmatpush2.msra.mxu0 0.0
        %1586 = vmatprep.subr.mxu0 0.0
        %1587 = vmatpush2.msra.mxu0 0.0
        %1588 = vmatprep.subr.mxu0 0.0
        %1589 = vmatpush2.msra.mxu0 0.0
        %1590 = vmatprep.subr.mxu0 0.0
        %1591 = vmatpush2.msra.mxu0 0.0
        %1592 = vmatprep.subr.mxu0 0.0
        %1593 = vmatpush2.msra.mxu0 0.0
        %1594 = vmatprep.subr.mxu0 0.0
        %1595 = vmatpush2.msra.mxu0 0.0
        %1596 = vmatprep.subr.mxu0 0.0
        %1597 = vmatpush2.msra.mxu0 0.0
        %1598 = vmatprep.mubr.f32.mxu0 0.0
        %1599 = vmatmul.mubr.f32.gmra.mxu0 %v1510
        %v1600 = vpop.f32.mrf.mxu0
        %v1601 = vadd.f32 %v1532, %v1600
        %v1602 = vpop.f32.mrf.mxu0
        %1603 = vdwg.mxu0
        %v1604 = vmul.f32 %v1601, 0.5
        %v1605 = vmul.f32 %v1601, 0.044715
        %v1606 = vmul.f32 %v1605, %v1601
        %v1607 = vmul.f32 %v1606, %v1601
        %v1608 = vadd.f32 %v1601, %v1607
        %v1609 = vmul.f32 %v1608, 0.7978846
        %v1610 = vtanh.pop %v1609
        %v1611 = vadd.f32 %v1610, 1.0
        %v1612 = vmul.f32 %v1604, %v1611
        %v1613 = vld [vmem:[#allocation14] sm:$0xff]
        %v1614 = vld [vmem:[#allocation14 + $0x8] sm:$0xff]
        %v1615 = vld [vmem:[#allocation14 + $0x10] sm:$0xff]
        %v1616 = vld [vmem:[#allocation14 + $0x18] sm:$0xff]
        %v1617 = vld [vmem:[#allocation14 + $0x20] sm:$0xff]
        %v1618 = vld [vmem:[#allocation14 + $0x28] sm:$0xff]
        %v1619 = vld [vmem:[#allocation14 + $0x30] sm:$0xff]
        %v1620 = vld [vmem:[#allocation14 + $0x38] sm:$0xff]
        %v1621 = vld [vmem:[#allocation14 + $0x40] sm:$0xff]
        %v1622 = vld [vmem:[#allocation14 + $0x48] sm:$0xff]
        %v1623 = vld [vmem:[#allocation14 + $0x50] sm:$0xff]
        %v1624 = vld [vmem:[#allocation14 + $0x58] sm:$0xff]
        %v1625 = vld [vmem:[#allocation14 + $0x60] sm:$0xff]
        %v1626 = vld [vmem:[#allocation14 + $0x68] sm:$0xff]
        %v1627 = vld [vmem:[#allocation14 + $0x70] sm:$0xff]
        %v1628 = vld [vmem:[#allocation14 + $0x78] sm:$0xff]
        %v1629 = vld [vmem:[%s13] sm:$0x1]
        %v1631 = vlaneseq
        %v1632 = vshrl.u32 %v1631, 7
        %v1633 = vsub.s32 0, %v1632
        %v1634 = vrot.slane %v1629, %v1633
        %1636 = vmatprep.subr.mxu0 0.0
        %1637 = vmatpush1.msra.mxu0 %v1628
        %1638 = vmatprep.subr.mxu0 0.0
        %1639 = vmatpush1.msra.mxu0 %v1627
        %1640 = vmatprep.subr.mxu0 0.0
        %1641 = vmatpush1.msra.mxu0 %v1626
        %1642 = vmatprep.subr.mxu0 0.0
        %1643 = vmatpush1.msra.mxu0 %v1625
        %1644 = vmatprep.subr.mxu0 0.0
        %1645 = vmatpush1.msra.mxu0 %v1624
        %1646 = vmatprep.subr.mxu0 0.0
        %1647 = vmatpush1.msra.mxu0 %v1623
        %1648 = vmatprep.subr.mxu0 0.0
        %1649 = vmatpush1.msra.mxu0 %v1622
        %1650 = vmatprep.subr.mxu0 0.0
        %1651 = vmatpush1.msra.mxu0 %v1621
        %1652 = vmatprep.subr.mxu0 0.0
        %1653 = vmatpush1.msra.mxu0 %v1620
        %1654 = vmatprep.subr.mxu0 0.0
        %1655 = vmatpush1.msra.mxu0 %v1619
        %1656 = vmatprep.subr.mxu0 0.0
        %1657 = vmatpush1.msra.mxu0 %v1618
        %1658 = vmatprep.subr.mxu0 0.0
        %1659 = vmatpush1.msra.mxu0 %v1617
        %1660 = vmatprep.subr.mxu0 0.0
        %1661 = vmatpush1.msra.mxu0 %v1616
        %1662 = vmatprep.subr.mxu0 0.0
        %1663 = vmatpush1.msra.mxu0 %v1615
        %1664 = vmatprep.subr.mxu0 0.0
        %1665 = vmatpush1.msra.mxu0 %v1614
        %1666 = vmatprep.subr.mxu0 0.0
        %1667 = vmatpush1.msra.mxu0 %v1613
        %1668 = vmatprep.subr.mxu0 0.0
        %1669 = vmatpush2.msra.mxu0 0.0
        %1670 = vmatprep.subr.mxu0 0.0
        %1671 = vmatpush2.msra.mxu0 0.0
        %1672 = vmatprep.subr.mxu0 0.0
        %1673 = vmatpush2.msra.mxu0 0.0
        %1674 = vmatprep.subr.mxu0 0.0
        %1675 = vmatpush2.msra.mxu0 0.0
        %1676 = vmatprep.subr.mxu0 0.0
        %1677 = vmatpush2.msra.mxu0 0.0
        %1678 = vmatprep.subr.mxu0 0.0
        %1679 = vmatpush2.msra.mxu0 0.0
        %1680 = vmatprep.subr.mxu0 0.0
        %1681 = vmatpush2.msra.mxu0 0.0
        %1682 = vmatprep.subr.mxu0 0.0
        %1683 = vmatpush2.msra.mxu0 0.0
        %1684 = vmatprep.subr.mxu0 0.0
        %1685 = vmatpush2.msra.mxu0 0.0
        %1686 = vmatprep.subr.mxu0 0.0
        %1687 = vmatpush2.msra.mxu0 0.0
        %1688 = vmatprep.subr.mxu0 0.0
        %1689 = vmatpush2.msra.mxu0 0.0
        %1690 = vmatprep.subr.mxu0 0.0
        %1691 = vmatpush2.msra.mxu0 0.0
        %1692 = vmatprep.subr.mxu0 0.0
        %1693 = vmatpush2.msra.mxu0 0.0
        %1694 = vmatprep.subr.mxu0 0.0
        %1695 = vmatpush2.msra.mxu0 0.0
        %1696 = vmatprep.subr.mxu0 0.0
        %1697 = vmatpush2.msra.mxu0 0.0
        %1698 = vmatprep.subr.mxu0 0.0
        %1699 = vmatpush2.msra.mxu0 0.0
        %1700 = vmatprep.mubr.f32.mxu0 0.0
        %1701 = vmatmul.mubr.f32.gmra.mxu0 %v1612
        %v1702 = vpop.f32.mrf.mxu0
        %v1703 = vadd.f32 %v1634, %v1702
        %v1704 = vpop.f32.mrf.mxu0
        %1705 = vdwg.mxu0
        %v1706 = vadd.f32 %v1510, %v1703
        %v1707 = vld [vmem:[%s14] sm:$0x1]
        %v1708 = vld [vmem:[%s15] sm:$0x1]
        %1709 = vadd.xlane.f32.xlu0 %v1706
        %v1710 = vpop.xlane.xlu0 %1709
        %v1711 = vmul.f32 %v1710, %v817
        %v1712 = vsub.f32 %v1706, %v1711
        %v1713 = vmul.f32 %v1712, %v1712
        %1714 = vadd.xlane.f32.xlu0 %v1713
        %v1715 = vpop.xlane.xlu0 %1714
        %v1716 = vmul.f32 %v1715, %v817
        %v1717 = vadd.f32 %v1716, 1e-12
        %v1718 = vrsqrt.pop %v1717
        %v1719 = vmul.f32 %v1712, %v1718
        %v1721 = vlaneseq
        %v1722 = vshrl.u32 %v1721, 7
        %v1723 = vsub.s32 0, %v1722
        %v1724 = vrot.slane %v1707, %v1723
        %v1726 = vmul.f32 %v1719, %v1724
        %v1728 = vlaneseq
        %v1729 = vshrl.u32 %v1728, 7
        %v1730 = vsub.s32 0, %v1729
        %v1731 = vrot.slane %v1708, %v1730
        %v1733 = vadd.f32 %v1726, %v1731
        %s1734 = scalar_lea.vmem [#allocation9], 384
        %v1735 = vld [vmem:[%s1734] sm:$0xff]
        %v1736 = vld [vmem:[%s1734 + $0x8] sm:$0xff]
        %v1737 = vld [vmem:[%s1734 + $0x10] sm:$0xff]
        %v1738 = vld [vmem:[%s1734 + $0x18] sm:$0xff]
        %v1739 = vld [vmem:[%s1734 + $0x20] sm:$0xff]
        %v1740 = vld [vmem:[%s1734 + $0x28] sm:$0xff]
        %v1741 = vld [vmem:[%s1734 + $0x30] sm:$0xff]
        %v1742 = vld [vmem:[%s1734 + $0x38] sm:$0xff]
        %v1743 = vld [vmem:[%s1734 + $0x40] sm:$0xff]
        %v1744 = vld [vmem:[%s1734 + $0x48] sm:$0xff]
        %v1745 = vld [vmem:[%s1734 + $0x50] sm:$0xff]
        %v1746 = vld [vmem:[%s1734 + $0x58] sm:$0xff]
        %v1747 = vld [vmem:[%s1734 + $0x60] sm:$0xff]
        %v1748 = vld [vmem:[%s1734 + $0x68] sm:$0xff]
        %v1749 = vld [vmem:[%s1734 + $0x70] sm:$0xff]
        %v1750 = vld [vmem:[%s1734 + $0x78] sm:$0xff]
        %v1751 = vld [vmem:[%s1734 + $0x80] sm:$0xff]
        %v1752 = vld [vmem:[%s1734 + $0x88] sm:$0xff]
        %v1753 = vld [vmem:[%s1734 + $0x90] sm:$0xff]
        %v1754 = vld [vmem:[%s1734 + $0x98] sm:$0xff]
        %v1755 = vld [vmem:[%s1734 + $0xa0] sm:$0xff]
        %v1756 = vld [vmem:[%s1734 + $0xa8] sm:$0xff]
        %v1757 = vld [vmem:[%s1734 + $0xb0] sm:$0xff]
        %v1758 = vld [vmem:[%s1734 + $0xb8] sm:$0xff]
        %v1759 = vld [vmem:[%s1734 + $0xc0] sm:$0xff]
        %v1760 = vld [vmem:[%s1734 + $0xc8] sm:$0xff]
        %v1761 = vld [vmem:[%s1734 + $0xd0] sm:$0xff]
        %v1762 = vld [vmem:[%s1734 + $0xd8] sm:$0xff]
        %v1763 = vld [vmem:[%s1734 + $0xe0] sm:$0xff]
        %v1764 = vld [vmem:[%s1734 + $0xe8] sm:$0xff]
        %v1765 = vld [vmem:[%s1734 + $0xf0] sm:$0xff]
        %v1766 = vld [vmem:[%s1734 + $0xf8] sm:$0xff]
        %v1767 = vld [vmem:[%s1734 + $0x100] sm:$0xff]
        %v1768 = vld [vmem:[%s1734 + $0x108] sm:$0xff]
        %v1769 = vld [vmem:[%s1734 + $0x110] sm:$0xff]
        %v1770 = vld [vmem:[%s1734 + $0x118] sm:$0xff]
        %v1771 = vld [vmem:[%s1734 + $0x120] sm:$0xff]
        %v1772 = vld [vmem:[%s1734 + $0x128] sm:$0xff]
        %v1773 = vld [vmem:[%s1734 + $0x130] sm:$0xff]
        %v1774 = vld [vmem:[%s1734 + $0x138] sm:$0xff]
        %v1775 = vld [vmem:[%s1734 + $0x140] sm:$0xff]
        %v1776 = vld [vmem:[%s1734 + $0x148] sm:$0xff]
        %v1777 = vld [vmem:[%s1734 + $0x150] sm:$0xff]
        %v1778 = vld [vmem:[%s1734 + $0x158] sm:$0xff]
        %v1779 = vld [vmem:[%s1734 + $0x160] sm:$0xff]
        %v1780 = vld [vmem:[%s1734 + $0x168] sm:$0xff]
        %v1781 = vld [vmem:[%s1734 + $0x170] sm:$0xff]
        %v1782 = vld [vmem:[%s1734 + $0x178] sm:$0xff]
        %s1783 = scalar_lea.vmem %s5, 3
        %v1784 = vld [vmem:[%s1783] sm:$0x7]
        %v1786 = vlaneseq
        %v1787 = vshrl.u32 %v1786, 7
        %v1788 = vsub.s32 0, %v1787
        %v1789 = vrot.slane %v1784, %v1788
        %v1790 = vlaneseq
        %v1791 = vshrl.u32 %v1790, 7
        %v1792 = vsub.s32 1, %v1791
        %v1793 = vrot.slane %v1784, %v1792
        %v1794 = vlaneseq
        %v1795 = vshrl.u32 %v1794, 7
        %v1796 = vsub.s32 2, %v1795
        %v1797 = vrot.slane %v1784, %v1796
        %1801 = vmatprep.subr.mxu0 %v1781
        %1802 = vmatpush1.msra.mxu0 %v1780
        %1803 = vmatprep.subr.mxu0 %v1778
        %1804 = vmatpush1.msra.mxu0 %v1777
        %1805 = vmatprep.subr.mxu0 %v1775
        %1806 = vmatpush1.msra.mxu0 %v1774
        %1807 = vmatprep.subr.mxu0 %v1772
        %1808 = vmatpush1.msra.mxu0 %v1771
        %1809 = vmatprep.subr.mxu0 %v1769
        %1810 = vmatpush1.msra.mxu0 %v1768
        %1811 = vmatprep.subr.mxu0 %v1766
        %1812 = vmatpush1.msra.mxu0 %v1765
        %1813 = vmatprep.subr.mxu0 %v1763
        %1814 = vmatpush1.msra.mxu0 %v1762
        %1815 = vmatprep.subr.mxu0 %v1760
        %1816 = vmatpush1.msra.mxu0 %v1759
        %1817 = vmatprep.subr.mxu0 %v1757
        %1818 = vmatpush1.msra.mxu0 %v1756
        %1819 = vmatprep.subr.mxu0 %v1754
        %1820 = vmatpush1.msra.mxu0 %v1753
        %1821 = vmatprep.subr.mxu0 %v1751
        %1822 = vmatpush1.msra.mxu0 %v1750
        %1823 = vmatprep.subr.mxu0 %v1748
        %1824 = vmatpush1.msra.mxu0 %v1747
        %1825 = vmatprep.subr.mxu0 %v1745
        %1826 = vmatpush1.msra.mxu0 %v1744
        %1827 = vmatprep.subr.mxu0 %v1742
        %1828 = vmatpush1.msra.mxu0 %v1741
        %1829 = vmatprep.subr.mxu0 %v1739
        %1830 = vmatpush1.msra.mxu0 %v1738
        %1831 = vmatprep.subr.mxu0 %v1736
        %1832 = vmatpush1.msra.mxu0 %v1735
        %1833 = vmatprep.subr.mxu0 0.0
        %1834 = vmatpush2.msra.mxu0 0.0
        %1835 = vmatprep.subr.mxu0 0.0
        %1836 = vmatpush2.msra.mxu0 0.0
        %1837 = vmatprep.subr.mxu0 0.0
        %1838 = vmatpush2.msra.mxu0 0.0
        %1839 = vmatprep.subr.mxu0 0.0
        %1840 = vmatpush2.msra.mxu0 0.0
        %1841 = vmatprep.subr.mxu0 0.0
        %1842 = vmatpush2.msra.mxu0 0.0
        %1843 = vmatprep.subr.mxu0 0.0
        %1844 = vmatpush2.msra.mxu0 0.0
        %1845 = vmatprep.subr.mxu0 0.0
        %1846 = vmatpush2.msra.mxu0 0.0
        %1847 = vmatprep.subr.mxu0 0.0
        %1848 = vmatpush2.msra.mxu0 0.0
        %1849 = vmatprep.subr.mxu0 0.0
        %1850 = vmatpush2.msra.mxu0 0.0
        %1851 = vmatprep.subr.mxu0 0.0
        %1852 = vmatpush2.msra.mxu0 0.0
        %1853 = vmatprep.subr.mxu0 0.0
        %1854 = vmatpush2.msra.mxu0 0.0
        %1855 = vmatprep.subr.mxu0 0.0
        %1856 = vmatpush2.msra.mxu0 0.0
        %1857 = vmatprep.subr.mxu0 0.0
        %1858 = vmatpush2.msra.mxu0 0.0
        %1859 = vmatprep.subr.mxu0 0.0
        %1860 = vmatpush2.msra.mxu0 0.0
        %1861 = vmatprep.subr.mxu0 0.0
        %1862 = vmatpush2.msra.mxu0 0.0
        %1863 = vmatprep.subr.mxu0 0.0
        %1864 = vmatpush2.msra.mxu0 0.0
        %1865 = vmatprep.mubr.f32.mxu0 0.0
        %1866 = vmatmul.mubr.f32.gmra.mxu0 %v1733
        %v1867 = vpop.f32.mrf.mxu0
        %v1868 = vadd.f32 %v1789, %v1867
        %v1869 = vpop.f32.mrf.mxu0
        %v1870 = vadd.f32 %v1793, %v1869
        %1871 = vdwg.mxu0
        %1872 = vmatprep.subr.mxu0 0.0
        %1873 = vmatpush1.msra.mxu0 %v1782
        %1874 = vmatprep.subr.mxu0 0.0
        %1875 = vmatpush1.msra.mxu0 %v1779
        %1876 = vmatprep.subr.mxu0 0.0
        %1877 = vmatpush1.msra.mxu0 %v1776
        %1878 = vmatprep.subr.mxu0 0.0
        %1879 = vmatpush1.msra.mxu0 %v1773
        %1880 = vmatprep.subr.mxu0 0.0
        %1881 = vmatpush1.msra.mxu0 %v1770
        %1882 = vmatprep.subr.mxu0 0.0
        %1883 = vmatpush1.msra.mxu0 %v1767
        %1884 = vmatprep.subr.mxu0 0.0
        %1885 = vmatpush1.msra.mxu0 %v1764
        %1886 = vmatprep.subr.mxu0 0.0
        %1887 = vmatpush1.msra.mxu0 %v1761
        %1888 = vmatprep.subr.mxu0 0.0
        %1889 = vmatpush1.msra.mxu0 %v1758
        %1890 = vmatprep.subr.mxu0 0.0
        %1891 = vmatpush1.msra.mxu0 %v1755
        %1892 = vmatprep.subr.mxu0 0.0
        %1893 = vmatpush1.msra.mxu0 %v1752
        %1894 = vmatprep.subr.mxu0 0.0
        %1895 = vmatpush1.msra.mxu0 %v1749
        %1896 = vmatprep.subr.mxu0 0.0
        %1897 = vmatpush1.msra.mxu0 %v1746
        %1898 = vmatprep.subr.mxu0 0.0
        %1899 = vmatpush1.msra.mxu0 %v1743
        %1900 = vmatprep.subr.mxu0 0.0
        %1901 = vmatpush1.msra.mxu0 %v1740
        %1902 = vmatprep.subr.mxu0 0.0
        %1903 = vmatpush1.msra.mxu0 %v1737
        %1904 = vmatprep.subr.mxu0 0.0
        %1905 = vmatpush2.msra.mxu0 0.0
        %1906 = vmatprep.subr.mxu0 0.0
        %1907 = vmatpush2.msra.mxu0 0.0
        %1908 = vmatprep.subr.mxu0 0.0
        %1909 = vmatpush2.msra.mxu0 0.0
        %1910 = vmatprep.subr.mxu0 0.0
        %1911 = vmatpush2.msra.mxu0 0.0
        %1912 = vmatprep.subr.mxu0 0.0
        %1913 = vmatpush2.msra.mxu0 0.0
        %1914 = vmatprep.subr.mxu0 0.0
        %1915 = vmatpush2.msra.mxu0 0.0
        %1916 = vmatprep.subr.mxu0 0.0
        %1917 = vmatpush2.msra.mxu0 0.0
        %1918 = vmatprep.subr.mxu0 0.0
        %1919 = vmatpush2.msra.mxu0 0.0
        %1920 = vmatprep.subr.mxu0 0.0
        %1921 = vmatpush2.msra.mxu0 0.0
        %1922 = vmatprep.subr.mxu0 0.0
        %1923 = vmatpush2.msra.mxu0 0.0
        %1924 = vmatprep.subr.mxu0 0.0
        %1925 = vmatpush2.msra.mxu0 0.0
        %1926 = vmatprep.subr.mxu0 0.0
        %1927 = vmatpush2.msra.mxu0 0.0
        %1928 = vmatprep.subr.mxu0 0.0
        %1929 = vmatpush2.msra.mxu0 0.0
        %1930 = vmatprep.subr.mxu0 0.0
        %1931 = vmatpush2.msra.mxu0 0.0
        %1932 = vmatprep.subr.mxu0 0.0
        %1933 = vmatpush2.msra.mxu0 0.0
        %1934 = vmatprep.subr.mxu0 0.0
        %1935 = vmatpush2.msra.mxu0 0.0
        %1936 = vmatprep.mubr.f32.mxu0 0.0
        %1937 = vmatmul.mubr.f32.gmra.mxu0 %v1733
        %v1938 = vpop.f32.mrf.mxu0
        %v1939 = vadd.f32 %v1797, %v1938
        %v1940 = vpop.f32.mrf.mxu0
        %1941 = vdwg.mxu0
        %1943 = vrot.lane.b32.xlu0 %v1868, 64
        %v1944 = vpop.permute.xlu0 %1943
        %1946 = vrot.lane.b32.xlu0 %v1870, 64
        %v1947 = vpop.permute.xlu0 %1946
        %1949 = vrot.lane.b32.xlu0 %v1939, 64
        %v1950 = vpop.permute.xlu0 %1949
        %v1952 = vsel %vm1057, %v1868, 0
        %v1954 = vsel %vm1057, %v1870, 0
        %1956 = vmatprep.subr.mxu0 0.0
        %1957 = vmatpush1.xpose.msra.mxu0 0.0
        %1958 = vmatprep.subr.mxu0 0.0
        %1959 = vmatpush1.xpose.msra.mxu0 0.0
        %1960 = vmatprep.subr.mxu0 0.0
        %1961 = vmatpush1.xpose.msra.mxu0 0.0
        %1962 = vmatprep.subr.mxu0 0.0
        %1963 = vmatpush1.xpose.msra.mxu0 0.0
        %1964 = vmatprep.subr.mxu0 0.0
        %1965 = vmatpush1.xpose.msra.mxu0 0.0
        %1966 = vmatprep.subr.mxu0 0.0
        %1967 = vmatpush1.xpose.msra.mxu0 0.0
        %1968 = vmatprep.subr.mxu0 0.0
        %1969 = vmatpush1.xpose.msra.mxu0 0.0
        %1970 = vmatprep.subr.mxu0 0.0
        %1971 = vmatpush1.xpose.msra.mxu0 0.0
        %1972 = vmatprep.subr.mxu0 0.0
        %1973 = vmatpush1.xpose.msra.mxu0 0.0
        %1974 = vmatprep.subr.mxu0 0.0
        %1975 = vmatpush1.xpose.msra.mxu0 0.0
        %1976 = vmatprep.subr.mxu0 0.0
        %1977 = vmatpush1.xpose.msra.mxu0 0.0
        %1978 = vmatprep.subr.mxu0 0.0
        %1979 = vmatpush1.xpose.msra.mxu0 0.0
        %1980 = vmatprep.subr.mxu0 0.0
        %1981 = vmatpush1.xpose.msra.mxu0 0.0
        %1982 = vmatprep.subr.mxu0 0.0
        %1983 = vmatpush1.xpose.msra.mxu0 0.0
        %1984 = vmatprep.subr.mxu0 0.0
        %1985 = vmatpush1.xpose.msra.mxu0 0.0
        %1986 = vmatprep.subr.mxu0 0.0
        %1987 = vmatpush1.xpose.msra.mxu0 %v1954
        %1988 = vmatprep.subr.mxu0 0.0
        %1989 = vmatpush2.xpose.msra.mxu0 0.0
        %1990 = vmatprep.subr.mxu0 0.0
        %1991 = vmatpush2.xpose.msra.mxu0 0.0
        %1992 = vmatprep.subr.mxu0 0.0
        %1993 = vmatpush2.xpose.msra.mxu0 0.0
        %1994 = vmatprep.subr.mxu0 0.0
        %1995 = vmatpush2.xpose.msra.mxu0 0.0
        %1996 = vmatprep.subr.mxu0 0.0
        %1997 = vmatpush2.xpose.msra.mxu0 0.0
        %1998 = vmatprep.subr.mxu0 0.0
        %1999 = vmatpush2.xpose.msra.mxu0 0.0
        %2000 = vmatprep.subr.mxu0 0.0
        %2001 = vmatpush2.xpose.msra.mxu0 0.0
        %2002 = vmatprep.subr.mxu0 0.0
        %2003 = vmatpush2.xpose.msra.mxu0 0.0
        %2004 = vmatprep.subr.mxu0 0.0
        %2005 = vmatpush2.xpose.msra.mxu0 0.0
        %2006 = vmatprep.subr.mxu0 0.0
        %2007 = vmatpush2.xpose.msra.mxu0 0.0
        %2008 = vmatprep.subr.mxu0 0.0
        %2009 = vmatpush2.xpose.msra.mxu0 0.0
        %2010 = vmatprep.subr.mxu0 0.0
        %2011 = vmatpush2.xpose.msra.mxu0 0.0
        %2012 = vmatprep.subr.mxu0 0.0
        %2013 = vmatpush2.xpose.msra.mxu0 0.0
        %2014 = vmatprep.subr.mxu0 0.0
        %2015 = vmatpush2.xpose.msra.mxu0 0.0
        %2016 = vmatprep.subr.mxu0 0.0
        %2017 = vmatpush2.xpose.msra.mxu0 0.0
        %2018 = vmatprep.subr.mxu0 0.0
        %2019 = vmatpush2.xpose.msra.mxu0 0.0
        %2020 = vmatprep.mubr.f32.mxu0 0.0
        %2021 = vmatmul.mubr.f32.gmra.mxu0 %v1952
        %v2022 = vpop.f32.mrf.mxu0
        %v2023 = vadd.f32 0.0, %v2022
        %v2024 = vpop.f32.mrf.mxu0
        %2025 = vdwg.mxu0
        %v2026 = vsel %vm1057, %v1944, 0
        %v2028 = vsel %vm1057, %v1947, 0
        %2030 = vmatprep.subr.mxu0 0.0
        %2031 = vmatpush1.xpose.msra.mxu0 0.0
        %2032 = vmatprep.subr.mxu0 0.0
        %2033 = vmatpush1.xpose.msra.mxu0 0.0
        %2034 = vmatprep.subr.mxu0 0.0
        %2035 = vmatpush1.xpose.msra.mxu0 0.0
        %2036 = vmatprep.subr.mxu0 0.0
        %2037 = vmatpush1.xpose.msra.mxu0 0.0
        %2038 = vmatprep.subr.mxu0 0.0
        %2039 = vmatpush1.xpose.msra.mxu0 0.0
        %2040 = vmatprep.subr.mxu0 0.0
        %2041 = vmatpush1.xpose.msra.mxu0 0.0
        %2042 = vmatprep.subr.mxu0 0.0
        %2043 = vmatpush1.xpose.msra.mxu0 0.0
        %2044 = vmatprep.subr.mxu0 0.0
        %2045 = vmatpush1.xpose.msra.mxu0 0.0
        %2046 = vmatprep.subr.mxu0 0.0
        %2047 = vmatpush1.xpose.msra.mxu0 0.0
        %2048 = vmatprep.subr.mxu0 0.0
        %2049 = vmatpush1.xpose.msra.mxu0 0.0
        %2050 = vmatprep.subr.mxu0 0.0
        %2051 = vmatpush1.xpose.msra.mxu0 0.0
        %2052 = vmatprep.subr.mxu0 0.0
        %2053 = vmatpush1.xpose.msra.mxu0 0.0
        %2054 = vmatprep.subr.mxu0 0.0
        %2055 = vmatpush1.xpose.msra.mxu0 0.0
        %2056 = vmatprep.subr.mxu0 0.0
        %2057 = vmatpush1.xpose.msra.mxu0 0.0
        %2058 = vmatprep.subr.mxu0 0.0
        %2059 = vmatpush1.xpose.msra.mxu0 0.0
        %2060 = vmatprep.subr.mxu0 0.0
        %2061 = vmatpush1.xpose.msra.mxu0 %v2028
        %2062 = vmatprep.subr.mxu0 0.0
        %2063 = vmatpush2.xpose.msra.mxu0 0.0
        %2064 = vmatprep.subr.mxu0 0.0
        %2065 = vmatpush2.xpose.msra.mxu0 0.0
        %2066 = vmatprep.subr.mxu0 0.0
        %2067 = vmatpush2.xpose.msra.mxu0 0.0
        %2068 = vmatprep.subr.mxu0 0.0
        %2069 = vmatpush2.xpose.msra.mxu0 0.0
        %2070 = vmatprep.subr.mxu0 0.0
        %2071 = vmatpush2.xpose.msra.mxu0 0.0
        %2072 = vmatprep.subr.mxu0 0.0
        %2073 = vmatpush2.xpose.msra.mxu0 0.0
        %2074 = vmatprep.subr.mxu0 0.0
        %2075 = vmatpush2.xpose.msra.mxu0 0.0
        %2076 = vmatprep.subr.mxu0 0.0
        %2077 = vmatpush2.xpose.msra.mxu0 0.0
        %2078 = vmatprep.subr.mxu0 0.0
        %2079 = vmatpush2.xpose.msra.mxu0 0.0
        %2080 = vmatprep.subr.mxu0 0.0
        %2081 = vmatpush2.xpose.msra.mxu0 0.0
        %2082 = vmatprep.subr.mxu0 0.0
        %2083 = vmatpush2.xpose.msra.mxu0 0.0
        %2084 = vmatprep.subr.mxu0 0.0
        %2085 = vmatpush2.xpose.msra.mxu0 0.0
        %2086 = vmatprep.subr.mxu0 0.0
        %2087 = vmatpush2.xpose.msra.mxu0 0.0
        %2088 = vmatprep.subr.mxu0 0.0
        %2089 = vmatpush2.xpose.msra.mxu0 0.0
        %2090 = vmatprep.subr.mxu0 0.0
        %2091 = vmatpush2.xpose.msra.mxu0 0.0
        %2092 = vmatprep.subr.mxu0 0.0
        %2093 = vmatpush2.xpose.msra.mxu0 0.0
        %2094 = vmatprep.mubr.f32.mxu0 0.0
        %2095 = vmatmul.mubr.f32.gmra.mxu0 %v2026
        %v2096 = vpop.f32.mrf.mxu0
        %v2097 = vadd.f32 0.0, %v2096
        %v2098 = vpop.f32.mrf.mxu0
        %2099 = vdwg.mxu0
        %v2100 = vmul.f32 %v2023, 0.125
        %v2101 = vmul.f32 %v2097, 0.125
        %v2102 = vadd.f32 %v2100, %v1212
        %v2103 = vadd.f32 %v2101, %v1212
        %v2104 = vsel %vm1216, %v2102, -inf
        %2105 = vmax.xlane.f32.xlu0 %v2104
        %v2106 = vpop.xlane.xlu0 %2105
        %v2107 = vsel %vm1216, %v2103, -inf
        %2108 = vmax.xlane.f32.xlu0 %v2107
        %v2109 = vpop.xlane.xlu0 %2108
        %v2110 = vsub.f32 %v2102, %v2106
        %v2111 = vsub.f32 %v2103, %v2109
        %v2112 = vmul.f32 %v2110, 1.442695
        %v2113 = vpow.pop %v2112
        %v2114 = vmul.f32 %v2111, 1.442695
        %v2115 = vpow.pop %v2114
        %v2116 = vsel %vm1216, %v2113, 0.0
        %2117 = vadd.xlane.f32.xlu0 %v2116
        %v2118 = vpop.xlane.xlu0 %2117
        %v2119 = vsel %vm1216, %v2115, 0.0
        %2120 = vadd.xlane.f32.xlu0 %v2119
        %v2121 = vpop.xlane.xlu0 %2120
        %v2122 = vrcp.pop %v2118
        %v2123 = vrcp.pop %v2121
        %v2124 = vmul.f32 %v2113, %v2122
        %v2125 = vmul.f32 %v2115, %v2123
        %v2127 = vsel %vm1216, %v2124, 0
        %2129 = vmatprep.subr.mxu0 0.0
        %2130 = vmatpush1.msra.mxu0 0.0
        %2131 = vmatprep.subr.mxu0 0.0
        %2132 = vmatpush1.msra.mxu0 0.0
        %2133 = vmatprep.subr.mxu0 0.0
        %2134 = vmatpush1.msra.mxu0 0.0
        %2135 = vmatprep.subr.mxu0 0.0
        %2136 = vmatpush1.msra.mxu0 0.0
        %2137 = vmatprep.subr.mxu0 0.0
        %2138 = vmatpush1.msra.mxu0 0.0
        %2139 = vmatprep.subr.mxu0 0.0
        %2140 = vmatpush1.msra.mxu0 0.0
        %2141 = vmatprep.subr.mxu0 0.0
        %2142 = vmatpush1.msra.mxu0 0.0
        %2143 = vmatprep.subr.mxu0 0.0
        %2144 = vmatpush1.msra.mxu0 0.0
        %2145 = vmatprep.subr.mxu0 0.0
        %2146 = vmatpush1.msra.mxu0 0.0
        %2147 = vmatprep.subr.mxu0 0.0
        %2148 = vmatpush1.msra.mxu0 0.0
        %2149 = vmatprep.subr.mxu0 0.0
        %2150 = vmatpush1.msra.mxu0 0.0
        %2151 = vmatprep.subr.mxu0 0.0
        %2152 = vmatpush1.msra.mxu0 0.0
        %2153 = vmatprep.subr.mxu0 0.0
        %2154 = vmatpush1.msra.mxu0 0.0
        %2155 = vmatprep.subr.mxu0 0.0
        %2156 = vmatpush1.msra.mxu0 0.0
        %2157 = vmatprep.subr.mxu0 0.0
        %2158 = vmatpush1.msra.mxu0 0.0
        %2159 = vmatprep.subr.mxu0 0.0
        %2160 = vmatpush1.msra.mxu0 %v1939
        %2161 = vmatprep.subr.mxu0 0.0
        %2162 = vmatpush2.msra.mxu0 0.0
        %2163 = vmatprep.subr.mxu0 0.0
        %2164 = vmatpush2.msra.mxu0 0.0
        %2165 = vmatprep.subr.mxu0 0.0
        %2166 = vmatpush2.msra.mxu0 0.0
        %2167 = vmatprep.subr.mxu0 0.0
        %2168 = vmatpush2.msra.mxu0 0.0
        %2169 = vmatprep.subr.mxu0 0.0
        %2170 = vmatpush2.msra.mxu0 0.0
        %2171 = vmatprep.subr.mxu0 0.0
        %2172 = vmatpush2.msra.mxu0 0.0
        %2173 = vmatprep.subr.mxu0 0.0
        %2174 = vmatpush2.msra.mxu0 0.0
        %2175 = vmatprep.subr.mxu0 0.0
        %2176 = vmatpush2.msra.mxu0 0.0
        %2177 = vmatprep.subr.mxu0 0.0
        %2178 = vmatpush2.msra.mxu0 0.0
        %2179 = vmatprep.subr.mxu0 0.0
        %2180 = vmatpush2.msra.mxu0 0.0
        %2181 = vmatprep.subr.mxu0 0.0
        %2182 = vmatpush2.msra.mxu0 0.0
        %2183 = vmatprep.subr.mxu0 0.0
        %2184 = vmatpush2.msra.mxu0 0.0
        %2185 = vmatprep.subr.mxu0 0.0
        %2186 = vmatpush2.msra.mxu0 0.0
        %2187 = vmatprep.subr.mxu0 0.0
        %2188 = vmatpush2.msra.mxu0 0.0
        %2189 = vmatprep.subr.mxu0 0.0
        %2190 = vmatpush2.msra.mxu0 0.0
        %2191 = vmatprep.subr.mxu0 0.0
        %2192 = vmatpush2.msra.mxu0 0.0
        %2193 = vmatprep.mubr.f32.mxu0 0.0
        %2194 = vmatmul.mubr.f32.gmra.mxu0 %v2127
        %v2195 = vpop.f32.mrf.mxu0
        %v2196 = vadd.f32 0.0, %v2195
        %v2197 = vpop.f32.mrf.mxu0
        %2198 = vdwg.mxu0
        %v2200 = vsel %vm1216, %v2125, 0
        %2202 = vmatprep.subr.mxu0 0.0
        %2203 = vmatpush1.msra.mxu0 0.0
        %2204 = vmatprep.subr.mxu0 0.0
        %2205 = vmatpush1.msra.mxu0 0.0
        %2206 = vmatprep.subr.mxu0 0.0
        %2207 = vmatpush1.msra.mxu0 0.0
        %2208 = vmatprep.subr.mxu0 0.0
        %2209 = vmatpush1.msra.mxu0 0.0
        %2210 = vmatprep.subr.mxu0 0.0
        %2211 = vmatpush1.msra.mxu0 0.0
        %2212 = vmatprep.subr.mxu0 0.0
        %2213 = vmatpush1.msra.mxu0 0.0
        %2214 = vmatprep.subr.mxu0 0.0
        %2215 = vmatpush1.msra.mxu0 0.0
        %2216 = vmatprep.subr.mxu0 0.0
        %2217 = vmatpush1.msra.mxu0 0.0
        %2218 = vmatprep.subr.mxu0 0.0
        %2219 = vmatpush1.msra.mxu0 0.0
        %2220 = vmatprep.subr.mxu0 0.0
        %2221 = vmatpush1.msra.mxu0 0.0
        %2222 = vmatprep.subr.mxu0 0.0
        %2223 = vmatpush1.msra.mxu0 0.0
        %2224 = vmatprep.subr.mxu0 0.0
        %2225 = vmatpush1.msra.mxu0 0.0
        %2226 = vmatprep.subr.mxu0 0.0
        %2227 = vmatpush1.msra.mxu0 0.0
        %2228 = vmatprep.subr.mxu0 0.0
        %2229 = vmatpush1.msra.mxu0 0.0
        %2230 = vmatprep.subr.mxu0 0.0
        %2231 = vmatpush1.msra.mxu0 0.0
        %2232 = vmatprep.subr.mxu0 0.0
        %2233 = vmatpush1.msra.mxu0 %v1950
        %2234 = vmatprep.subr.mxu0 0.0
        %2235 = vmatpush2.msra.mxu0 0.0
        %2236 = vmatprep.subr.mxu0 0.0
        %2237 = vmatpush2.msra.mxu0 0.0
        %2238 = vmatprep.subr.mxu0 0.0
        %2239 = vmatpush2.msra.mxu0 0.0
        %2240 = vmatprep.subr.mxu0 0.0
        %2241 = vmatpush2.msra.mxu0 0.0
        %2242 = vmatprep.subr.mxu0 0.0
        %2243 = vmatpush2.msra.mxu0 0.0
        %2244 = vmatprep.subr.mxu0 0.0
        %2245 = vmatpush2.msra.mxu0 0.0
        %2246 = vmatprep.subr.mxu0 0.0
        %2247 = vmatpush2.msra.mxu0 0.0
        %2248 = vmatprep.subr.mxu0 0.0
        %2249 = vmatpush2.msra.mxu0 0.0
        %2250 = vmatprep.subr.mxu0 0.0
        %2251 = vmatpush2.msra.mxu0 0.0
        %2252 = vmatprep.subr.mxu0 0.0
        %2253 = vmatpush2.msra.mxu0 0.0
        %2254 = vmatprep.subr.mxu0 0.0
        %2255 = vmatpush2.msra.mxu0 0.0
        %2256 = vmatprep.subr.mxu0 0.0
        %2257 = vmatpush2.msra.mxu0 0.0
        %2258 = vmatprep.subr.mxu0 0.0
        %2259 = vmatpush2.msra.mxu0 0.0
        %2260 = vmatprep.subr.mxu0 0.0
        %2261 = vmatpush2.msra.mxu0 0.0
        %2262 = vmatprep.subr.mxu0 0.0
        %2263 = vmatpush2.msra.mxu0 0.0
        %2264 = vmatprep.subr.mxu0 0.0
        %2265 = vmatpush2.msra.mxu0 0.0
        %2266 = vmatprep.mubr.f32.mxu0 0.0
        %2267 = vmatmul.mubr.f32.gmra.mxu0 %v2200
        %v2268 = vpop.f32.mrf.mxu0
        %v2269 = vadd.f32 0.0, %v2268
        %v2270 = vpop.f32.mrf.mxu0
        %2271 = vdwg.mxu0
        %2273 = vrot.lane.b32.xlu0 %v2269, 64
        %v2274 = vpop.permute.xlu0 %2273
        %v2276 = vsel %vm1057, %v2196, %v2274
        %s2277 = scalar_lea.vmem [#allocation11], 128
        %v2278 = vld [vmem:[%s2277] sm:$0xff]
        %v2279 = vld [vmem:[%s2277 + $0x8] sm:$0xff]
        %v2280 = vld [vmem:[%s2277 + $0x10] sm:$0xff]
        %v2281 = vld [vmem:[%s2277 + $0x18] sm:$0xff]
        %v2282 = vld [vmem:[%s2277 + $0x20] sm:$0xff]
        %v2283 = vld [vmem:[%s2277 + $0x28] sm:$0xff]
        %v2284 = vld [vmem:[%s2277 + $0x30] sm:$0xff]
        %v2285 = vld [vmem:[%s2277 + $0x38] sm:$0xff]
        %v2286 = vld [vmem:[%s2277 + $0x40] sm:$0xff]
        %v2287 = vld [vmem:[%s2277 + $0x48] sm:$0xff]
        %v2288 = vld [vmem:[%s2277 + $0x50] sm:$0xff]
        %v2289 = vld [vmem:[%s2277 + $0x58] sm:$0xff]
        %v2290 = vld [vmem:[%s2277 + $0x60] sm:$0xff]
        %v2291 = vld [vmem:[%s2277 + $0x68] sm:$0xff]
        %v2292 = vld [vmem:[%s2277 + $0x70] sm:$0xff]
        %v2293 = vld [vmem:[%s2277 + $0x78] sm:$0xff]
        %s2294 = scalar_lea.vmem %s7, 1
        %v2295 = vld [vmem:[%s2294] sm:$0x1]
        %v2297 = vlaneseq
        %v2298 = vshrl.u32 %v2297, 7
        %v2299 = vsub.s32 0, %v2298
        %v2300 = vrot.slane %v2295, %v2299
        %2302 = vmatprep.subr.mxu0 0.0
        %2303 = vmatpush1.msra.mxu0 %v2293
        %2304 = vmatprep.subr.mxu0 0.0
        %2305 = vmatpush1.msra.mxu0 %v2292
        %2306 = vmatprep.subr.mxu0 0.0
        %2307 = vmatpush1.msra.mxu0 %v2291
        %2308 = vmatprep.subr.mxu0 0.0
        %2309 = vmatpush1.msra.mxu0 %v2290
        %2310 = vmatprep.subr.mxu0 0.0
        %2311 = vmatpush1.msra.mxu0 %v2289
        %2312 = vmatprep.subr.mxu0 0.0
        %2313 = vmatpush1.msra.mxu0 %v2288
        %2314 = vmatprep.subr.mxu0 0.0
        %2315 = vmatpush1.msra.mxu0 %v2287
        %2316 = vmatprep.subr.mxu0 0.0
        %2317 = vmatpush1.msra.mxu0 %v2286
        %2318 = vmatprep.subr.mxu0 0.0
        %2319 = vmatpush1.msra.mxu0 %v2285
        %2320 = vmatprep.subr.mxu0 0.0
        %2321 = vmatpush1.msra.mxu0 %v2284
        %2322 = vmatprep.subr.mxu0 0.0
        %2323 = vmatpush1.msra.mxu0 %v2283
        %2324 = vmatprep.subr.mxu0 0.0
        %2325 = vmatpush1.msra.mxu0 %v2282
        %2326 = vmatprep.subr.mxu0 0.0
        %2327 = vmatpush1.msra.mxu0 %v2281
        %2328 = vmatprep.subr.mxu0 0.0
        %2329 = vmatpush1.msra.mxu0 %v2280
        %2330 = vmatprep.subr.mxu0 0.0
        %2331 = vmatpush1.msra.mxu0 %v2279
        %2332 = vmatprep.subr.mxu0 0.0
        %2333 = vmatpush1.msra.mxu0 %v2278
        %2334 = vmatprep.subr.mxu0 0.0
        %2335 = vmatpush2.msra.mxu0 0.0
        %2336 = vmatprep.subr.mxu0 0.0
        %2337 = vmatpush2.msra.mxu0 0.0
        %2338 = vmatprep.subr.mxu0 0.0
        %2339 = vmatpush2.msra.mxu0 0.0
        %2340 = vmatprep.subr.mxu0 0.0
        %2341 = vmatpush2.msra.mxu0 0.0
        %2342 = vmatprep.subr.mxu0 0.0
        %2343 = vmatpush2.msra.mxu0 0.0
        %2344 = vmatprep.subr.mxu0 0.0
        %2345 = vmatpush2.msra.mxu0 0.0
        %2346 = vmatprep.subr.mxu0 0.0
        %2347 = vmatpush2.msra.mxu0 0.0
        %2348 = vmatprep.subr.mxu0 0.0
        %2349 = vmatpush2.msra.mxu0 0.0
        %2350 = vmatprep.subr.mxu0 0.0
        %2351 = vmatpush2.msra.mxu0 0.0
        %2352 = vmatprep.subr.mxu0 0.0
        %2353 = vmatpush2.msra.mxu0 0.0
        %2354 = vmatprep.subr.mxu0 0.0
        %2355 = vmatpush2.msra.mxu0 0.0
        %2356 = vmatprep.subr.mxu0 0.0
        %2357 = vmatpush2.msra.mxu0 0.0
        %2358 = vmatprep.subr.mxu0 0.0
        %2359 = vmatpush2.msra.mxu0 0.0
        %2360 = vmatprep.subr.mxu0 0.0
        %2361 = vmatpush2.msra.mxu0 0.0
        %2362 = vmatprep.subr.mxu0 0.0
        %2363 = vmatpush2.msra.mxu0 0.0
        %2364 = vmatprep.subr.mxu0 0.0
        %2365 = vmatpush2.msra.mxu0 0.0
        %2366 = vmatprep.mubr.f32.mxu0 0.0
        %2367 = vmatmul.mubr.f32.gmra.mxu0 %v2276
        %v2368 = vpop.f32.mrf.mxu0
        %v2369 = vadd.f32 %v2300, %v2368
        %v2370 = vpop.f32.mrf.mxu0
        %2371 = vdwg.mxu0
        %v2372 = vadd.f32 %v1733, %v2369
        %s2373 = scalar_lea.vmem %s8, 1
        %v2374 = vld [vmem:[%s2373] sm:$0x1]
        %s2375 = scalar_lea.vmem %s9, 1
        %v2376 = vld [vmem:[%s2375] sm:$0x1]
        %2377 = vadd.xlane.f32.xlu0 %v2372
        %v2378 = vpop.xlane.xlu0 %2377
        %v2379 = vmul.f32 %v2378, %v817
        %v2380 = vsub.f32 %v2372, %v2379
        %v2381 = vmul.f32 %v2380, %v2380
        %2382 = vadd.xlane.f32.xlu0 %v2381
        %v2383 = vpop.xlane.xlu0 %2382
        %v2384 = vmul.f32 %v2383, %v817
        %v2385 = vadd.f32 %v2384, 1e-12
        %v2386 = vrsqrt.pop %v2385
        %v2387 = vmul.f32 %v2380, %v2386
        %v2389 = vlaneseq
        %v2390 = vshrl.u32 %v2389, 7
        %v2391 = vsub.s32 0, %v2390
        %v2392 = vrot.slane %v2374, %v2391
        %v2394 = vmul.f32 %v2387, %v2392
        %v2396 = vlaneseq
        %v2397 = vshrl.u32 %v2396, 7
        %v2398 = vsub.s32 0, %v2397
        %v2399 = vrot.slane %v2376, %v2398
        %v2401 = vadd.f32 %v2394, %v2399
        %s2402 = scalar_lea.vmem [#allocation12], 128
        %v2403 = vld [vmem:[%s2402] sm:$0xff]
        %v2404 = vld [vmem:[%s2402 + $0x8] sm:$0xff]
        %v2405 = vld [vmem:[%s2402 + $0x10] sm:$0xff]
        %v2406 = vld [vmem:[%s2402 + $0x18] sm:$0xff]
        %v2407 = vld [vmem:[%s2402 + $0x20] sm:$0xff]
        %v2408 = vld [vmem:[%s2402 + $0x28] sm:$0xff]
        %v2409 = vld [vmem:[%s2402 + $0x30] sm:$0xff]
        %v2410 = vld [vmem:[%s2402 + $0x38] sm:$0xff]
        %v2411 = vld [vmem:[%s2402 + $0x40] sm:$0xff]
        %v2412 = vld [vmem:[%s2402 + $0x48] sm:$0xff]
        %v2413 = vld [vmem:[%s2402 + $0x50] sm:$0xff]
        %v2414 = vld [vmem:[%s2402 + $0x58] sm:$0xff]
        %v2415 = vld [vmem:[%s2402 + $0x60] sm:$0xff]
        %v2416 = vld [vmem:[%s2402 + $0x68] sm:$0xff]
        %v2417 = vld [vmem:[%s2402 + $0x70] sm:$0xff]
        %v2418 = vld [vmem:[%s2402 + $0x78] sm:$0xff]
        %s2419 = scalar_lea.vmem %s11, 1
        %v2420 = vld [vmem:[%s2419] sm:$0x1]
        %v2422 = vlaneseq
        %v2423 = vshrl.u32 %v2422, 7
        %v2424 = vsub.s32 0, %v2423
        %v2425 = vrot.slane %v2420, %v2424
        %2427 = vmatprep.subr.mxu0 0.0
        %2428 = vmatpush1.msra.mxu0 %v2418
        %2429 = vmatprep.subr.mxu0 0.0
        %2430 = vmatpush1.msra.mxu0 %v2417
        %2431 = vmatprep.subr.mxu0 0.0
        %2432 = vmatpush1.msra.mxu0 %v2416
        %2433 = vmatprep.subr.mxu0 0.0
        %2434 = vmatpush1.msra.mxu0 %v2415
        %2435 = vmatprep.subr.mxu0 0.0
        %2436 = vmatpush1.msra.mxu0 %v2414
        %2437 = vmatprep.subr.mxu0 0.0
        %2438 = vmatpush1.msra.mxu0 %v2413
        %2439 = vmatprep.subr.mxu0 0.0
        %2440 = vmatpush1.msra.mxu0 %v2412
        %2441 = vmatprep.subr.mxu0 0.0
        %2442 = vmatpush1.msra.mxu0 %v2411
        %2443 = vmatprep.subr.mxu0 0.0
        %2444 = vmatpush1.msra.mxu0 %v2410
        %2445 = vmatprep.subr.mxu0 0.0
        %2446 = vmatpush1.msra.mxu0 %v2409
        %2447 = vmatprep.subr.mxu0 0.0
        %2448 = vmatpush1.msra.mxu0 %v2408
        %2449 = vmatprep.subr.mxu0 0.0
        %2450 = vmatpush1.msra.mxu0 %v2407
        %2451 = vmatprep.subr.mxu0 0.0
        %2452 = vmatpush1.msra.mxu0 %v2406
        %2453 = vmatprep.subr.mxu0 0.0
        %2454 = vmatpush1.msra.mxu0 %v2405
        %2455 = vmatprep.subr.mxu0 0.0
        %2456 = vmatpush1.msra.mxu0 %v2404
        %2457 = vmatprep.subr.mxu0 0.0
        %2458 = vmatpush1.msra.mxu0 %v2403
        %2459 = vmatprep.subr.mxu0 0.0
        %2460 = vmatpush2.msra.mxu0 0.0
        %2461 = vmatprep.subr.mxu0 0.0
        %2462 = vmatpush2.msra.mxu0 0.0
        %2463 = vmatprep.subr.mxu0 0.0
        %2464 = vmatpush2.msra.mxu0 0.0
        %2465 = vmatprep.subr.mxu0 0.0
        %2466 = vmatpush2.msra.mxu0 0.0
        %2467 = vmatprep.subr.mxu0 0.0
        %2468 = vmatpush2.msra.mxu0 0.0
        %2469 = vmatprep.subr.mxu0 0.0
        %2470 = vmatpush2.msra.mxu0 0.0
        %2471 = vmatprep.subr.mxu0 0.0
        %2472 = vmatpush2.msra.mxu0 0.0
        %2473 = vmatprep.subr.mxu0 0.0
        %2474 = vmatpush2.msra.mxu0 0.0
        %2475 = vmatprep.subr.mxu0 0.0
        %2476 = vmatpush2.msra.mxu0 0.0
        %2477 = vmatprep.subr.mxu0 0.0
        %2478 = vmatpush2.msra.mxu0 0.0
        %2479 = vmatprep.subr.mxu0 0.0
        %2480 = vmatpush2.msra.mxu0 0.0
        %2481 = vmatprep.subr.mxu0 0.0
        %2482 = vmatpush2.msra.mxu0 0.0
        %2483 = vmatprep.subr.mxu0 0.0
        %2484 = vmatpush2.msra.mxu0 0.0
        %2485 = vmatprep.subr.mxu0 0.0
        %2486 = vmatpush2.msra.mxu0 0.0
        %2487 = vmatprep.subr.mxu0 0.0
        %2488 = vmatpush2.msra.mxu0 0.0
        %2489 = vmatprep.subr.mxu0 0.0
        %2490 = vmatpush2.msra.mxu0 0.0
        %2491 = vmatprep.mubr.f32.mxu0 0.0
        %2492 = vmatmul.mubr.f32.gmra.mxu0 %v2401
        %v2493 = vpop.f32.mrf.mxu0
        %v2494 = vadd.f32 %v2425, %v2493
        %v2495 = vpop.f32.mrf.mxu0
        %2496 = vdwg.mxu0
        %v2497 = vmul.f32 %v2494, 0.5
        %v2498 = vmul.f32 %v2494, 0.044715
        %v2499 = vmul.f32 %v2498, %v2494
        %v2500 = vmul.f32 %v2499, %v2494
        %v2501 = vadd.f32 %v2494, %v2500
        %v2502 = vmul.f32 %v2501, 0.7978846
        %v2503 = vtanh.pop %v2502
        %v2504 = vadd.f32 %v2503, 1.0
        %v2505 = vmul.f32 %v2497, %v2504
        %s2506 = scalar_lea.vmem [#allocation14], 128
        %v2507 = vld [vmem:[%s2506] sm:$0xff]
        %v2508 = vld [vmem:[%s2506 + $0x8] sm:$0xff]
        %v2509 = vld [vmem:[%s2506 + $0x10] sm:$0xff]
        %v2510 = vld [vmem:[%s2506 + $0x18] sm:$0xff]
        %v2511 = vld [vmem:[%s2506 + $0x20] sm:$0xff]
        %v2512 = vld [vmem:[%s2506 + $0x28] sm:$0xff]
        %v2513 = vld [vmem:[%s2506 + $0x30] sm:$0xff]
        %v2514 = vld [vmem:[%s2506 + $0x38] sm:$0xff]
        %v2515 = vld [vmem:[%s2506 + $0x40] sm:$0xff]
        %v2516 = vld [vmem:[%s2506 + $0x48] sm:$0xff]
        %v2517 = vld [vmem:[%s2506 + $0x50] sm:$0xff]
        %v2518 = vld [vmem:[%s2506 + $0x58] sm:$0xff]
        %v2519 = vld [vmem:[%s2506 + $0x60] sm:$0xff]
        %v2520 = vld [vmem:[%s2506 + $0x68] sm:$0xff]
        %v2521 = vld [vmem:[%s2506 + $0x70] sm:$0xff]
        %v2522 = vld [vmem:[%s2506 + $0x78] sm:$0xff]
        %s2523 = scalar_lea.vmem %s13, 1
        %v2524 = vld [vmem:[%s2523] sm:$0x1]
        %v2526 = vlaneseq
        %v2527 = vshrl.u32 %v2526, 7
        %v2528 = vsub.s32 0, %v2527
        %v2529 = vrot.slane %v2524, %v2528
        %2531 = vmatprep.subr.mxu0 0.0
        %2532 = vmatpush1.msra.mxu0 %v2522
        %2533 = vmatprep.subr.mxu0 0.0
        %2534 = vmatpush1.msra.mxu0 %v2521
        %2535 = vmatprep.subr.mxu0 0.0
        %2536 = vmatpush1.msra.mxu0 %v2520
        %2537 = vmatprep.subr.mxu0 0.0
        %2538 = vmatpush1.msra.mxu0 %v2519
        %2539 = vmatprep.subr.mxu0 0.0
        %2540 = vmatpush1.msra.mxu0 %v2518
        %2541 = vmatprep.subr.mxu0 0.0
        %2542 = vmatpush1.msra.mxu0 %v2517
        %2543 = vmatprep.subr.mxu0 0.0
        %2544 = vmatpush1.msra.mxu0 %v2516
        %2545 = vmatprep.subr.mxu0 0.0
        %2546 = vmatpush1.msra.mxu0 %v2515
        %2547 = vmatprep.subr.mxu0 0.0
        %2548 = vmatpush1.msra.mxu0 %v2514
        %2549 = vmatprep.subr.mxu0 0.0
        %2550 = vmatpush1.msra.mxu0 %v2513
        %2551 = vmatprep.subr.mxu0 0.0
        %2552 = vmatpush1.msra.mxu0 %v2512
        %2553 = vmatprep.subr.mxu0 0.0
        %2554 = vmatpush1.msra.mxu0 %v2511
        %2555 = vmatprep.subr.mxu0 0.0
        %2556 = vmatpush1.msra.mxu0 %v2510
        %2557 = vmatprep.subr.mxu0 0.0
        %2558 = vmatpush1.msra.mxu0 %v2509
        %2559 = vmatprep.subr.mxu0 0.0
        %2560 = vmatpush1.msra.mxu0 %v2508
        %2561 = vmatprep.subr.mxu0 0.0
        %2562 = vmatpush1.msra.mxu0 %v2507
        %2563 = vmatprep.subr.mxu0 0.0
        %2564 = vmatpush2.msra.mxu0 0.0
        %2565 = vmatprep.subr.mxu0 0.0
        %2566 = vmatpush2.msra.mxu0 0.0
        %2567 = vmatprep.subr.mxu0 0.0
        %2568 = vmatpush2.msra.mxu0 0.0
        %2569 = vmatprep.subr.mxu0 0.0
        %2570 = vmatpush2.msra.mxu0 0.0
        %2571 = vmatprep.subr.mxu0 0.0
        %2572 = vmatpush2.msra.mxu0 0.0
        %2573 = vmatprep.subr.mxu0 0.0
        %2574 = vmatpush2.msra.mxu0 0.0
        %2575 = vmatprep.subr.mxu0 0.0
        %2576 = vmatpush2.msra.mxu0 0.0
        %2577 = vmatprep.subr.mxu0 0.0
        %2578 = vmatpush2.msra.mxu0 0.0
        %2579 = vmatprep.subr.mxu0 0.0
        %2580 = vmatpush2.msra.mxu0 0.0
        %2581 = vmatprep.subr.mxu0 0.0
        %2582 = vmatpush2.msra.mxu0 0.0
        %2583 = vmatprep.subr.mxu0 0.0
        %2584 = vmatpush2.msra.mxu0 0.0
        %2585 = vmatprep.subr.mxu0 0.0
        %2586 = vmatpush2.msra.mxu0 0.0
        %2587 = vmatprep.subr.mxu0 0.0
        %2588 = vmatpush2.msra.mxu0 0.0
        %2589 = vmatprep.subr.mxu0 0.0
        %2590 = vmatpush2.msra.mxu0 0.0
        %2591 = vmatprep.subr.mxu0 0.0
        %2592 = vmatpush2.msra.mxu0 0.0
        %2593 = vmatprep.subr.mxu0 0.0
        %2594 = vmatpush2.msra.mxu0 0.0
        %2595 = vmatprep.mubr.f32.mxu0 0.0
        %2596 = vmatmul.mubr.f32.gmra.mxu0 %v2505
        %v2597 = vpop.f32.mrf.mxu0
        %v2598 = vadd.f32 %v2529, %v2597
        %v2599 = vpop.f32.mrf.mxu0
        %2600 = vdwg.mxu0
        %v2601 = vadd.f32 %v2401, %v2598
        %s2602 = scalar_lea.vmem %s14, 1
        %v2603 = vld [vmem:[%s2602] sm:$0x1]
        %s2604 = scalar_lea.vmem %s15, 1
        %v2605 = vld [vmem:[%s2604] sm:$0x1]
        %2606 = vadd.xlane.f32.xlu0 %v2601
        %v2607 = vpop.xlane.xlu0 %2606
        %v2608 = vmul.f32 %v2607, %v817
        %v2609 = vsub.f32 %v2601, %v2608
        %v2610 = vmul.f32 %v2609, %v2609
        %2611 = vadd.xlane.f32.xlu0 %v2610
        %v2612 = vpop.xlane.xlu0 %2611
        %v2613 = vmul.f32 %v2612, %v817
        %v2614 = vadd.f32 %v2613, 1e-12
        %v2615 = vrsqrt.pop %v2614
        %v2616 = vmul.f32 %v2609, %v2615
        %v2618 = vlaneseq
        %v2619 = vshrl.u32 %v2618, 7
        %v2620 = vsub.s32 0, %v2619
        %v2621 = vrot.slane %v2603, %v2620
        %v2623 = vmul.f32 %v2616, %v2621
        %v2625 = vlaneseq
        %v2626 = vshrl.u32 %v2625, 7
        %v2627 = vsub.s32 0, %v2626
        %v2628 = vrot.slane %v2605, %v2627
        %v2630 = vadd.f32 %v2623, %v2628
        %v2631 = vld [vmem:[#allocation15] sm:$0xff]
        %v2632 = vld [vmem:[#allocation15 + $0x8] sm:$0xff]
        %v2633 = vld [vmem:[#allocation15 + $0x10] sm:$0xff]
        %v2634 = vld [vmem:[#allocation15 + $0x18] sm:$0xff]
        %v2635 = vld [vmem:[#allocation15 + $0x20] sm:$0xff]
        %v2636 = vld [vmem:[#allocation15 + $0x28] sm:$0xff]
        %v2637 = vld [vmem:[#allocation15 + $0x30] sm:$0xff]
        %v2638 = vld [vmem:[#allocation15 + $0x38] sm:$0xff]
        %v2639 = vld [vmem:[#allocation15 + $0x40] sm:$0xff]
        %v2640 = vld [vmem:[#allocation15 + $0x48] sm:$0xff]
        %v2641 = vld [vmem:[#allocation15 + $0x50] sm:$0xff]
        %v2642 = vld [vmem:[#allocation15 + $0x58] sm:$0xff]
        %v2643 = vld [vmem:[#allocation15 + $0x60] sm:$0xff]
        %v2644 = vld [vmem:[#allocation15 + $0x68] sm:$0xff]
        %v2645 = vld [vmem:[#allocation15 + $0x70] sm:$0xff]
        %v2646 = vld [vmem:[#allocation15 + $0x78] sm:$0xff]
        %v2647 = vld [vmem:[%s17] sm:$0x1]
        %2648 = vmatprep.subr.mxu0 0.0
        %2649 = vmatpush1.msra.mxu0 %v2646
        %2650 = vmatprep.subr.mxu0 0.0
        %2651 = vmatpush1.msra.mxu0 %v2645
        %2652 = vmatprep.subr.mxu0 0.0
        %2653 = vmatpush1.msra.mxu0 %v2644
        %2654 = vmatprep.subr.mxu0 0.0
        %2655 = vmatpush1.msra.mxu0 %v2643
        %2656 = vmatprep.subr.mxu0 0.0
        %2657 = vmatpush1.msra.mxu0 %v2642
        %2658 = vmatprep.subr.mxu0 0.0
        %2659 = vmatpush1.msra.mxu0 %v2641
        %2660 = vmatprep.subr.mxu0 0.0
        %2661 = vmatpush1.msra.mxu0 %v2640
        %2662 = vmatprep.subr.mxu0 0.0
        %2663 = vmatpush1.msra.mxu0 %v2639
        %2664 = vmatprep.subr.mxu0 0.0
        %2665 = vmatpush1.msra.mxu0 %v2638
        %2666 = vmatprep.subr.mxu0 0.0
        %2667 = vmatpush1.msra.mxu0 %v2637
        %2668 = vmatprep.subr.mxu0 0.0
        %2669 = vmatpush1.msra.mxu0 %v2636
        %2670 = vmatprep.subr.mxu0 0.0
        %2671 = vmatpush1.msra.mxu0 %v2635
        %2672 = vmatprep.subr.mxu0 0.0
        %2673 = vmatpush1.msra.mxu0 %v2634
        %2674 = vmatprep.subr.mxu0 0.0
        %2675 = vmatpush1.msra.mxu0 %v2633
        %2676 = vmatprep.subr.mxu0 0.0
        %2677 = vmatpush1.msra.mxu0 %v2632
        %2678 = vmatprep.subr.mxu0 0.0
        %2679 = vmatpush1.msra.mxu0 %v2631
        %2680 = vmatprep.subr.mxu0 0.0
        %2681 = vmatpush2.msra.mxu0 0.0
        %2682 = vmatprep.subr.mxu0 0.0
        %2683 = vmatpush2.msra.mxu0 0.0
        %2684 = vmatprep.subr.mxu0 0.0
        %2685 = vmatpush2.msra.mxu0 0.0
        %2686 = vmatprep.subr.mxu0 0.0
        %2687 = vmatpush2.msra.mxu0 0.0
        %2688 = vmatprep.subr.mxu0 0.0
        %2689 = vmatpush2.msra.mxu0 0.0
        %2690 = vmatprep.subr.mxu0 0.0
        %2691 = vmatpush2.msra.mxu0 0.0
        %2692 = vmatprep.subr.mxu0 0.0
        %2693 = vmatpush2.msra.mxu0 0.0
        %2694 = vmatprep.subr.mxu0 0.0
        %2695 = vmatpush2.msra.mxu0 0.0
        %2696 = vmatprep.subr.mxu0 0.0
        %2697 = vmatpush2.msra.mxu0 0.0
        %2698 = vmatprep.subr.mxu0 0.0
        %2699 = vmatpush2.msra.mxu0 0.0
        %2700 = vmatprep.subr.mxu0 0.0
        %2701 = vmatpush2.msra.mxu0 0.0
        %2702 = vmatprep.subr.mxu0 0.0
        %2703 = vmatpush2.msra.mxu0 0.0
        %2704 = vmatprep.subr.mxu0 0.0
        %2705 = vmatpush2.msra.mxu0 0.0
        %2706 = vmatprep.subr.mxu0 0.0
        %2707 = vmatpush2.msra.mxu0 0.0
        %2708 = vmatprep.subr.mxu0 0.0
        %2709 = vmatpush2.msra.mxu0 0.0
        %2710 = vmatprep.subr.mxu0 0.0
        %2711 = vmatpush2.msra.mxu0 0.0
        %2712 = vmatprep.mubr.f32.mxu0 0.0
        %2713 = vmatmul.mubr.f32.gmra.mxu0 %v2630
        %v2714 = vpop.f32.mrf.mxu0
        %v2715 = vadd.f32 %v2647, %v2714
        %v2716 = vpop.f32.mrf.mxu0
        %2717 = vdwg.mxu0
        %v2718 = vtanh.pop %v2715
        %v2719 = vld [vmem:[%s18] sm:$0x1]
        %v2720 = vmul.f32 %v2718, %v2719
        %vm2721 = vcmask 1040384
        %v2722 = vsel %vm2721, %v2720, 0.0
        %2723 = vadd.xlane.f32.xlu0 %v2722
        %v2724 = vpop.xlane.xlu0 %2723
        %v2725 = vld [vmem:[%s19] sm:$0x1]
        %v2726 = vld [vmem:[%s20] sm:$0x1]
        %2727 = vmatprep.subr.mxu0 0.0
        %2728 = vmatpush1.xpose.msra.mxu0 0.0
        %2729 = vmatprep.subr.mxu0 0.0
        %2730 = vmatpush1.xpose.msra.mxu0 0.0
        %2731 = vmatprep.subr.mxu0 0.0
        %2732 = vmatpush1.xpose.msra.mxu0 0.0
        %2733 = vmatprep.subr.mxu0 0.0
        %2734 = vmatpush1.xpose.msra.mxu0 0.0
        %2735 = vmatprep.subr.mxu0 0.0
        %2736 = vmatpush1.xpose.msra.mxu0 0.0
        %2737 = vmatprep.subr.mxu0 0.0
        %2738 = vmatpush1.xpose.msra.mxu0 0.0
        %2739 = vmatprep.subr.mxu0 0.0
        %2740 = vmatpush1.xpose.msra.mxu0 0.0
        %2741 = vmatprep.subr.mxu0 0.0
        %2742 = vmatpush1.xpose.msra.mxu0 0.0
        %2743 = vmatprep.subr.mxu0 0.0
        %2744 = vmatpush1.xpose.msra.mxu0 0.0
        %2745 = vmatprep.subr.mxu0 0.0
        %2746 = vmatpush1.xpose.msra.mxu0 0.0
        %2747 = vmatprep.subr.mxu0 0.0
        %2748 = vmatpush1.xpose.msra.mxu0 0.0
        %2749 = vmatprep.subr.mxu0 0.0
        %2750 = vmatpush1.xpose.msra.mxu0 0.0
        %2751 = vmatprep.subr.mxu0 0.0
        %2752 = vmatpush1.xpose.msra.mxu0 0.0
        %2753 = vmatprep.subr.mxu0 0.0
        %2754 = vmatpush1.xpose.msra.mxu0 0.0
        %2755 = vmatprep.subr.mxu0 0.0
        %2756 = vmatpush1.xpose.msra.mxu0 0.0
        %2757 = vmatprep.subr.mxu0 0.0
        %2758 = vmatpush1.xpose.msra.mxu0 %v840
        %2759 = vmatprep.subr.mxu0 0.0
        %2760 = vmatpush2.xpose.msra.mxu0 0.0
        %2761 = vmatprep.subr.mxu0 0.0
        %2762 = vmatpush2.xpose.msra.mxu0 0.0
        %2763 = vmatprep.subr.mxu0 0.0
        %2764 = vmatpush2.xpose.msra.mxu0 0.0
        %2765 = vmatprep.subr.mxu0 0.0
        %2766 = vmatpush2.xpose.msra.mxu0 0.0
        %2767 = vmatprep.subr.mxu0 0.0
        %2768 = vmatpush2.xpose.msra.mxu0 0.0
        %2769 = vmatprep.subr.mxu0 0.0
        %2770 = vmatpush2.xpose.msra.mxu0 0.0
        %2771 = vmatprep.subr.mxu0 0.0
        %2772 = vmatpush2.xpose.msra.mxu0 0.0
        %2773 = vmatprep.subr.mxu0 0.0
        %2774 = vmatpush2.xpose.msra.mxu0 0.0
        %2775 = vmatprep.subr.mxu0 0.0
        %2776 = vmatpush2.xpose.msra.mxu0 0.0
        %2777 = vmatprep.subr.mxu0 0.0
        %2778 = vmatpush2.xpose.msra.mxu0 0.0
        %2779 = vmatprep.subr.mxu0 0.0
        %2780 = vmatpush2.xpose.msra.mxu0 0.0
        %2781 = vmatprep.subr.mxu0 0.0
        %2782 = vmatpush2.xpose.msra.mxu0 0.0
        %2783 = vmatprep.subr.mxu0 0.0
        %2784 = vmatpush2.xpose.msra.mxu0 0.0
        %2785 = vmatprep.subr.mxu0 0.0
        %2786 = vmatpush2.xpose.msra.mxu0 0.0
        %2787 = vmatprep.subr.mxu0 0.0
        %2788 = vmatpush2.xpose.msra.mxu0 0.0
        %2789 = vmatprep.subr.mxu0 0.0
        %2790 = vmatpush2.xpose.msra.mxu0 0.0
        %2791 = vmatprep.mubr.f32.mxu0 0.0
        %2792 = vmatmul.mubr.f32.gmra.mxu0 %v2726
        %v2793 = vpop.f32.mrf.mxu0
        %v2794 = vadd.f32 0.0, %v2793
        %v2795 = vpop.f32.mrf.mxu0
        %2796 = vdwg.mxu0
        %2797 = vmatprep.subr.mxu0 0.0
        %2798 = vmatpush1.xpose.msra.mxu0 0.0
        %2799 = vmatprep.subr.mxu0 0.0
        %2800 = vmatpush1.xpose.msra.mxu0 0.0
        %2801 = vmatprep.subr.mxu0 0.0
        %2802 = vmatpush1.xpose.msra.mxu0 0.0
        %2803 = vmatprep.subr.mxu0 0.0
        %2804 = vmatpush1.xpose.msra.mxu0 0.0
        %2805 = vmatprep.subr.mxu0 0.0
        %2806 = vmatpush1.xpose.msra.mxu0 0.0
        %2807 = vmatprep.subr.mxu0 0.0
        %2808 = vmatpush1.xpose.msra.mxu0 0.0
        %2809 = vmatprep.subr.mxu0 0.0
        %2810 = vmatpush1.xpose.msra.mxu0 0.0
        %2811 = vmatprep.subr.mxu0 0.0
        %2812 = vmatpush1.xpose.msra.mxu0 0.0
        %2813 = vmatprep.subr.mxu0 0.0
        %2814 = vmatpush1.xpose.msra.mxu0 0.0
        %2815 = vmatprep.subr.mxu0 0.0
        %2816 = vmatpush1.xpose.msra.mxu0 0.0
        %2817 = vmatprep.subr.mxu0 0.0
        %2818 = vmatpush1.xpose.msra.mxu0 0.0
        %2819 = vmatprep.subr.mxu0 0.0
        %2820 = vmatpush1.xpose.msra.mxu0 0.0
        %2821 = vmatprep.subr.mxu0 0.0
        %2822 = vmatpush1.xpose.msra.mxu0 0.0
        %2823 = vmatprep.subr.mxu0 0.0
        %2824 = vmatpush1.xpose.msra.mxu0 0.0
        %2825 = vmatprep.subr.mxu0 0.0
        %2826 = vmatpush1.xpose.msra.mxu0 0.0
        %2827 = vmatprep.subr.mxu0 0.0
        %2828 = vmatpush1.xpose.msra.mxu0 %v2630
        %2829 = vmatprep.subr.mxu0 0.0
        %2830 = vmatpush2.xpose.msra.mxu0 0.0
        %2831 = vmatprep.subr.mxu0 0.0
        %2832 = vmatpush2.xpose.msra.mxu0 0.0
        %2833 = vmatprep.subr.mxu0 0.0
        %2834 = vmatpush2.xpose.msra.mxu0 0.0
        %2835 = vmatprep.subr.mxu0 0.0
        %2836 = vmatpush2.xpose.msra.mxu0 0.0
        %2837 = vmatprep.subr.mxu0 0.0
        %2838 = vmatpush2.xpose.msra.mxu0 0.0
        %2839 = vmatprep.subr.mxu0 0.0
        %2840 = vmatpush2.xpose.msra.mxu0 0.0
        %2841 = vmatprep.subr.mxu0 0.0
        %2842 = vmatpush2.xpose.msra.mxu0 0.0
        %2843 = vmatprep.subr.mxu0 0.0
        %2844 = vmatpush2.xpose.msra.mxu0 0.0
        %2845 = vmatprep.subr.mxu0 0.0
        %2846 = vmatpush2.xpose.msra.mxu0 0.0
        %2847 = vmatprep.subr.mxu0 0.0
        %2848 = vmatpush2.xpose.msra.mxu0 0.0
        %2849 = vmatprep.subr.mxu0 0.0
        %2850 = vmatpush2.xpose.msra.mxu0 0.0
        %2851 = vmatprep.subr.mxu0 0.0
        %2852 = vmatpush2.xpose.msra.mxu0 0.0
        %2853 = vmatprep.subr.mxu0 0.0
        %2854 = vmatpush2.xpose.msra.mxu0 0.0
        %2855 = vmatprep.subr.mxu0 0.0
        %2856 = vmatpush2.xpose.msra.mxu0 0.0
        %2857 = vmatprep.subr.mxu0 0.0
        %2858 = vmatpush2.xpose.msra.mxu0 0.0
        %2859 = vmatprep.subr.mxu0 0.0
        %2860 = vmatpush2.xpose.msra.mxu0 0.0
        %2861 = vmatprep.mubr.f32.mxu0 0.0
        %2862 = vmatmul.mubr.f32.gmra.mxu0 %v2725
        %v2863 = vpop.f32.mrf.mxu0
        %v2864 = vadd.f32 %v2794, %v2863
        %v2865 = vpop.f32.mrf.mxu0
        %2866 = vdwg.mxu0
        %v2867 = vadd.f32 %v2864, %v2724
        %s2868 = sld [smem:[#allocation2]]
        %v2869 = vstv %s2868
        %v2870 = vadd.f32 %v2867, %v2869
        %v2871 = vsub.f32 0.0, %v2870
        %v2872 = vmul.f32 %v2871, 1.442695
        %v2873 = vpow.pop %v2872
        %v2874 = vadd.f32 %v2873, 1.0
        %v2875 = vrcp.pop %v2874
        %v2876 = vsel %vm1216, %v2875, 0.0
        %2877 = vst [vmem:[%s807] sm:$0x1] %v2876
        %s2878 = sand.u32 %s524, 1
        %s2879 = scalar_lea.sflag [#allocation5], %s2878
        %s2880 = sand.u32 %s524, 1
        %s2881 = scalar_lea.vmem [#allocation17], %s2880
        // Predicated region
        $region141: #{tpu_custom_call.1} parent=107 // pred_check
          %p2882 = pneg %p534
        $region142: #{tpu_custom_call.1} parent=107 // pred_check_branch
          %2884 = sbr.rel (%p2882) target = $region144
        $region143: #{tpu_custom_call.1} parent=107 // pred_region
          %s2886 = ssub.s32 16, 16
          %2887 = vsyncadd %s2879, %s2886
          %s2888 = smul.addr %s44, 16
          %s2889 = scalar_lea.hbm %s22, %s2888
          %s2891 = sshll.u32 %s2881, 4
          %s2892 = int_to_ptr.vmem [resolvable:$true] %s2891
          %2894 = dma.vmem_to_hbm [thread:$0]  %s2892, 16, %s2889, %s2879
        $region144: #{tpu_custom_call.1} parent=107 // pred_fallthru
          _
      $region108: #{tpu_custom_call.1} parent=5 // pred_fallthru
        _
      %p2895 = scmp.le.s32.totalorder 2, %s39
      // Predicated region
      $region145: #{tpu_custom_call.1} parent=5 // pred_check
        %p2896 = pneg %p2895
      $region146: #{tpu_custom_call.1} parent=5 // pred_check_branch
        %2898 = sbr.rel (%p2896) target = $region148
      $region147: #{tpu_custom_call.1} parent=5 // pred_region
        %s2899 = ssub.s32 %s39, 2
        // Predicated region
        $region149: #{tpu_custom_call.1} parent=147 // pred_check
          %p2900 = pneg %p540
        $region150: #{tpu_custom_call.1} parent=147 // pred_check_branch
          %2902 = sbr.rel (%p2900) target = $region152
        $region151: #{tpu_custom_call.1} parent=147 // pred_region
          %s2903 = sand.u32 %s525, 1
          %s2904 = scalar_lea.sflag [#allocation5], %s2903
          %s2905 = sand.u32 %s525, 1
          %s2906 = scalar_lea.vmem [#allocation17], %s2905
          %2907 = dma.done %s2904, 16
        $region152: #{tpu_custom_call.1} parent=147 // pred_fallthru
          _
      $region148: #{tpu_custom_call.1} parent=5 // pred_fallthru
        _
    $region6: #{tpu_custom_call.1} parent=1 // loop_footer
      %s43 = sadd.s32 1, %s39
    $region7: #{tpu_custom_call.1} parent=1 // loop_footer_branch
      %38 = sbr.rel target = $region3
    $region8: #{tpu_custom_call.1} parent=1 // loop_exit
      _
    %2908 = vsyncpa [#allocation4], 1
    %s2909 = scalar_lea.sflag [#allocation4], 1
    %2910 = vsyncpa %s2909, 1
    %2911 = vsyncpa [#allocation7], 1
    %2912 = vsyncpa [#allocation10], 1
    %2913 = vsyncpa [#allocation13], 1
    %2914 = vsyncpa [#allocation16], 1
    %2915 = vsyncpa [#allocation5], 1
    %s2916 = scalar_lea.sflag [#allocation5], 1
    %2917 = vsyncpa %s2916, 1

</llo_original>
